<compile_context>
chip_gen: v7x
topology: tpu7x:2x2x1
jax: 0.10.0
libtpu: 0.0.40
codegen_flags: <defaults>
</compile_context>

<pallas_src>
import math

import jax
import jax.numpy as jnp
from jax.experimental import pallas as pl
from jax.experimental.pallas import tpu as pltpu

IN_DIM = 25
HID = 200
IN_PAD = 128        # 25 padded to one full lane width
HID_PAD = 256       # 200 padded to the MXU tile (2x128 passes on v5e)


def _top_model_kernel(x_ref,
                      w_s1_ref, b_s1_ref,
                      w_s2_ref, b_s2_ref,
                      w_h1_ref, b_h1_ref,
                      w_h2a_ref, b_h2a_ref,
                      w_h2b_ref, b_h2b_ref,
                      w_out_ref, b_out_ref,
                      out_ref):
    def dense_relu(h_bf16, w_ref, b_ref):
        y = jnp.dot(h_bf16, w_ref[...], preferred_element_type=jnp.float32)
        return jnp.maximum(y + b_ref[...], 0.0)

    # shared trunk
    h = dense_relu(x_ref[...], w_s1_ref, b_s1_ref)                # (TB, 256) f32
    h = dense_relu(h.astype(jnp.bfloat16), w_s2_ref, b_s2_ref)    # (TB, 256)

    # hidden1 of both heads fused along N (same input -> no extra MACs):
    # lanes [0:256] = Y1 path, [256:512] = Y0 path
    h = dense_relu(h.astype(jnp.bfloat16), w_h1_ref, b_h1_ref)    # (TB, 512)
    h_bf = h.astype(jnp.bfloat16)

    # hidden2 per head: two (TB,256)@(256,256) dots.  (A block-diagonal
    # (512,512) fusion would DOUBLE the MAC count of the dominant stage.)
    h1 = dense_relu(h_bf[:, :HID_PAD], w_h2a_ref, b_h2a_ref)      # (TB, 256)
    h0 = dense_relu(h_bf[:, HID_PAD:], w_h2b_ref, b_h2b_ref)      # (TB, 256)

    # out_Y1 / out_Y0 (200 -> 1): VPU multiply + lane reduce (MXU has no
    # slack to spare, these slots do); store each head directly into its
    # output lane -- no concat / relayout of (TB,1) slivers.
    w_out = w_out_ref[...]                                        # (2, 256) f32
    b_out = b_out_ref[...]                                        # (1, 2)   f32
    out_ref[:, 0:1] = (jnp.sum(h1 * w_out[0:1, :], axis=-1, keepdims=True)
                       + b_out[:, 0:1])
    out_ref[:, 1:2] = (jnp.sum(h0 * w_out[1:2, :], axis=-1, keepdims=True)
                       + b_out[:, 1:2])


def _round_up(n, m):
    return ((n + m - 1) // m) * m


def _pad2d(w, rows, cols):
    return jnp.zeros((rows, cols), jnp.float32).at[:w.shape[0], :w.shape[1]].set(w)


def _pad_bias(b, cols):
    return jnp.zeros((1, cols), jnp.float32).at[0, :b.shape[-1]].set(b.reshape(-1))


def pack_params(params):
    """Pad / fuse per-layer (W (in,out), b (out,)) params into kernel operands."""
    w_s1, b_s1 = params["shared1"]
    w_s2, b_s2 = params["shared2"]
    w_h1y1, b_h1y1 = params["hidden1_Y1"]
    w_h2y1, b_h2y1 = params["hidden2_Y1"]
    w_o1, b_o1 = params["out_Y1"]
    w_h1y0, b_h1y0 = params["hidden1_Y0"]
    w_h2y0, b_h2y0 = params["hidden2_Y0"]
    w_o0, b_o0 = params["out_Y0"]

    W_s1 = _pad2d(w_s1, IN_PAD, HID_PAD).astype(jnp.bfloat16)
    B_s1 = _pad_bias(b_s1, HID_PAD)
    W_s2 = _pad2d(w_s2, HID_PAD, HID_PAD).astype(jnp.bfloat16)
    B_s2 = _pad_bias(b_s2, HID_PAD)

    # hidden1 of both heads fused along the output axis: (256, 512)
    W_h1 = jnp.concatenate(
        [_pad2d(w_h1y1, HID_PAD, HID_PAD), _pad2d(w_h1y0, HID_PAD, HID_PAD)],
        axis=1).astype(jnp.bfloat16)
    B_h1 = jnp.concatenate(
        [_pad_bias(b_h1y1, HID_PAD), _pad_bias(b_h1y0, HID_PAD)], axis=1)

    # hidden2 kept as two separate (256,256) operands (no block-diag fusion)
    W_h2a = _pad2d(w_h2y1, HID_PAD, HID_PAD).astype(jnp.bfloat16)
    B_h2a = _pad_bias(b_h2y1, HID_PAD)
    W_h2b = _pad2d(w_h2y0, HID_PAD, HID_PAD).astype(jnp.bfloat16)
    B_h2b = _pad_bias(b_h2y0, HID_PAD)

    # output layers as rows for the VPU multiply-reduce (kept f32, tiny)
    W_out = (jnp.zeros((2, HID_PAD), jnp.float32)
             .at[0, :HID].set(w_o1.reshape(-1))
             .at[1, :HID].set(w_o0.reshape(-1)))
    B_out = jnp.concatenate(
        [b_o1.reshape(1, 1), b_o0.reshape(1, 1)], axis=1).astype(jnp.float32)

    return (W_s1, B_s1, W_s2, B_s2, W_h1, B_h1,
            W_h2a, B_h2a, W_h2b, B_h2b, W_out, B_out)


def top_model_forward(x, params, tb=2048):
    """Eval-path forward.  x: (B, 25) -> (y1 (B, 1), y0 (B, 1))."""
    B = x.shape[0]
    packed = pack_params(params)

    # --- batch tiling --------------------------------------------------------
    B_units = _round_up(B, HID_PAD)          # multiple of 256 (MXU-aligned rows)
    TB = min(tb, B_units)
    if TB == B_units and B_units >= 2 * HID_PAD:
        # whole batch would be one grid step: split into >=2 tiles so the
        # "parallel" grid axis can shard onto both v7x TensorCores.
        TB = _round_up(B_units // 2, HID_PAD)
    B_pad = _round_up(B, TB)
    grid = B_pad // TB

    # pad features 25 -> 128 and batch to a tile multiple; bf16 halves the
    # only per-step HBM stream (weights stay resident).
    x_pad = (jnp.zeros((B_pad, IN_PAD), jnp.bfloat16)
             .at[:B, :IN_DIM].set(x.astype(jnp.bfloat16)))

    def resident(shape):
        # same block every grid step -> VMEM-resident, single DMA
        return pl.BlockSpec(shape, lambda i: (0, 0))

    # advisory cost for XLA's scheduler (padded MAC counts, hidden2 split)
    macs_per_row = (IN_PAD * HID_PAD            # shared1
                    + HID_PAD * HID_PAD         # shared2
                    + HID_PAD * 2 * HID_PAD     # hidden1 (both heads)
                    + 2 * HID_PAD * HID_PAD     # hidden2 (two 256x256 dots)
                    + 2 * HID_PAD)              # two output heads
    weight_bytes = sum(int(a.size) * a.dtype.itemsize for a in packed)
    cost = pl.CostEstimate(
        flops=2 * B_pad * macs_per_row,
        transcendentals=0,
        bytes_accessed=B_pad * (IN_PAD * 2 + 2 * 4) + weight_bytes)

    out = pl.pallas_call(
        _top_model_kernel,
        out_shape=jax.ShapeDtypeStruct((B_pad, 2), jnp.float32),
        grid=(grid,),
        in_specs=[
            pl.BlockSpec((TB, IN_PAD), lambda i: (i, 0)),        # x tiles stream
            resident((IN_PAD, HID_PAD)), resident((1, HID_PAD)),
            resident((HID_PAD, HID_PAD)), resident((1, HID_PAD)),
            resident((HID_PAD, 2 * HID_PAD)), resident((1, 2 * HID_PAD)),
            resident((HID_PAD, HID_PAD)), resident((1, HID_PAD)),
            resident((HID_PAD, HID_PAD)), resident((1, HID_PAD)),
            resident((2, HID_PAD)), resident((1, 2)),
        ],
        out_specs=pl.BlockSpec((TB, 2), lambda i: (i, 0)),
        compiler_params=pltpu.CompilerParams(
            dimension_semantics=("parallel",),
            vmem_limit_bytes=48 * 1024 * 1024),
        cost_estimate=cost,
    )(x_pad, *packed)

    return out[:B, 0:1], out[:B, 1:2]


def _xavier_uniform(key, fan_in, fan_out):
    # matches torch.nn.init.xavier_uniform_ (gain=1); stored (in, out)
    a = math.sqrt(6.0 / (fan_in + fan_out))
    return jax.random.uniform(key, (fan_in, fan_out), jnp.float32, -a, a)


def _linear_bias(key, fan_in, fan_out):
    # PyTorch nn.Linear default bias init: U(-1/sqrt(fan_in), 1/sqrt(fan_in))
    bound = 1.0 / math.sqrt(fan_in)
    return jax.random.uniform(key, (fan_out,), jnp.float32, -bound, bound)


def init_params(key):
    layer_dims = {
        "shared1": (IN_DIM, HID),
        "shared2": (HID, HID),
        "hidden1_Y1": (HID, HID),
        "hidden2_Y1": (HID, HID),
        "out_Y1": (HID, 1),
        "hidden1_Y0": (HID, HID),
        "hidden2_Y0": (HID, HID),
        "out_Y0": (HID, 1),
    }
    params = {}
    for name, (fin, fout) in layer_dims.items():
        key, kw, kb = jax.random.split(key, 3)
        params[name] = (_xavier_uniform(kw, fin, fout), _linear_bias(kb, fin, fout))
    return params


def _ref_forward(x, params):
    """Plain-JAX reference mirroring the kernel's bf16-weight / bf16-activation,
    f32-accumulate arithmetic (final 200->1 layer stays f32)."""
    def lin(h, name, round_bf16=True):
        w, b = params[name]
        if round_bf16:
            h = h.astype(jnp.bfloat16).astype(jnp.float32)
            w = w.astype(jnp.bfloat16).astype(jnp.float32)
        return h @ w + b.reshape(1, -1)

    h = jax.nn.relu(lin(x, "shared1"))
    h = jax.nn.relu(lin(h, "shared2"))
    y1 = jax.nn.relu(lin(h, "hidden1_Y1"))
    y1 = jax.nn.relu(lin(y1, "hidden2_Y1"))
    y1 = lin(y1, "out_Y1", round_bf16=False)
    y0 = jax.nn.relu(lin(h, "hidden1_Y0"))
    y0 = jax.nn.relu(lin(y0, "hidden2_Y0"))
    y0 = lin(y0, "out_Y0", round_bf16=False)
    return y1, y0


if __name__ == "__main__":
    key = jax.random.PRNGKey(0)
    key, kx = jax.random.split(key)

    B = 8  # small demo batch
    x = jax.random.normal(kx, (B, IN_DIM), jnp.float32)
    params = init_params(key)

    y1, y0 = top_model_forward(x, params)
    jax.block_until_ready((y1, y0))
    assert y1.shape == (B, 1) and y0.shape == (B, 1)

    # sanity check vs plain-JAX reference (fed the same bf16-rounded input)
    x_bf = x.astype(jnp.bfloat16).astype(jnp.float32)
    r1, r0 = _ref_forward(x_bf, params)
    assert jnp.allclose(y1, r1, atol=1e-2, rtol=1e-2)
    assert jnp.allclose(y0, r0, atol=1e-2, rtol=1e-2)

    print("KERNEL_OK")
</pallas_src>

<mosaic_0001>
module attributes {stable_mosaic.version = 11 : i64} {
  func.func @_top_model_kernel(%arg0: i32, %arg1: memref<256x128xbf16, #tpu.memory_space<vmem>>, %arg2: memref<128x256xbf16, #tpu.memory_space<vmem>>, %arg3: memref<1x256xf32, #tpu.memory_space<vmem>>, %arg4: memref<256x256xbf16, #tpu.memory_space<vmem>>, %arg5: memref<1x256xf32, #tpu.memory_space<vmem>>, %arg6: memref<256x512xbf16, #tpu.memory_space<vmem>>, %arg7: memref<1x512xf32, #tpu.memory_space<vmem>>, %arg8: memref<256x256xbf16, #tpu.memory_space<vmem>>, %arg9: memref<1x256xf32, #tpu.memory_space<vmem>>, %arg10: memref<256x256xbf16, #tpu.memory_space<vmem>>, %arg11: memref<1x256xf32, #tpu.memory_space<vmem>>, %arg12: memref<2x256xf32, #tpu.memory_space<vmem>>, %arg13: memref<1x2xf32, #tpu.memory_space<vmem>>, %arg14: memref<256x2xf32, #tpu.memory_space<vmem>>) attributes {dimension_semantics = [#tpu.dimension_semantics<parallel>], iteration_bounds = array<i64: 1>, scalar_prefetch = 0 : i64, scratch_operands = 0 : i64, tpu.core_type = #tpu.core_type<tc>, window_params = [{transform_indices = @transform_0, window_bounds = array<i64: 256, 128>}, {pipeline_mode = #tpu.pipeline_mode<synchronous>, transform_indices = @transform_1, window_bounds = array<i64: 128, 256>}, {pipeline_mode = #tpu.pipeline_mode<synchronous>, transform_indices = @transform_2, window_bounds = array<i64: 1, 256>}, {pipeline_mode = #tpu.pipeline_mode<synchronous>, transform_indices = @transform_3, window_bounds = array<i64: 256, 256>}, {pipeline_mode = #tpu.pipeline_mode<synchronous>, transform_indices = @transform_4, window_bounds = array<i64: 1, 256>}, {pipeline_mode = #tpu.pipeline_mode<synchronous>, transform_indices = @transform_5, window_bounds = array<i64: 256, 512>}, {pipeline_mode = #tpu.pipeline_mode<synchronous>, transform_indices = @transform_6, window_bounds = array<i64: 1, 512>}, {pipeline_mode = #tpu.pipeline_mode<synchronous>, transform_indices = @transform_7, window_bounds = array<i64: 256, 256>}, {pipeline_mode = #tpu.pipeline_mode<synchronous>, transform_indices = @transform_8, window_bounds = array<i64: 1, 256>}, {pipeline_mode = #tpu.pipeline_mode<synchronous>, transform_indices = @transform_9, window_bounds = array<i64: 256, 256>}, {pipeline_mode = #tpu.pipeline_mode<synchronous>, transform_indices = @transform_10, window_bounds = array<i64: 1, 256>}, {pipeline_mode = #tpu.pipeline_mode<synchronous>, transform_indices = @transform_11, window_bounds = array<i64: 2, 256>}, {pipeline_mode = #tpu.pipeline_mode<synchronous>, transform_indices = @transform_12, window_bounds = array<i64: 1, 2>}, {transform_indices = @transform_13, window_bounds = array<i64: 256, 2>}]} {
    %c0 = arith.constant 0 : index
    %c0_0 = arith.constant 0 : index
    %0 = vector.load %arg1[%c0, %c0_0] : memref<256x128xbf16, #tpu.memory_space<vmem>>, vector<256x128xbf16>
    %c0_1 = arith.constant 0 : index
    %c0_2 = arith.constant 0 : index
    %1 = vector.load %arg2[%c0_1, %c0_2] : memref<128x256xbf16, #tpu.memory_space<vmem>>, vector<128x256xbf16>
    %cst = arith.constant dense<0.000000e+00> : vector<256x256xf32>
    %2 = tpu.matmul %0, %1, %cst {dimension_numbers = #tpu.dot_dimension_numbers<[1], [0], [0], [1], [0, 0, 1, 1], [], []>} : vector<256x128xbf16>, vector<128x256xbf16>, vector<256x256xf32> -> vector<256x256xf32>
    %c0_3 = arith.constant 0 : index
    %c0_4 = arith.constant 0 : index
    %3 = vector.load %arg3[%c0_3, %c0_4] : memref<1x256xf32, #tpu.memory_space<vmem>>, vector<1x256xf32>
    %4 = vector.broadcast %3 : vector<1x256xf32> to vector<256x256xf32>
    %5 = arith.addf %2, %4 : vector<256x256xf32>
    %cst_5 = arith.constant 0.000000e+00 : f32
    %6 = vector.broadcast %cst_5 : f32 to vector<256x256xf32>
    %7 = arith.maximumf %5, %6 : vector<256x256xf32>
    %8 = arith.truncf %7 : vector<256x256xf32> to vector<256x256xbf16>
    %c0_6 = arith.constant 0 : index
    %c0_7 = arith.constant 0 : index
    %9 = vector.load %arg4[%c0_6, %c0_7] : memref<256x256xbf16, #tpu.memory_space<vmem>>, vector<256x256xbf16>
    %cst_8 = arith.constant dense<0.000000e+00> : vector<256x256xf32>
    %10 = tpu.matmul %8, %9, %cst_8 {dimension_numbers = #tpu.dot_dimension_numbers<[1], [0], [0], [1], [0, 0, 1, 1], [], []>} : vector<256x256xbf16>, vector<256x256xbf16>, vector<256x256xf32> -> vector<256x256xf32>
    %c0_9 = arith.constant 0 : index
    %c0_10 = arith.constant 0 : index
    %11 = vector.load %arg5[%c0_9, %c0_10] : memref<1x256xf32, #tpu.memory_space<vmem>>, vector<1x256xf32>
    %12 = vector.broadcast %11 : vector<1x256xf32> to vector<256x256xf32>
    %13 = arith.addf %10, %12 : vector<256x256xf32>
    %cst_11 = arith.constant 0.000000e+00 : f32
    %14 = vector.broadcast %cst_11 : f32 to vector<256x256xf32>
    %15 = arith.maximumf %13, %14 : vector<256x256xf32>
    %16 = arith.truncf %15 : vector<256x256xf32> to vector<256x256xbf16>
    %c0_12 = arith.constant 0 : index
    %c0_13 = arith.constant 0 : index
    %17 = vector.load %arg6[%c0_12, %c0_13] : memref<256x512xbf16, #tpu.memory_space<vmem>>, vector<256x512xbf16>
    %cst_14 = arith.constant dense<0.000000e+00> : vector<256x512xf32>
    %18 = tpu.matmul %16, %17, %cst_14 {dimension_numbers = #tpu.dot_dimension_numbers<[1], [0], [0], [1], [0, 0, 1, 1], [], []>} : vector<256x256xbf16>, vector<256x512xbf16>, vector<256x512xf32> -> vector<256x512xf32>
    %c0_15 = arith.constant 0 : index
    %c0_16 = arith.constant 0 : index
    %19 = vector.load %arg7[%c0_15, %c0_16] : memref<1x512xf32, #tpu.memory_space<vmem>>, vector<1x512xf32>
    %20 = vector.broadcast %19 : vector<1x512xf32> to vector<256x512xf32>
    %21 = arith.addf %18, %20 : vector<256x512xf32>
    %cst_17 = arith.constant 0.000000e+00 : f32
    %22 = vector.broadcast %cst_17 : f32 to vector<256x512xf32>
    %23 = arith.maximumf %21, %22 : vector<256x512xf32>
    %24 = arith.truncf %23 : vector<256x512xf32> to vector<256x512xbf16>
    %25 = vector.extract_strided_slice %24 {offsets = [0, 0], sizes = [256, 256], strides = [1, 1]} : vector<256x512xbf16> to vector<256x256xbf16>
    %c0_18 = arith.constant 0 : index
    %c0_19 = arith.constant 0 : index
    %26 = vector.load %arg8[%c0_18, %c0_19] : memref<256x256xbf16, #tpu.memory_space<vmem>>, vector<256x256xbf16>
    %cst_20 = arith.constant dense<0.000000e+00> : vector<256x256xf32>
    %27 = tpu.matmul %25, %26, %cst_20 {dimension_numbers = #tpu.dot_dimension_numbers<[1], [0], [0], [1], [0, 0, 1, 1], [], []>} : vector<256x256xbf16>, vector<256x256xbf16>, vector<256x256xf32> -> vector<256x256xf32>
    %c0_21 = arith.constant 0 : index
    %c0_22 = arith.constant 0 : index
    %28 = vector.load %arg9[%c0_21, %c0_22] : memref<1x256xf32, #tpu.memory_space<vmem>>, vector<1x256xf32>
    %29 = vector.broadcast %28 : vector<1x256xf32> to vector<256x256xf32>
    %30 = arith.addf %27, %29 : vector<256x256xf32>
    %cst_23 = arith.constant 0.000000e+00 : f32
    %31 = vector.broadcast %cst_23 : f32 to vector<256x256xf32>
    %32 = arith.maximumf %30, %31 : vector<256x256xf32>
    %33 = vector.extract_strided_slice %24 {offsets = [0, 256], sizes = [256, 256], strides = [1, 1]} : vector<256x512xbf16> to vector<256x256xbf16>
    %c0_24 = arith.constant 0 : index
    %c0_25 = arith.constant 0 : index
    %34 = vector.load %arg10[%c0_24, %c0_25] : memref<256x256xbf16, #tpu.memory_space<vmem>>, vector<256x256xbf16>
    %cst_26 = arith.constant dense<0.000000e+00> : vector<256x256xf32>
    %35 = tpu.matmul %33, %34, %cst_26 {dimension_numbers = #tpu.dot_dimension_numbers<[1], [0], [0], [1], [0, 0, 1, 1], [], []>} : vector<256x256xbf16>, vector<256x256xbf16>, vector<256x256xf32> -> vector<256x256xf32>
    %c0_27 = arith.constant 0 : index
    %c0_28 = arith.constant 0 : index
    %36 = vector.load %arg11[%c0_27, %c0_28] : memref<1x256xf32, #tpu.memory_space<vmem>>, vector<1x256xf32>
    %37 = vector.broadcast %36 : vector<1x256xf32> to vector<256x256xf32>
    %38 = arith.addf %35, %37 : vector<256x256xf32>
    %cst_29 = arith.constant 0.000000e+00 : f32
    %39 = vector.broadcast %cst_29 : f32 to vector<256x256xf32>
    %40 = arith.maximumf %38, %39 : vector<256x256xf32>
    %c0_30 = arith.constant 0 : index
    %c0_31 = arith.constant 0 : index
    %41 = vector.load %arg12[%c0_30, %c0_31] : memref<2x256xf32, #tpu.memory_space<vmem>>, vector<2x256xf32>
    %c0_32 = arith.constant 0 : index
    %c0_33 = arith.constant 0 : index
    %42 = vector.load %arg13[%c0_32, %c0_33] : memref<1x2xf32, #tpu.memory_space<vmem>>, vector<1x2xf32>
    %43 = vector.extract_strided_slice %41 {offsets = [0, 0], sizes = [1, 256], strides = [1, 1]} : vector<2x256xf32> to vector<1x256xf32>
    %44 = vector.broadcast %43 : vector<1x256xf32> to vector<256x256xf32>
    %45 = arith.mulf %32, %44 : vector<256x256xf32>
    %cst_34 = arith.constant dense<0.000000e+00> : vector<256xf32>
    %46 = vector.multi_reduction <add>, %45, %cst_34 [1] : vector<256x256xf32> to vector<256xf32>
    %47 = vector.shape_cast %46 : vector<256xf32> to vector<256x1xf32>
    %48 = vector.extract_strided_slice %42 {offsets = [0, 0], sizes = [1, 1], strides = [1, 1]} : vector<1x2xf32> to vector<1x1xf32>
    %49 = vector.broadcast %48 : vector<1x1xf32> to vector<256x1xf32>
    %50 = arith.addf %47, %49 : vector<256x1xf32>
    %c0_35 = arith.constant 0 : index
    %c0_36 = arith.constant 0 : index
    %51 = vector.load %arg14[%c0_35, %c0_36] : memref<256x2xf32, #tpu.memory_space<vmem>>, vector<256x1xf32>
    tpu.vector_store %arg14[%c0_35, %c0_36], %50 {strides = array<i32>} : memref<256x2xf32, #tpu.memory_space<vmem>>, vector<256x1xf32>,
    %52 = vector.extract_strided_slice %41 {offsets = [1, 0], sizes = [1, 256], strides = [1, 1]} : vector<2x256xf32> to vector<1x256xf32>
    %53 = vector.broadcast %52 : vector<1x256xf32> to vector<256x256xf32>
    %54 = arith.mulf %40, %53 : vector<256x256xf32>
    %cst_37 = arith.constant dense<0.000000e+00> : vector<256xf32>
    %55 = vector.multi_reduction <add>, %54, %cst_37 [1] : vector<256x256xf32> to vector<256xf32>
    %56 = vector.shape_cast %55 : vector<256xf32> to vector<256x1xf32>
    %57 = vector.extract_strided_slice %42 {offsets = [0, 1], sizes = [1, 1], strides = [1, 1]} : vector<1x2xf32> to vector<1x1xf32>
    %58 = vector.broadcast %57 : vector<1x1xf32> to vector<256x1xf32>
    %59 = arith.addf %56, %58 : vector<256x1xf32>
    %c0_38 = arith.constant 0 : index
    %c1 = arith.constant 1 : index
    %60 = vector.load %arg14[%c0_38, %c1] : memref<256x2xf32, #tpu.memory_space<vmem>>, vector<256x1xf32>
    tpu.vector_store %arg14[%c0_38, %c1], %59 {strides = array<i32>} : memref<256x2xf32, #tpu.memory_space<vmem>>, vector<256x1xf32>,
    return
  }
  func.func @transform_0(%arg0: i32) -> (i32, i32) {
    %c0_i32 = arith.constant 0 : i32
    %c0_i32_0 = arith.constant 0 : i32
    return %arg0, %c0_i32 : i32, i32
  }
  func.func @transform_1(%arg0: i32) -> (i32, i32) {
    %c0_i32 = arith.constant 0 : i32
    %c0_i32_0 = arith.constant 0 : i32
    %c0_i32_1 = arith.constant 0 : i32
    return %c0_i32, %c0_i32_0 : i32, i32
  }
  func.func @transform_2(%arg0: i32) -> (i32, i32) {
    %c0_i32 = arith.constant 0 : i32
    %c0_i32_0 = arith.constant 0 : i32
    %c0_i32_1 = arith.constant 0 : i32
    return %c0_i32, %c0_i32_0 : i32, i32
  }
  func.func @transform_3(%arg0: i32) -> (i32, i32) {
    %c0_i32 = arith.constant 0 : i32
    %c0_i32_0 = arith.constant 0 : i32
    %c0_i32_1 = arith.constant 0 : i32
    return %c0_i32, %c0_i32_0 : i32, i32
  }
  func.func @transform_4(%arg0: i32) -> (i32, i32) {
    %c0_i32 = arith.constant 0 : i32
    %c0_i32_0 = arith.constant 0 : i32
    %c0_i32_1 = arith.constant 0 : i32
    return %c0_i32, %c0_i32_0 : i32, i32
  }
  func.func @transform_5(%arg0: i32) -> (i32, i32) {
    %c0_i32 = arith.constant 0 : i32
    %c0_i32_0 = arith.constant 0 : i32
    %c0_i32_1 = arith.constant 0 : i32
    return %c0_i32, %c0_i32_0 : i32, i32
  }
  func.func @transform_6(%arg0: i32) -> (i32, i32) {
    %c0_i32 = arith.constant 0 : i32
    %c0_i32_0 = arith.constant 0 : i32
    %c0_i32_1 = arith.constant 0 : i32
    return %c0_i32, %c0_i32_0 : i32, i32
  }
  func.func @transform_7(%arg0: i32) -> (i32, i32) {
    %c0_i32 = arith.constant 0 : i32
    %c0_i32_0 = arith.constant 0 : i32
    %c0_i32_1 = arith.constant 0 : i32
    return %c0_i32, %c0_i32_0 : i32, i32
  }
  func.func @transform_8(%arg0: i32) -> (i32, i32) {
    %c0_i32 = arith.constant 0 : i32
    %c0_i32_0 = arith.constant 0 : i32
    %c0_i32_1 = arith.constant 0 : i32
    return %c0_i32, %c0_i32_0 : i32, i32
  }
  func.func @transform_9(%arg0: i32) -> (i32, i32) {
    %c0_i32 = arith.constant 0 : i32
    %c0_i32_0 = arith.constant 0 : i32
    %c0_i32_1 = arith.constant 0 : i32
    return %c0_i32, %c0_i32_0 : i32, i32
  }
  func.func @transform_10(%arg0: i32) -> (i32, i32) {
    %c0_i32 = arith.constant 0 : i32
    %c0_i32_0 = arith.constant 0 : i32
    %c0_i32_1 = arith.constant 0 : i32
    return %c0_i32, %c0_i32_0 : i32, i32
  }
  func.func @transform_11(%arg0: i32) -> (i32, i32) {
    %c0_i32 = arith.constant 0 : i32
    %c0_i32_0 = arith.constant 0 : i32
    %c0_i32_1 = arith.constant 0 : i32
    return %c0_i32, %c0_i32_0 : i32, i32
  }
  func.func @transform_12(%arg0: i32) -> (i32, i32) {
    %c0_i32 = arith.constant 0 : i32
    %c0_i32_0 = arith.constant 0 : i32
    %c0_i32_1 = arith.constant 0 : i32
    return %c0_i32, %c0_i32_0 : i32, i32
  }
  func.func @transform_13(%arg0: i32) -> (i32, i32) {
    %c0_i32 = arith.constant 0 : i32
    %c0_i32_0 = arith.constant 0 : i32
    return %arg0, %c0_i32 : i32, i32
  }
}

</mosaic_0001>

<llo_original>
// kernel: tpu_custom_call.1
$region0: #{tpu_custom_call.1}
  #allocation0 [shape = 'u32[]', space=smem, size = 0x4, offset = 0x4, fixed_abs, tag = 'smem constant byte address 0x4 - core index']
  #allocation1 [shape = 'u32[144,128]{1,0:T(1,128)}', space=vmem, size = 0x12000, scoped, tag = 'internal scratch']
  %s0 = inlined_call_operand.hbm [shape: bf16[256,128], index: 0, kind: input, shape index: {}]
  %s1 = inlined_call_operand.hbm [shape: bf16[128,256], index: 1, kind: input, shape index: {}]
  %s2 = inlined_call_operand.vmem [shape: f32[1,256], index: 2, kind: input, shape index: {}]
  %s3 = inlined_call_operand.hbm [shape: bf16[256,256], index: 3, kind: input, shape index: {}]
  %s4 = inlined_call_operand.vmem [shape: f32[1,256], index: 4, kind: input, shape index: {}]
  %s5 = inlined_call_operand.hbm [shape: bf16[256,512], index: 5, kind: input, shape index: {}]
  %s6 = inlined_call_operand.vmem [shape: f32[1,512], index: 6, kind: input, shape index: {}]
  %s7 = inlined_call_operand.hbm [shape: bf16[256,256], index: 7, kind: input, shape index: {}]
  %s8 = inlined_call_operand.vmem [shape: f32[1,256], index: 8, kind: input, shape index: {}]
  %s9 = inlined_call_operand.hbm [shape: bf16[256,256], index: 9, kind: input, shape index: {}]
  %s10 = inlined_call_operand.vmem [shape: f32[1,256], index: 10, kind: input, shape index: {}]
  %s11 = inlined_call_operand.vmem [shape: f32[2,256], index: 11, kind: input, shape index: {}]
  %s12 = inlined_call_operand.vmem [shape: f32[1,2], index: 12, kind: input, shape index: {}]
  %s13 = inlined_call_operand.vmem [shape: f32[256,2], index: 13, kind: output, shape index: {}]
  %s14 = sld [smem:[#allocation0]]
  $region86: #{tpu_custom_call.1} parent=0
    _
  %s16 = ssub.s32 1, %s14
  %s17 = scalar_select 0, %s16, %s14
  $region1: #{tpu_custom_call.1} parent=0
    #allocation2 [shape = 'u8[65536]{0}', space=vmem, size = 0x10000, scoped, tag = 'input window, operand 0, single buffered']
    #allocation3 [shape = 's32[1]{0}', space=sflag, size = 0x4, scoped, tag = 'scoped memory for tpu_custom_call.1']
    #allocation4 [shape = 'u8[65536]{0}', space=vmem, size = 0x10000, scoped, tag = 'input window, operand 1, single buffered']
    #allocation5 [shape = 's32[1]{0}', space=sflag, size = 0x4, scoped, tag = 'scoped memory for tpu_custom_call.1']
    #allocation6 [shape = 'u8[131072]{0}', space=vmem, size = 0x20000, scoped, tag = 'input window, operand 3, single buffered']
    #allocation7 [shape = 'u8[262144]{0}', space=vmem, size = 0x40000, scoped, tag = 'input window, operand 5, single buffered']
    #allocation8 [shape = 's32[1]{0}', space=sflag, size = 0x4, scoped, tag = 'scoped memory for tpu_custom_call.1']
    #allocation9 [shape = 'u8[131072]{0}', space=vmem, size = 0x20000, scoped, tag = 'input window, operand 7, single buffered']
    #allocation10 [shape = 'u8[131072]{0}', space=vmem, size = 0x20000, scoped, tag = 'input window, operand 9, single buffered']
    #allocation11 [shape = 's32[1]{0}', space=sflag, size = 0x4, scoped, tag = 'scoped memory for tpu_custom_call.1']
    %18 = vsyncpa [#allocation3], 0
    %19 = vsyncpa [#allocation5], 0
    %20 = vsyncpa [#allocation8], 0
    %21 = vsyncpa [#allocation11], 0
    // Predicated region
    $region2: #{tpu_custom_call.1} parent=1 // pred_check
      _
    $region3: #{tpu_custom_call.1} parent=1 // pred_check_branch
      %23 = sbr.rel (0) target = $region5
    $region4: #{tpu_custom_call.1} parent=1 // pred_region
      %s25 = ssub.s32 2048, 2048
      %26 = vsyncadd [#allocation3], %s25
      %s27 = sshll.u32 [#allocation2], 4
      %s28 = int_to_ptr.vmem [resolvable:$true] %s27
      %33 = dma.hbm_to_vmem [thread:$0]  %s0, 2048, %s28, [#allocation3], 64, 64, 4
    $region5: #{tpu_custom_call.1} parent=1 // pred_fallthru
      _
    // Predicated region
    $region6: #{tpu_custom_call.1} parent=1 // pred_check
      _
    $region7: #{tpu_custom_call.1} parent=1 // pred_check_branch
      %35 = sbr.rel (0) target = $region9
    $region8: #{tpu_custom_call.1} parent=1 // pred_region
      %s37 = ssub.s32 2048, 2048
      %38 = vsyncadd [#allocation5], %s37
      %s39 = sshll.u32 [#allocation4], 4
      %s40 = int_to_ptr.vmem [resolvable:$true] %s39
      %45 = dma.hbm_to_vmem [thread:$0]  %s1, 2048, %s40, [#allocation5], 128, 128, 8
    $region9: #{tpu_custom_call.1} parent=1 // pred_fallthru
      _
    // Predicated region
    $region10: #{tpu_custom_call.1} parent=1 // pred_check
      _
    $region11: #{tpu_custom_call.1} parent=1 // pred_check_branch
      %47 = sbr.rel (0) target = $region13
    $region12: #{tpu_custom_call.1} parent=1 // pred_region
      _
    $region13: #{tpu_custom_call.1} parent=1 // pred_fallthru
      _
    // Predicated region
    $region14: #{tpu_custom_call.1} parent=1 // pred_check
      _
    $region15: #{tpu_custom_call.1} parent=1 // pred_check_branch
      %49 = sbr.rel (0) target = $region17
    $region16: #{tpu_custom_call.1} parent=1 // pred_region
      %s51 = ssub.s32 4096, 4096
      %52 = vsyncadd [#allocation5], %s51
      %s53 = sshll.u32 [#allocation6], 4
      %s54 = int_to_ptr.vmem [resolvable:$true] %s53
      %59 = dma.hbm_to_vmem [thread:$0]  %s3, 4096, %s54, [#allocation5], 128, 128, 8
    $region17: #{tpu_custom_call.1} parent=1 // pred_fallthru
      _
    // Predicated region
    $region18: #{tpu_custom_call.1} parent=1 // pred_check
      _
    $region19: #{tpu_custom_call.1} parent=1 // pred_check_branch
      %61 = sbr.rel (0) target = $region21
    $region20: #{tpu_custom_call.1} parent=1 // pred_region
      _
    $region21: #{tpu_custom_call.1} parent=1 // pred_fallthru
      _
    // Predicated region
    $region22: #{tpu_custom_call.1} parent=1 // pred_check
      _
    $region23: #{tpu_custom_call.1} parent=1 // pred_check_branch
      %63 = sbr.rel (0) target = $region25
    $region24: #{tpu_custom_call.1} parent=1 // pred_region
      %s65 = ssub.s32 8192, 8192
      %66 = vsyncadd [#allocation8], %s65
      %s67 = sshll.u32 [#allocation7], 4
      %s68 = int_to_ptr.vmem [resolvable:$true] %s67
      %73 = dma.hbm_to_vmem [thread:$0]  %s5, 8192, %s68, [#allocation8], 256, 256, 16
    $region25: #{tpu_custom_call.1} parent=1 // pred_fallthru
      _
    // Predicated region
    $region26: #{tpu_custom_call.1} parent=1 // pred_check
      _
    $region27: #{tpu_custom_call.1} parent=1 // pred_check_branch
      %75 = sbr.rel (0) target = $region29
    $region28: #{tpu_custom_call.1} parent=1 // pred_region
      _
    $region29: #{tpu_custom_call.1} parent=1 // pred_fallthru
      _
    // Predicated region
    $region30: #{tpu_custom_call.1} parent=1 // pred_check
      _
    $region31: #{tpu_custom_call.1} parent=1 // pred_check_branch
      %77 = sbr.rel (0) target = $region33
    $region32: #{tpu_custom_call.1} parent=1 // pred_region
      %s79 = ssub.s32 4096, 4096
      %80 = vsyncadd [#allocation8], %s79
      %s81 = sshll.u32 [#allocation9], 4
      %s82 = int_to_ptr.vmem [resolvable:$true] %s81
      %87 = dma.hbm_to_vmem [thread:$0]  %s7, 4096, %s82, [#allocation8], 128, 128, 8
    $region33: #{tpu_custom_call.1} parent=1 // pred_fallthru
      _
    // Predicated region
    $region34: #{tpu_custom_call.1} parent=1 // pred_check
      _
    $region35: #{tpu_custom_call.1} parent=1 // pred_check_branch
      %89 = sbr.rel (0) target = $region37
    $region36: #{tpu_custom_call.1} parent=1 // pred_region
      _
    $region37: #{tpu_custom_call.1} parent=1 // pred_fallthru
      _
    // Predicated region
    $region38: #{tpu_custom_call.1} parent=1 // pred_check
      _
    $region39: #{tpu_custom_call.1} parent=1 // pred_check_branch
      %91 = sbr.rel (0) target = $region41
    $region40: #{tpu_custom_call.1} parent=1 // pred_region
      %s93 = ssub.s32 4096, 4096
      %94 = vsyncadd [#allocation11], %s93
      %s95 = sshll.u32 [#allocation10], 4
      %s96 = int_to_ptr.vmem [resolvable:$true] %s95
      %101 = dma.hbm_to_vmem [thread:$0]  %s9, 4096, %s96, [#allocation11], 128, 128, 8
    $region41: #{tpu_custom_call.1} parent=1 // pred_fallthru
      _
    // Predicated region
    $region42: #{tpu_custom_call.1} parent=1 // pred_check
      _
    $region43: #{tpu_custom_call.1} parent=1 // pred_check_branch
      %103 = sbr.rel (0) target = $region45
    $region44: #{tpu_custom_call.1} parent=1 // pred_region
      _
    $region45: #{tpu_custom_call.1} parent=1 // pred_fallthru
      _
    // Predicated region
    $region46: #{tpu_custom_call.1} parent=1 // pred_check
      _
    $region47: #{tpu_custom_call.1} parent=1 // pred_check_branch
      %105 = sbr.rel (0) target = $region49
    $region48: #{tpu_custom_call.1} parent=1 // pred_region
      _
    $region49: #{tpu_custom_call.1} parent=1 // pred_fallthru
      _
    // Predicated region
    $region50: #{tpu_custom_call.1} parent=1 // pred_check
      _
    $region51: #{tpu_custom_call.1} parent=1 // pred_check_branch
      %107 = sbr.rel (0) target = $region53
    $region52: #{tpu_custom_call.1} parent=1 // pred_region
      _
    $region53: #{tpu_custom_call.1} parent=1 // pred_fallthru
      _
    // Predicated region
    $region54: #{tpu_custom_call.1} parent=1 // pred_check
      _
    $region55: #{tpu_custom_call.1} parent=1 // pred_check_branch
      %109 = sbr.rel (0) target = $region57
    $region56: #{tpu_custom_call.1} parent=1 // pred_region
      %110 = dma.done [#allocation3], 2048
    $region57: #{tpu_custom_call.1} parent=1 // pred_fallthru
      _
    // Predicated region
    $region58: #{tpu_custom_call.1} parent=1 // pred_check
      _
    $region59: #{tpu_custom_call.1} parent=1 // pred_check_branch
      %112 = sbr.rel (0) target = $region61
    $region60: #{tpu_custom_call.1} parent=1 // pred_region
      %113 = dma.done [#allocation5], 2048
    $region61: #{tpu_custom_call.1} parent=1 // pred_fallthru
      _
    // Predicated region
    $region62: #{tpu_custom_call.1} parent=1 // pred_check
      _
    $region63: #{tpu_custom_call.1} parent=1 // pred_check_branch
      %115 = sbr.rel (0) target = $region65
    $region64: #{tpu_custom_call.1} parent=1 // pred_region
      %116 = dma.done [#allocation5], 4096
    $region65: #{tpu_custom_call.1} parent=1 // pred_fallthru
      _
    // Predicated region
    $region66: #{tpu_custom_call.1} parent=1 // pred_check
      _
    $region67: #{tpu_custom_call.1} parent=1 // pred_check_branch
      %118 = sbr.rel (0) target = $region69
    $region68: #{tpu_custom_call.1} parent=1 // pred_region
      %119 = dma.done [#allocation8], 8192
    $region69: #{tpu_custom_call.1} parent=1 // pred_fallthru
      _
    // Predicated region
    $region70: #{tpu_custom_call.1} parent=1 // pred_check
      _
    $region71: #{tpu_custom_call.1} parent=1 // pred_check_branch
      %121 = sbr.rel (0) target = $region73
    $region72: #{tpu_custom_call.1} parent=1 // pred_region
      %122 = dma.done [#allocation8], 4096
    $region73: #{tpu_custom_call.1} parent=1 // pred_fallthru
      _
    // Predicated region
    $region74: #{tpu_custom_call.1} parent=1 // pred_check
      _
    $region75: #{tpu_custom_call.1} parent=1 // pred_check_branch
      %124 = sbr.rel (0) target = $region77
    $region76: #{tpu_custom_call.1} parent=1 // pred_region
      %125 = dma.done [#allocation11], 4096
    $region77: #{tpu_custom_call.1} parent=1 // pred_fallthru
      _
    %v127 = vld [vmem:[#allocation2] sm:$0xf]
    %v128 = vld [vmem:[#allocation2 + $0x4] sm:$0xf]
    %v129 = vld [vmem:[#allocation2 + $0x8] sm:$0xf]
    %v130 = vld [vmem:[#allocation2 + $0xc] sm:$0xf]
    %v131 = vld [vmem:[#allocation2 + $0x10] sm:$0xf]
    %v132 = vld [vmem:[#allocation2 + $0x14] sm:$0xf]
    %v133 = vld [vmem:[#allocation2 + $0x18] sm:$0xf]
    %v134 = vld [vmem:[#allocation2 + $0x1c] sm:$0xf]
    %v135 = vld [vmem:[#allocation2 + $0x20] sm:$0xf]
    %v136 = vld [vmem:[#allocation2 + $0x24] sm:$0xf]
    %v137 = vld [vmem:[#allocation2 + $0x28] sm:$0xf]
    %v138 = vld [vmem:[#allocation2 + $0x2c] sm:$0xf]
    %v139 = vld [vmem:[#allocation2 + $0x30] sm:$0xf]
    %v140 = vld [vmem:[#allocation2 + $0x34] sm:$0xf]
    %v141 = vld [vmem:[#allocation2 + $0x38] sm:$0xf]
    %v142 = vld [vmem:[#allocation2 + $0x3c] sm:$0xf]
    %v143 = vld [vmem:[#allocation2 + $0x40] sm:$0xf]
    %v144 = vld [vmem:[#allocation2 + $0x44] sm:$0xf]
    %v145 = vld [vmem:[#allocation2 + $0x48] sm:$0xf]
    %v146 = vld [vmem:[#allocation2 + $0x4c] sm:$0xf]
    %v147 = vld [vmem:[#allocation2 + $0x50] sm:$0xf]
    %v148 = vld [vmem:[#allocation2 + $0x54] sm:$0xf]
    %v149 = vld [vmem:[#allocation2 + $0x58] sm:$0xf]
    %v150 = vld [vmem:[#allocation2 + $0x5c] sm:$0xf]
    %v151 = vld [vmem:[#allocation2 + $0x60] sm:$0xf]
    %v152 = vld [vmem:[#allocation2 + $0x64] sm:$0xf]
    %v153 = vld [vmem:[#allocation2 + $0x68] sm:$0xf]
    %v154 = vld [vmem:[#allocation2 + $0x6c] sm:$0xf]
    %v155 = vld [vmem:[#allocation2 + $0x70] sm:$0xf]
    %v156 = vld [vmem:[#allocation2 + $0x74] sm:$0xf]
    %v157 = vld [vmem:[#allocation2 + $0x78] sm:$0xf]
    %v158 = vld [vmem:[#allocation2 + $0x7c] sm:$0xf]
    %v159 = vld [vmem:[#allocation4] sm:$0xff]
    %v160 = vld [vmem:[#allocation4 + $0x8] sm:$0xff]
    %v161 = vld [vmem:[#allocation4 + $0x10] sm:$0xff]
    %v162 = vld [vmem:[#allocation4 + $0x18] sm:$0xff]
    %v163 = vld [vmem:[#allocation4 + $0x20] sm:$0xff]
    %v164 = vld [vmem:[#allocation4 + $0x28] sm:$0xff]
    %v165 = vld [vmem:[#allocation4 + $0x30] sm:$0xff]
    %v166 = vld [vmem:[#allocation4 + $0x38] sm:$0xff]
    %v167 = vld [vmem:[#allocation4 + $0x40] sm:$0xff]
    %v168 = vld [vmem:[#allocation4 + $0x48] sm:$0xff]
    %v169 = vld [vmem:[#allocation4 + $0x50] sm:$0xff]
    %v170 = vld [vmem:[#allocation4 + $0x58] sm:$0xff]
    %v171 = vld [vmem:[#allocation4 + $0x60] sm:$0xff]
    %v172 = vld [vmem:[#allocation4 + $0x68] sm:$0xff]
    %v173 = vld [vmem:[#allocation4 + $0x70] sm:$0xff]
    %v174 = vld [vmem:[#allocation4 + $0x78] sm:$0xff]
    %v175 = vld [vmem:[%s2] sm:$0x3]
    %v177 = vlaneseq
    %v178 = vshrl.u32 %v177, 7
    %v179 = vsub.s32 0, %v178
    %v180 = vrot.slane %v175, %v179
    %v181 = vlaneseq
    %v182 = vshrl.u32 %v181, 7
    %v183 = vsub.s32 1, %v182
    %v184 = vrot.slane %v175, %v183
    %v219 = vunpack.c.l.b16 %v127
    %v220 = vunpack.c.l.b16 %v128
    %v221 = vunpack.c.l.b16 %v129
    %v222 = vunpack.c.l.b16 %v130
    %v223 = vunpack.c.l.b16 %v131
    %v224 = vunpack.c.l.b16 %v132
    %v225 = vunpack.c.l.b16 %v133
    %v226 = vunpack.c.l.b16 %v134
    %v227 = vunpack.c.l.b16 %v135
    %v228 = vunpack.c.l.b16 %v136
    %v229 = vunpack.c.l.b16 %v137
    %v230 = vunpack.c.l.b16 %v138
    %v231 = vunpack.c.l.b16 %v139
    %v232 = vunpack.c.l.b16 %v140
    %v233 = vunpack.c.l.b16 %v141
    %v234 = vunpack.c.l.b16 %v142
    %v235 = vunpack.c.l.b16 %v143
    %v236 = vunpack.c.l.b16 %v144
    %v237 = vunpack.c.l.b16 %v145
    %v238 = vunpack.c.l.b16 %v146
    %v239 = vunpack.c.l.b16 %v147
    %v240 = vunpack.c.l.b16 %v148
    %v241 = vunpack.c.l.b16 %v149
    %v242 = vunpack.c.l.b16 %v150
    %v243 = vunpack.c.l.b16 %v151
    %v244 = vunpack.c.l.b16 %v152
    %v245 = vunpack.c.l.b16 %v153
    %v246 = vunpack.c.l.b16 %v154
    %v247 = vunpack.c.l.b16 %v155
    %v248 = vunpack.c.l.b16 %v156
    %v249 = vunpack.c.l.b16 %v157
    %v250 = vunpack.c.l.b16 %v158
    %v251 = vpack.c.b16 %v220, %v219
    %v252 = vpack.c.b16 %v222, %v221
    %v253 = vpack.c.b16 %v224, %v223
    %v254 = vpack.c.b16 %v226, %v225
    %v255 = vpack.c.b16 %v228, %v227
    %v256 = vpack.c.b16 %v230, %v229
    %v257 = vpack.c.b16 %v232, %v231
    %v258 = vpack.c.b16 %v234, %v233
    %v259 = vpack.c.b16 %v236, %v235
    %v260 = vpack.c.b16 %v238, %v237
    %v261 = vpack.c.b16 %v240, %v239
    %v262 = vpack.c.b16 %v242, %v241
    %v263 = vpack.c.b16 %v244, %v243
    %v264 = vpack.c.b16 %v246, %v245
    %v265 = vpack.c.b16 %v248, %v247
    %v266 = vpack.c.b16 %v250, %v249
    %v299 = vunpack.c.l.b16 %v159
    %v300 = vunpack.c.h.b16 %v159
    %v301 = vunpack.c.l.b16 %v160
    %v302 = vunpack.c.h.b16 %v160
    %v303 = vunpack.c.l.b16 %v161
    %v304 = vunpack.c.h.b16 %v161
    %v305 = vunpack.c.l.b16 %v162
    %v306 = vunpack.c.h.b16 %v162
    %v307 = vunpack.c.l.b16 %v163
    %v308 = vunpack.c.h.b16 %v163
    %v309 = vunpack.c.l.b16 %v164
    %v310 = vunpack.c.h.b16 %v164
    %v311 = vunpack.c.l.b16 %v165
    %v312 = vunpack.c.h.b16 %v165
    %v313 = vunpack.c.l.b16 %v166
    %v314 = vunpack.c.h.b16 %v166
    %v315 = vunpack.c.l.b16 %v167
    %v316 = vunpack.c.h.b16 %v167
    %v317 = vunpack.c.l.b16 %v168
    %v318 = vunpack.c.h.b16 %v168
    %v319 = vunpack.c.l.b16 %v169
    %v320 = vunpack.c.h.b16 %v169
    %v321 = vunpack.c.l.b16 %v170
    %v322 = vunpack.c.h.b16 %v170
    %v323 = vunpack.c.l.b16 %v171
    %v324 = vunpack.c.h.b16 %v171
    %v325 = vunpack.c.l.b16 %v172
    %v326 = vunpack.c.h.b16 %v172
    %v327 = vunpack.c.l.b16 %v173
    %v328 = vunpack.c.h.b16 %v173
    %v329 = vunpack.c.l.b16 %v174
    %v330 = vunpack.c.h.b16 %v174
    %v331 = vpack.c.b16 %v301, %v299
    %v332 = vpack.c.b16 %v302, %v300
    %v333 = vpack.c.b16 %v305, %v303
    %v334 = vpack.c.b16 %v306, %v304
    %v335 = vpack.c.b16 %v309, %v307
    %v336 = vpack.c.b16 %v310, %v308
    %v337 = vpack.c.b16 %v313, %v311
    %v338 = vpack.c.b16 %v314, %v312
    %v339 = vpack.c.b16 %v317, %v315
    %v340 = vpack.c.b16 %v318, %v316
    %v341 = vpack.c.b16 %v321, %v319
    %v342 = vpack.c.b16 %v322, %v320
    %v343 = vpack.c.b16 %v325, %v323
    %v344 = vpack.c.b16 %v326, %v324
    %v345 = vpack.c.b16 %v329, %v327
    %v346 = vpack.c.b16 %v330, %v328
    %363 = vmatprep.subr.bf16.mxu0 %v332
    %364 = vmatpush1.bf16.msra.mxu0 %v331
    %365 = vmatprep.subr.bf16.mxu0 %v334
    %366 = vmatpush1.bf16.msra.mxu0 %v333
    %367 = vmatprep.subr.bf16.mxu0 %v336
    %368 = vmatpush1.bf16.msra.mxu0 %v335
    %369 = vmatprep.subr.bf16.mxu0 %v338
    %370 = vmatpush1.bf16.msra.mxu0 %v337
    %371 = vmatprep.subr.bf16.mxu0 %v340
    %372 = vmatpush1.bf16.msra.mxu0 %v339
    %373 = vmatprep.subr.bf16.mxu0 %v342
    %374 = vmatpush1.bf16.msra.mxu0 %v341
    %375 = vmatprep.subr.bf16.mxu0 %v344
    %376 = vmatpush1.bf16.msra.mxu0 %v343
    %377 = vmatprep.subr.bf16.mxu0 %v346
    %378 = vmatpush1.bf16.msra.mxu0 %v345
    %379 = vmatprep.subr.bf16.mxu0 0
    %380 = vmatpush1.bf16.msra.mxu0 0
    %381 = vmatprep.subr.bf16.mxu0 0
    %382 = vmatpush1.bf16.msra.mxu0 0
    %383 = vmatprep.subr.bf16.mxu0 0
    %384 = vmatpush1.bf16.msra.mxu0 0
    %385 = vmatprep.subr.bf16.mxu0 0
    %386 = vmatpush1.bf16.msra.mxu0 0
    %387 = vmatprep.subr.bf16.mxu0 0
    %388 = vmatpush1.bf16.msra.mxu0 0
    %389 = vmatprep.subr.bf16.mxu0 0
    %390 = vmatpush1.bf16.msra.mxu0 0
    %391 = vmatprep.subr.bf16.mxu0 0
    %392 = vmatpush1.bf16.msra.mxu0 0
    %393 = vmatprep.subr.bf16.mxu0 0
    %394 = vmatpush1.bf16.msra.mxu0 0
    %395 = vmatprep.mubr.bf16.mxu0 0
    %396 = vmatmul.mubr.bf16.gmra.mrb[0].mxu0 %v251
    %v397 = vpop.f32.mrb[0].mxu0
    %v398 = vadd.f32 %v180, %v397
    %v399 = vpop.f32.mrb[0].mxu0
    %v400 = vadd.f32 %v184, %v399
    %v401 = vpop.f32.mrb[0].mxu0
    %v402 = vadd.f32 %v180, %v401
    %v403 = vpop.f32.mrb[0].mxu0
    %v404 = vadd.f32 %v184, %v403
    %405 = vmatprep.mubr.bf16.mxu0 0
    %406 = vmatmul.mubr.bf16.gmra.mrb[0].mxu0 %v252
    %v407 = vpop.f32.mrb[0].mxu0
    %v408 = vadd.f32 %v180, %v407
    %v409 = vpop.f32.mrb[0].mxu0
    %v410 = vadd.f32 %v184, %v409
    %v411 = vpop.f32.mrb[0].mxu0
    %v412 = vadd.f32 %v180, %v411
    %v413 = vpop.f32.mrb[0].mxu0
    %v414 = vadd.f32 %v184, %v413
    %415 = vmatprep.mubr.bf16.mxu0 0
    %416 = vmatmul.mubr.bf16.gmra.mrb[0].mxu0 %v253
    %v417 = vpop.f32.mrb[0].mxu0
    %v418 = vadd.f32 %v180, %v417
    %v419 = vpop.f32.mrb[0].mxu0
    %v420 = vadd.f32 %v184, %v419
    %v421 = vpop.f32.mrb[0].mxu0
    %v422 = vadd.f32 %v180, %v421
    %v423 = vpop.f32.mrb[0].mxu0
    %v424 = vadd.f32 %v184, %v423
    %425 = vmatprep.mubr.bf16.mxu0 0
    %426 = vmatmul.mubr.bf16.gmra.mrb[0].mxu0 %v254
    %v427 = vpop.f32.mrb[0].mxu0
    %v428 = vadd.f32 %v180, %v427
    %v429 = vpop.f32.mrb[0].mxu0
    %v430 = vadd.f32 %v184, %v429
    %v431 = vpop.f32.mrb[0].mxu0
    %v432 = vadd.f32 %v180, %v431
    %v433 = vpop.f32.mrb[0].mxu0
    %v434 = vadd.f32 %v184, %v433
    %435 = vmatprep.mubr.bf16.mxu0 0
    %436 = vmatmul.mubr.bf16.gmra.mrb[0].mxu0 %v255
    %v437 = vpop.f32.mrb[0].mxu0
    %v438 = vadd.f32 %v180, %v437
    %v439 = vpop.f32.mrb[0].mxu0
    %v440 = vadd.f32 %v184, %v439
    %v441 = vpop.f32.mrb[0].mxu0
    %v442 = vadd.f32 %v180, %v441
    %v443 = vpop.f32.mrb[0].mxu0
    %v444 = vadd.f32 %v184, %v443
    %445 = vmatprep.mubr.bf16.mxu0 0
    %446 = vmatmul.mubr.bf16.gmra.mrb[0].mxu0 %v256
    %v447 = vpop.f32.mrb[0].mxu0
    %v448 = vadd.f32 %v180, %v447
    %v449 = vpop.f32.mrb[0].mxu0
    %v450 = vadd.f32 %v184, %v449
    %v451 = vpop.f32.mrb[0].mxu0
    %v452 = vadd.f32 %v180, %v451
    %v453 = vpop.f32.mrb[0].mxu0
    %v454 = vadd.f32 %v184, %v453
    %455 = vmatprep.mubr.bf16.mxu0 0
    %456 = vmatmul.mubr.bf16.gmra.mrb[0].mxu0 %v257
    %v457 = vpop.f32.mrb[0].mxu0
    %v458 = vadd.f32 %v180, %v457
    %v459 = vpop.f32.mrb[0].mxu0
    %v460 = vadd.f32 %v184, %v459
    %v461 = vpop.f32.mrb[0].mxu0
    %v462 = vadd.f32 %v180, %v461
    %v463 = vpop.f32.mrb[0].mxu0
    %v464 = vadd.f32 %v184, %v463
    %465 = vmatprep.mubr.bf16.mxu0 0
    %466 = vmatmul.mubr.bf16.gmra.mrb[0].mxu0 %v258
    %v467 = vpop.f32.mrb[0].mxu0
    %v468 = vadd.f32 %v180, %v467
    %v469 = vpop.f32.mrb[0].mxu0
    %v470 = vadd.f32 %v184, %v469
    %v471 = vpop.f32.mrb[0].mxu0
    %v472 = vadd.f32 %v180, %v471
    %v473 = vpop.f32.mrb[0].mxu0
    %v474 = vadd.f32 %v184, %v473
    %475 = vmatprep.mubr.bf16.mxu0 0
    %476 = vmatmul.mubr.bf16.gmra.mrb[0].mxu0 %v259
    %v477 = vpop.f32.mrb[0].mxu0
    %v478 = vadd.f32 %v180, %v477
    %v479 = vpop.f32.mrb[0].mxu0
    %v480 = vadd.f32 %v184, %v479
    %v481 = vpop.f32.mrb[0].mxu0
    %v482 = vadd.f32 %v180, %v481
    %v483 = vpop.f32.mrb[0].mxu0
    %v484 = vadd.f32 %v184, %v483
    %485 = vmatprep.mubr.bf16.mxu0 0
    %486 = vmatmul.mubr.bf16.gmra.mrb[0].mxu0 %v260
    %v487 = vpop.f32.mrb[0].mxu0
    %v488 = vadd.f32 %v180, %v487
    %v489 = vpop.f32.mrb[0].mxu0
    %v490 = vadd.f32 %v184, %v489
    %v491 = vpop.f32.mrb[0].mxu0
    %v492 = vadd.f32 %v180, %v491
    %v493 = vpop.f32.mrb[0].mxu0
    %v494 = vadd.f32 %v184, %v493
    %495 = vmatprep.mubr.bf16.mxu0 0
    %496 = vmatmul.mubr.bf16.gmra.mrb[0].mxu0 %v261
    %v497 = vpop.f32.mrb[0].mxu0
    %v498 = vadd.f32 %v180, %v497
    %v499 = vpop.f32.mrb[0].mxu0
    %v500 = vadd.f32 %v184, %v499
    %v501 = vpop.f32.mrb[0].mxu0
    %v502 = vadd.f32 %v180, %v501
    %v503 = vpop.f32.mrb[0].mxu0
    %v504 = vadd.f32 %v184, %v503
    %505 = vmatprep.mubr.bf16.mxu0 0
    %506 = vmatmul.mubr.bf16.gmra.mrb[0].mxu0 %v262
    %v507 = vpop.f32.mrb[0].mxu0
    %v508 = vadd.f32 %v180, %v507
    %v509 = vpop.f32.mrb[0].mxu0
    %v510 = vadd.f32 %v184, %v509
    %v511 = vpop.f32.mrb[0].mxu0
    %v512 = vadd.f32 %v180, %v511
    %v513 = vpop.f32.mrb[0].mxu0
    %v514 = vadd.f32 %v184, %v513
    %515 = vmatprep.mubr.bf16.mxu0 0
    %516 = vmatmul.mubr.bf16.gmra.mrb[0].mxu0 %v263
    %v517 = vpop.f32.mrb[0].mxu0
    %v518 = vadd.f32 %v180, %v517
    %v519 = vpop.f32.mrb[0].mxu0
    %v520 = vadd.f32 %v184, %v519
    %v521 = vpop.f32.mrb[0].mxu0
    %v522 = vadd.f32 %v180, %v521
    %v523 = vpop.f32.mrb[0].mxu0
    %v524 = vadd.f32 %v184, %v523
    %525 = vmatprep.mubr.bf16.mxu0 0
    %526 = vmatmul.mubr.bf16.gmra.mrb[0].mxu0 %v264
    %v527 = vpop.f32.mrb[0].mxu0
    %v528 = vadd.f32 %v180, %v527
    %v529 = vpop.f32.mrb[0].mxu0
    %v530 = vadd.f32 %v184, %v529
    %v531 = vpop.f32.mrb[0].mxu0
    %v532 = vadd.f32 %v180, %v531
    %v533 = vpop.f32.mrb[0].mxu0
    %v534 = vadd.f32 %v184, %v533
    %535 = vmatprep.mubr.bf16.mxu0 0
    %536 = vmatmul.mubr.bf16.gmra.mrb[0].mxu0 %v265
    %v537 = vpop.f32.mrb[0].mxu0
    %v538 = vadd.f32 %v180, %v537
    %v539 = vpop.f32.mrb[0].mxu0
    %v540 = vadd.f32 %v184, %v539
    %v541 = vpop.f32.mrb[0].mxu0
    %v542 = vadd.f32 %v180, %v541
    %v543 = vpop.f32.mrb[0].mxu0
    %v544 = vadd.f32 %v184, %v543
    %545 = vmatprep.mubr.bf16.mxu0 0
    %546 = vmatmul.mubr.bf16.gmra.mrb[0].mxu0 %v266
    %v547 = vpop.f32.mrb[0].mxu0
    %v548 = vadd.f32 %v180, %v547
    %v549 = vpop.f32.mrb[0].mxu0
    %v550 = vadd.f32 %v184, %v549
    %v551 = vpop.f32.mrb[0].mxu0
    %v552 = vadd.f32 %v180, %v551
    %v553 = vpop.f32.mrb[0].mxu0
    %v554 = vadd.f32 %v184, %v553
    %555 = vdwg.mxu0
    %v556 = vmax.f32 %v398, 0.0
    %v557 = vmax.f32 %v400, 0.0
    %v558 = vmax.f32 %v402, 0.0
    %v559 = vmax.f32 %v404, 0.0
    %v560 = vmax.f32 %v408, 0.0
    %v561 = vmax.f32 %v410, 0.0
    %v562 = vmax.f32 %v412, 0.0
    %v563 = vmax.f32 %v414, 0.0
    %v564 = vmax.f32 %v418, 0.0
    %v565 = vmax.f32 %v420, 0.0
    %v566 = vmax.f32 %v422, 0.0
    %v567 = vmax.f32 %v424, 0.0
    %v568 = vmax.f32 %v428, 0.0
    %v569 = vmax.f32 %v430, 0.0
    %v570 = vmax.f32 %v432, 0.0
    %v571 = vmax.f32 %v434, 0.0
    %v572 = vmax.f32 %v438, 0.0
    %v573 = vmax.f32 %v440, 0.0
    %v574 = vmax.f32 %v442, 0.0
    %v575 = vmax.f32 %v444, 0.0
    %v576 = vmax.f32 %v448, 0.0
    %v577 = vmax.f32 %v450, 0.0
    %v578 = vmax.f32 %v452, 0.0
    %v579 = vmax.f32 %v454, 0.0
    %v580 = vmax.f32 %v458, 0.0
    %v581 = vmax.f32 %v460, 0.0
    %v582 = vmax.f32 %v462, 0.0
    %v583 = vmax.f32 %v464, 0.0
    %v584 = vmax.f32 %v468, 0.0
    %v585 = vmax.f32 %v470, 0.0
    %v586 = vmax.f32 %v472, 0.0
    %v587 = vmax.f32 %v474, 0.0
    %v588 = vmax.f32 %v478, 0.0
    %v589 = vmax.f32 %v480, 0.0
    %v590 = vmax.f32 %v482, 0.0
    %v591 = vmax.f32 %v484, 0.0
    %v592 = vmax.f32 %v488, 0.0
    %v593 = vmax.f32 %v490, 0.0
    %v594 = vmax.f32 %v492, 0.0
    %v595 = vmax.f32 %v494, 0.0
    %v596 = vmax.f32 %v498, 0.0
    %v597 = vmax.f32 %v500, 0.0
    %v598 = vmax.f32 %v502, 0.0
    %v599 = vmax.f32 %v504, 0.0
    %v600 = vmax.f32 %v508, 0.0
    %v601 = vmax.f32 %v510, 0.0
    %v602 = vmax.f32 %v512, 0.0
    %v603 = vmax.f32 %v514, 0.0
    %v604 = vmax.f32 %v518, 0.0
    %v605 = vmax.f32 %v520, 0.0
    %v606 = vmax.f32 %v522, 0.0
    %v607 = vmax.f32 %v524, 0.0
    %v608 = vmax.f32 %v528, 0.0
    %v609 = vmax.f32 %v530, 0.0
    %v610 = vmax.f32 %v532, 0.0
    %v611 = vmax.f32 %v534, 0.0
    %v612 = vmax.f32 %v538, 0.0
    %v613 = vmax.f32 %v540, 0.0
    %v614 = vmax.f32 %v542, 0.0
    %v615 = vmax.f32 %v544, 0.0
    %v616 = vmax.f32 %v548, 0.0
    %v617 = vmax.f32 %v550, 0.0
    %v618 = vmax.f32 %v552, 0.0
    %v619 = vmax.f32 %v554, 0.0
    %v620 = vpack.c.bf16 %v558, %v556
    %v621 = vpack.c.bf16 %v559, %v557
    %v622 = vpack.c.bf16 %v562, %v560
    %v623 = vpack.c.bf16 %v563, %v561
    %v624 = vpack.c.bf16 %v566, %v564
    %v625 = vpack.c.bf16 %v567, %v565
    %v626 = vpack.c.bf16 %v570, %v568
    %v627 = vpack.c.bf16 %v571, %v569
    %v628 = vpack.c.bf16 %v574, %v572
    %v629 = vpack.c.bf16 %v575, %v573
    %v630 = vpack.c.bf16 %v578, %v576
    %v631 = vpack.c.bf16 %v579, %v577
    %v632 = vpack.c.bf16 %v582, %v580
    %v633 = vpack.c.bf16 %v583, %v581
    %v634 = vpack.c.bf16 %v586, %v584
    %v635 = vpack.c.bf16 %v587, %v585
    %v636 = vpack.c.bf16 %v590, %v588
    %v637 = vpack.c.bf16 %v591, %v589
    %v638 = vpack.c.bf16 %v594, %v592
    %v639 = vpack.c.bf16 %v595, %v593
    %v640 = vpack.c.bf16 %v598, %v596
    %v641 = vpack.c.bf16 %v599, %v597
    %v642 = vpack.c.bf16 %v602, %v600
    %v643 = vpack.c.bf16 %v603, %v601
    %v644 = vpack.c.bf16 %v606, %v604
    %v645 = vpack.c.bf16 %v607, %v605
    %v646 = vpack.c.bf16 %v610, %v608
    %v647 = vpack.c.bf16 %v611, %v609
    %v648 = vpack.c.bf16 %v614, %v612
    %v649 = vpack.c.bf16 %v615, %v613
    %v650 = vpack.c.bf16 %v618, %v616
    %v651 = vpack.c.bf16 %v619, %v617
    %v652 = vld [vmem:[#allocation6] sm:$0xff]
    %v653 = vld [vmem:[#allocation6 + $0x8] sm:$0xff]
    %v654 = vld [vmem:[#allocation6 + $0x10] sm:$0xff]
    %v655 = vld [vmem:[#allocation6 + $0x18] sm:$0xff]
    %v656 = vld [vmem:[#allocation6 + $0x20] sm:$0xff]
    %v657 = vld [vmem:[#allocation6 + $0x28] sm:$0xff]
    %v658 = vld [vmem:[#allocation6 + $0x30] sm:$0xff]
    %v659 = vld [vmem:[#allocation6 + $0x38] sm:$0xff]
    %v660 = vld [vmem:[#allocation6 + $0x40] sm:$0xff]
    %v661 = vld [vmem:[#allocation6 + $0x48] sm:$0xff]
    %v662 = vld [vmem:[#allocation6 + $0x50] sm:$0xff]
    %v663 = vld [vmem:[#allocation6 + $0x58] sm:$0xff]
    %v664 = vld [vmem:[#allocation6 + $0x60] sm:$0xff]
    %v665 = vld [vmem:[#allocation6 + $0x68] sm:$0xff]
    %v666 = vld [vmem:[#allocation6 + $0x70] sm:$0xff]
    %v667 = vld [vmem:[#allocation6 + $0x78] sm:$0xff]
    %v668 = vld [vmem:[#allocation6 + $0x80] sm:$0xff]
    %v669 = vld [vmem:[#allocation6 + $0x88] sm:$0xff]
    %v670 = vld [vmem:[#allocation6 + $0x90] sm:$0xff]
    %v671 = vld [vmem:[#allocation6 + $0x98] sm:$0xff]
    %v672 = vld [vmem:[#allocation6 + $0xa0] sm:$0xff]
    %v673 = vld [vmem:[#allocation6 + $0xa8] sm:$0xff]
    %v674 = vld [vmem:[#allocation6 + $0xb0] sm:$0xff]
    %v675 = vld [vmem:[#allocation6 + $0xb8] sm:$0xff]
    %v676 = vld [vmem:[#allocation6 + $0xc0] sm:$0xff]
    %v677 = vld [vmem:[#allocation6 + $0xc8] sm:$0xff]
    %v678 = vld [vmem:[#allocation6 + $0xd0] sm:$0xff]
    %v679 = vld [vmem:[#allocation6 + $0xd8] sm:$0xff]
    %v680 = vld [vmem:[#allocation6 + $0xe0] sm:$0xff]
    %v681 = vld [vmem:[#allocation6 + $0xe8] sm:$0xff]
    %v682 = vld [vmem:[#allocation6 + $0xf0] sm:$0xff]
    %v683 = vld [vmem:[#allocation6 + $0xf8] sm:$0xff]
    %v684 = vld [vmem:[%s4] sm:$0x3]
    %v686 = vlaneseq
    %v687 = vshrl.u32 %v686, 7
    %v688 = vsub.s32 0, %v687
    %v689 = vrot.slane %v684, %v688
    %v690 = vlaneseq
    %v691 = vshrl.u32 %v690, 7
    %v692 = vsub.s32 1, %v691
    %v693 = vrot.slane %v684, %v692
    %v728 = vunpack.c.l.b16 %v652
    %v729 = vunpack.c.h.b16 %v652
    %v730 = vunpack.c.l.b16 %v653
    %v731 = vunpack.c.h.b16 %v653
    %v732 = vunpack.c.l.b16 %v654
    %v733 = vunpack.c.h.b16 %v654
    %v734 = vunpack.c.l.b16 %v655
    %v735 = vunpack.c.h.b16 %v655
    %v736 = vunpack.c.l.b16 %v656
    %v737 = vunpack.c.h.b16 %v656
    %v738 = vunpack.c.l.b16 %v657
    %v739 = vunpack.c.h.b16 %v657
    %v740 = vunpack.c.l.b16 %v658
    %v741 = vunpack.c.h.b16 %v658
    %v742 = vunpack.c.l.b16 %v659
    %v743 = vunpack.c.h.b16 %v659
    %v744 = vunpack.c.l.b16 %v660
    %v745 = vunpack.c.h.b16 %v660
    %v746 = vunpack.c.l.b16 %v661
    %v747 = vunpack.c.h.b16 %v661
    %v748 = vunpack.c.l.b16 %v662
    %v749 = vunpack.c.h.b16 %v662
    %v750 = vunpack.c.l.b16 %v663
    %v751 = vunpack.c.h.b16 %v663
    %v752 = vunpack.c.l.b16 %v664
    %v753 = vunpack.c.h.b16 %v664
    %v754 = vunpack.c.l.b16 %v665
    %v755 = vunpack.c.h.b16 %v665
    %v756 = vunpack.c.l.b16 %v666
    %v757 = vunpack.c.h.b16 %v666
    %v758 = vunpack.c.l.b16 %v667
    %v759 = vunpack.c.h.b16 %v667
    %v760 = vunpack.c.l.b16 %v668
    %v761 = vunpack.c.h.b16 %v668
    %v762 = vunpack.c.l.b16 %v669
    %v763 = vunpack.c.h.b16 %v669
    %v764 = vunpack.c.l.b16 %v670
    %v765 = vunpack.c.h.b16 %v670
    %v766 = vunpack.c.l.b16 %v671
    %v767 = vunpack.c.h.b16 %v671
    %v768 = vunpack.c.l.b16 %v672
    %v769 = vunpack.c.h.b16 %v672
    %v770 = vunpack.c.l.b16 %v673
    %v771 = vunpack.c.h.b16 %v673
    %v772 = vunpack.c.l.b16 %v674
    %v773 = vunpack.c.h.b16 %v674
    %v774 = vunpack.c.l.b16 %v675
    %v775 = vunpack.c.h.b16 %v675
    %v776 = vunpack.c.l.b16 %v676
    %v777 = vunpack.c.h.b16 %v676
    %v778 = vunpack.c.l.b16 %v677
    %v779 = vunpack.c.h.b16 %v677
    %v780 = vunpack.c.l.b16 %v678
    %v781 = vunpack.c.h.b16 %v678
    %v782 = vunpack.c.l.b16 %v679
    %v783 = vunpack.c.h.b16 %v679
    %v784 = vunpack.c.l.b16 %v680
    %v785 = vunpack.c.h.b16 %v680
    %v786 = vunpack.c.l.b16 %v681
    %v787 = vunpack.c.h.b16 %v681
    %v788 = vunpack.c.l.b16 %v682
    %v789 = vunpack.c.h.b16 %v682
    %v790 = vunpack.c.l.b16 %v683
    %v791 = vunpack.c.h.b16 %v683
    %v792 = vpack.c.b16 %v730, %v728
    %v793 = vpack.c.b16 %v731, %v729
    %v794 = vpack.c.b16 %v734, %v732
    %v795 = vpack.c.b16 %v735, %v733
    %v796 = vpack.c.b16 %v738, %v736
    %v797 = vpack.c.b16 %v739, %v737
    %v798 = vpack.c.b16 %v742, %v740
    %v799 = vpack.c.b16 %v743, %v741
    %v800 = vpack.c.b16 %v746, %v744
    %v801 = vpack.c.b16 %v747, %v745
    %v802 = vpack.c.b16 %v750, %v748
    %v803 = vpack.c.b16 %v751, %v749
    %v804 = vpack.c.b16 %v754, %v752
    %v805 = vpack.c.b16 %v755, %v753
    %v806 = vpack.c.b16 %v758, %v756
    %v807 = vpack.c.b16 %v759, %v757
    %v808 = vpack.c.b16 %v762, %v760
    %v809 = vpack.c.b16 %v763, %v761
    %v810 = vpack.c.b16 %v766, %v764
    %v811 = vpack.c.b16 %v767, %v765
    %v812 = vpack.c.b16 %v770, %v768
    %v813 = vpack.c.b16 %v771, %v769
    %v814 = vpack.c.b16 %v774, %v772
    %v815 = vpack.c.b16 %v775, %v773
    %v816 = vpack.c.b16 %v778, %v776
    %v817 = vpack.c.b16 %v779, %v777
    %v818 = vpack.c.b16 %v782, %v780
    %v819 = vpack.c.b16 %v783, %v781
    %v820 = vpack.c.b16 %v786, %v784
    %v821 = vpack.c.b16 %v787, %v785
    %v822 = vpack.c.b16 %v790, %v788
    %v823 = vpack.c.b16 %v791, %v789
    %856 = vmatprep.subr.bf16.mxu0 %v793
    %857 = vmatpush1.bf16.msra.mxu0 %v792
    %858 = vmatprep.subr.bf16.mxu0 %v795
    %859 = vmatpush1.bf16.msra.mxu0 %v794
    %860 = vmatprep.subr.bf16.mxu0 %v797
    %861 = vmatpush1.bf16.msra.mxu0 %v796
    %862 = vmatprep.subr.bf16.mxu0 %v799
    %863 = vmatpush1.bf16.msra.mxu0 %v798
    %864 = vmatprep.subr.bf16.mxu0 %v801
    %865 = vmatpush1.bf16.msra.mxu0 %v800
    %866 = vmatprep.subr.bf16.mxu0 %v803
    %867 = vmatpush1.bf16.msra.mxu0 %v802
    %868 = vmatprep.subr.bf16.mxu0 %v805
    %869 = vmatpush1.bf16.msra.mxu0 %v804
    %870 = vmatprep.subr.bf16.mxu0 %v807
    %871 = vmatpush1.bf16.msra.mxu0 %v806
    %872 = vmatprep.subr.bf16.mxu0 %v809
    %873 = vmatpush1.bf16.msra.mxu0 %v808
    %874 = vmatprep.subr.bf16.mxu0 %v811
    %875 = vmatpush1.bf16.msra.mxu0 %v810
    %876 = vmatprep.subr.bf16.mxu0 %v813
    %877 = vmatpush1.bf16.msra.mxu0 %v812
    %878 = vmatprep.subr.bf16.mxu0 %v815
    %879 = vmatpush1.bf16.msra.mxu0 %v814
    %880 = vmatprep.subr.bf16.mxu0 %v817
    %881 = vmatpush1.bf16.msra.mxu0 %v816
    %882 = vmatprep.subr.bf16.mxu0 %v819
    %883 = vmatpush1.bf16.msra.mxu0 %v818
    %884 = vmatprep.subr.bf16.mxu0 %v821
    %885 = vmatpush1.bf16.msra.mxu0 %v820
    %886 = vmatprep.subr.bf16.mxu0 %v823
    %887 = vmatpush1.bf16.msra.mxu0 %v822
    %888 = vmatprep.mubr.bf16.mxu0 %v621
    %889 = vmatmul.mubr.bf16.gmra.mrb[0].mxu0 %v620
    %v890 = vpop.f32.mrb[0].mxu0
    %v891 = vadd.f32 %v689, %v890
    %v892 = vpop.f32.mrb[0].mxu0
    %v893 = vadd.f32 %v693, %v892
    %v894 = vpop.f32.mrb[0].mxu0
    %v895 = vadd.f32 %v689, %v894
    %v896 = vpop.f32.mrb[0].mxu0
    %v897 = vadd.f32 %v693, %v896
    %898 = vmatprep.mubr.bf16.mxu0 %v623
    %899 = vmatmul.mubr.bf16.gmra.mrb[0].mxu0 %v622
    %v900 = vpop.f32.mrb[0].mxu0
    %v901 = vadd.f32 %v689, %v900
    %v902 = vpop.f32.mrb[0].mxu0
    %v903 = vadd.f32 %v693, %v902
    %v904 = vpop.f32.mrb[0].mxu0
    %v905 = vadd.f32 %v689, %v904
    %v906 = vpop.f32.mrb[0].mxu0
    %v907 = vadd.f32 %v693, %v906
    %908 = vmatprep.mubr.bf16.mxu0 %v625
    %909 = vmatmul.mubr.bf16.gmra.mrb[0].mxu0 %v624
    %v910 = vpop.f32.mrb[0].mxu0
    %v911 = vadd.f32 %v689, %v910
    %v912 = vpop.f32.mrb[0].mxu0
    %v913 = vadd.f32 %v693, %v912
    %v914 = vpop.f32.mrb[0].mxu0
    %v915 = vadd.f32 %v689, %v914
    %v916 = vpop.f32.mrb[0].mxu0
    %v917 = vadd.f32 %v693, %v916
    %918 = vmatprep.mubr.bf16.mxu0 %v627
    %919 = vmatmul.mubr.bf16.gmra.mrb[0].mxu0 %v626
    %v920 = vpop.f32.mrb[0].mxu0
    %v921 = vadd.f32 %v689, %v920
    %v922 = vpop.f32.mrb[0].mxu0
    %v923 = vadd.f32 %v693, %v922
    %v924 = vpop.f32.mrb[0].mxu0
    %v925 = vadd.f32 %v689, %v924
    %v926 = vpop.f32.mrb[0].mxu0
    %v927 = vadd.f32 %v693, %v926
    %928 = vmatprep.mubr.bf16.mxu0 %v629
    %929 = vmatmul.mubr.bf16.gmra.mrb[0].mxu0 %v628
    %v930 = vpop.f32.mrb[0].mxu0
    %v931 = vadd.f32 %v689, %v930
    %v932 = vpop.f32.mrb[0].mxu0
    %v933 = vadd.f32 %v693, %v932
    %v934 = vpop.f32.mrb[0].mxu0
    %v935 = vadd.f32 %v689, %v934
    %v936 = vpop.f32.mrb[0].mxu0
    %v937 = vadd.f32 %v693, %v936
    %938 = vmatprep.mubr.bf16.mxu0 %v631
    %939 = vmatmul.mubr.bf16.gmra.mrb[0].mxu0 %v630
    %v940 = vpop.f32.mrb[0].mxu0
    %v941 = vadd.f32 %v689, %v940
    %v942 = vpop.f32.mrb[0].mxu0
    %v943 = vadd.f32 %v693, %v942
    %v944 = vpop.f32.mrb[0].mxu0
    %v945 = vadd.f32 %v689, %v944
    %v946 = vpop.f32.mrb[0].mxu0
    %v947 = vadd.f32 %v693, %v946
    %948 = vmatprep.mubr.bf16.mxu0 %v633
    %949 = vmatmul.mubr.bf16.gmra.mrb[0].mxu0 %v632
    %v950 = vpop.f32.mrb[0].mxu0
    %v951 = vadd.f32 %v689, %v950
    %v952 = vpop.f32.mrb[0].mxu0
    %v953 = vadd.f32 %v693, %v952
    %v954 = vpop.f32.mrb[0].mxu0
    %v955 = vadd.f32 %v689, %v954
    %v956 = vpop.f32.mrb[0].mxu0
    %v957 = vadd.f32 %v693, %v956
    %958 = vmatprep.mubr.bf16.mxu0 %v635
    %959 = vmatmul.mubr.bf16.gmra.mrb[0].mxu0 %v634
    %v960 = vpop.f32.mrb[0].mxu0
    %v961 = vadd.f32 %v689, %v960
    %v962 = vpop.f32.mrb[0].mxu0
    %v963 = vadd.f32 %v693, %v962
    %v964 = vpop.f32.mrb[0].mxu0
    %v965 = vadd.f32 %v689, %v964
    %v966 = vpop.f32.mrb[0].mxu0
    %v967 = vadd.f32 %v693, %v966
    %968 = vmatprep.mubr.bf16.mxu0 %v637
    %969 = vmatmul.mubr.bf16.gmra.mrb[0].mxu0 %v636
    %v970 = vpop.f32.mrb[0].mxu0
    %v971 = vadd.f32 %v689, %v970
    %v972 = vpop.f32.mrb[0].mxu0
    %v973 = vadd.f32 %v693, %v972
    %v974 = vpop.f32.mrb[0].mxu0
    %v975 = vadd.f32 %v689, %v974
    %v976 = vpop.f32.mrb[0].mxu0
    %v977 = vadd.f32 %v693, %v976
    %978 = vmatprep.mubr.bf16.mxu0 %v639
    %979 = vmatmul.mubr.bf16.gmra.mrb[0].mxu0 %v638
    %v980 = vpop.f32.mrb[0].mxu0
    %v981 = vadd.f32 %v689, %v980
    %v982 = vpop.f32.mrb[0].mxu0
    %v983 = vadd.f32 %v693, %v982
    %v984 = vpop.f32.mrb[0].mxu0
    %v985 = vadd.f32 %v689, %v984
    %v986 = vpop.f32.mrb[0].mxu0
    %v987 = vadd.f32 %v693, %v986
    %988 = vmatprep.mubr.bf16.mxu0 %v641
    %989 = vmatmul.mubr.bf16.gmra.mrb[0].mxu0 %v640
    %v990 = vpop.f32.mrb[0].mxu0
    %v991 = vadd.f32 %v689, %v990
    %v992 = vpop.f32.mrb[0].mxu0
    %v993 = vadd.f32 %v693, %v992
    %v994 = vpop.f32.mrb[0].mxu0
    %v995 = vadd.f32 %v689, %v994
    %v996 = vpop.f32.mrb[0].mxu0
    %v997 = vadd.f32 %v693, %v996
    %998 = vmatprep.mubr.bf16.mxu0 %v643
    %999 = vmatmul.mubr.bf16.gmra.mrb[0].mxu0 %v642
    %v1000 = vpop.f32.mrb[0].mxu0
    %v1001 = vadd.f32 %v689, %v1000
    %v1002 = vpop.f32.mrb[0].mxu0
    %v1003 = vadd.f32 %v693, %v1002
    %v1004 = vpop.f32.mrb[0].mxu0
    %v1005 = vadd.f32 %v689, %v1004
    %v1006 = vpop.f32.mrb[0].mxu0
    %v1007 = vadd.f32 %v693, %v1006
    %1008 = vmatprep.mubr.bf16.mxu0 %v645
    %1009 = vmatmul.mubr.bf16.gmra.mrb[0].mxu0 %v644
    %v1010 = vpop.f32.mrb[0].mxu0
    %v1011 = vadd.f32 %v689, %v1010
    %v1012 = vpop.f32.mrb[0].mxu0
    %v1013 = vadd.f32 %v693, %v1012
    %v1014 = vpop.f32.mrb[0].mxu0
    %v1015 = vadd.f32 %v689, %v1014
    %v1016 = vpop.f32.mrb[0].mxu0
    %v1017 = vadd.f32 %v693, %v1016
    %1018 = vmatprep.mubr.bf16.mxu0 %v647
    %1019 = vmatmul.mubr.bf16.gmra.mrb[0].mxu0 %v646
    %v1020 = vpop.f32.mrb[0].mxu0
    %v1021 = vadd.f32 %v689, %v1020
    %v1022 = vpop.f32.mrb[0].mxu0
    %v1023 = vadd.f32 %v693, %v1022
    %v1024 = vpop.f32.mrb[0].mxu0
    %v1025 = vadd.f32 %v689, %v1024
    %v1026 = vpop.f32.mrb[0].mxu0
    %v1027 = vadd.f32 %v693, %v1026
    %1028 = vmatprep.mubr.bf16.mxu0 %v649
    %1029 = vmatmul.mubr.bf16.gmra.mrb[0].mxu0 %v648
    %v1030 = vpop.f32.mrb[0].mxu0
    %v1031 = vadd.f32 %v689, %v1030
    %v1032 = vpop.f32.mrb[0].mxu0
    %v1033 = vadd.f32 %v693, %v1032
    %v1034 = vpop.f32.mrb[0].mxu0
    %v1035 = vadd.f32 %v689, %v1034
    %v1036 = vpop.f32.mrb[0].mxu0
    %v1037 = vadd.f32 %v693, %v1036
    %1038 = vmatprep.mubr.bf16.mxu0 %v651
    %1039 = vmatmul.mubr.bf16.gmra.mrb[0].mxu0 %v650
    %v1040 = vpop.f32.mrb[0].mxu0
    %v1041 = vadd.f32 %v689, %v1040
    %v1042 = vpop.f32.mrb[0].mxu0
    %v1043 = vadd.f32 %v693, %v1042
    %v1044 = vpop.f32.mrb[0].mxu0
    %v1045 = vadd.f32 %v689, %v1044
    %v1046 = vpop.f32.mrb[0].mxu0
    %v1047 = vadd.f32 %v693, %v1046
    %1048 = vdwg.mxu0
    %v1049 = vmax.f32 %v891, 0.0
    %v1050 = vmax.f32 %v893, 0.0
    %v1051 = vmax.f32 %v895, 0.0
    %v1052 = vmax.f32 %v897, 0.0
    %v1053 = vmax.f32 %v901, 0.0
    %v1054 = vmax.f32 %v903, 0.0
    %v1055 = vmax.f32 %v905, 0.0
    %v1056 = vmax.f32 %v907, 0.0
    %v1057 = vmax.f32 %v911, 0.0
    %v1058 = vmax.f32 %v913, 0.0
    %v1059 = vmax.f32 %v915, 0.0
    %v1060 = vmax.f32 %v917, 0.0
    %v1061 = vmax.f32 %v921, 0.0
    %v1062 = vmax.f32 %v923, 0.0
    %v1063 = vmax.f32 %v925, 0.0
    %v1064 = vmax.f32 %v927, 0.0
    %v1065 = vmax.f32 %v931, 0.0
    %v1066 = vmax.f32 %v933, 0.0
    %v1067 = vmax.f32 %v935, 0.0
    %v1068 = vmax.f32 %v937, 0.0
    %v1069 = vmax.f32 %v941, 0.0
    %v1070 = vmax.f32 %v943, 0.0
    %v1071 = vmax.f32 %v945, 0.0
    %v1072 = vmax.f32 %v947, 0.0
    %v1073 = vmax.f32 %v951, 0.0
    %v1074 = vmax.f32 %v953, 0.0
    %v1075 = vmax.f32 %v955, 0.0
    %v1076 = vmax.f32 %v957, 0.0
    %v1077 = vmax.f32 %v961, 0.0
    %v1078 = vmax.f32 %v963, 0.0
    %v1079 = vmax.f32 %v965, 0.0
    %v1080 = vmax.f32 %v967, 0.0
    %v1081 = vmax.f32 %v971, 0.0
    %v1082 = vmax.f32 %v973, 0.0
    %v1083 = vmax.f32 %v975, 0.0
    %v1084 = vmax.f32 %v977, 0.0
    %v1085 = vmax.f32 %v981, 0.0
    %v1086 = vmax.f32 %v983, 0.0
    %v1087 = vmax.f32 %v985, 0.0
    %v1088 = vmax.f32 %v987, 0.0
    %v1089 = vmax.f32 %v991, 0.0
    %v1090 = vmax.f32 %v993, 0.0
    %v1091 = vmax.f32 %v995, 0.0
    %v1092 = vmax.f32 %v997, 0.0
    %v1093 = vmax.f32 %v1001, 0.0
    %v1094 = vmax.f32 %v1003, 0.0
    %v1095 = vmax.f32 %v1005, 0.0
    %v1096 = vmax.f32 %v1007, 0.0
    %v1097 = vmax.f32 %v1011, 0.0
    %v1098 = vmax.f32 %v1013, 0.0
    %v1099 = vmax.f32 %v1015, 0.0
    %v1100 = vmax.f32 %v1017, 0.0
    %v1101 = vmax.f32 %v1021, 0.0
    %v1102 = vmax.f32 %v1023, 0.0
    %v1103 = vmax.f32 %v1025, 0.0
    %v1104 = vmax.f32 %v1027, 0.0
    %v1105 = vmax.f32 %v1031, 0.0
    %v1106 = vmax.f32 %v1033, 0.0
    %v1107 = vmax.f32 %v1035, 0.0
    %v1108 = vmax.f32 %v1037, 0.0
    %v1109 = vmax.f32 %v1041, 0.0
    %v1110 = vmax.f32 %v1043, 0.0
    %v1111 = vmax.f32 %v1045, 0.0
    %v1112 = vmax.f32 %v1047, 0.0
    %v1113 = vpack.c.bf16 %v1051, %v1049
    %v1114 = vpack.c.bf16 %v1052, %v1050
    %v1115 = vpack.c.bf16 %v1055, %v1053
    %v1116 = vpack.c.bf16 %v1056, %v1054
    %v1117 = vpack.c.bf16 %v1059, %v1057
    %v1118 = vpack.c.bf16 %v1060, %v1058
    %v1119 = vpack.c.bf16 %v1063, %v1061
    %v1120 = vpack.c.bf16 %v1064, %v1062
    %v1121 = vpack.c.bf16 %v1067, %v1065
    %v1122 = vpack.c.bf16 %v1068, %v1066
    %v1123 = vpack.c.bf16 %v1071, %v1069
    %v1124 = vpack.c.bf16 %v1072, %v1070
    %v1125 = vpack.c.bf16 %v1075, %v1073
    %v1126 = vpack.c.bf16 %v1076, %v1074
    %v1127 = vpack.c.bf16 %v1079, %v1077
    %v1128 = vpack.c.bf16 %v1080, %v1078
    %v1129 = vpack.c.bf16 %v1083, %v1081
    %v1130 = vpack.c.bf16 %v1084, %v1082
    %v1131 = vpack.c.bf16 %v1087, %v1085
    %v1132 = vpack.c.bf16 %v1088, %v1086
    %v1133 = vpack.c.bf16 %v1091, %v1089
    %v1134 = vpack.c.bf16 %v1092, %v1090
    %v1135 = vpack.c.bf16 %v1095, %v1093
    %v1136 = vpack.c.bf16 %v1096, %v1094
    %v1137 = vpack.c.bf16 %v1099, %v1097
    %v1138 = vpack.c.bf16 %v1100, %v1098
    %v1139 = vpack.c.bf16 %v1103, %v1101
    %v1140 = vpack.c.bf16 %v1104, %v1102
    %v1141 = vpack.c.bf16 %v1107, %v1105
    %v1142 = vpack.c.bf16 %v1108, %v1106
    %v1143 = vpack.c.bf16 %v1111, %v1109
    %v1144 = vpack.c.bf16 %v1112, %v1110
    %v1145 = vld [vmem:[#allocation7] sm:$0xff]
    %v1146 = vld [vmem:[#allocation7 + $0x8] sm:$0xff]
    %v1147 = vld [vmem:[#allocation7 + $0x10] sm:$0xff]
    %v1148 = vld [vmem:[#allocation7 + $0x18] sm:$0xff]
    %v1149 = vld [vmem:[#allocation7 + $0x20] sm:$0xff]
    %v1150 = vld [vmem:[#allocation7 + $0x28] sm:$0xff]
    %v1151 = vld [vmem:[#allocation7 + $0x30] sm:$0xff]
    %v1152 = vld [vmem:[#allocation7 + $0x38] sm:$0xff]
    %v1153 = vld [vmem:[#allocation7 + $0x40] sm:$0xff]
    %v1154 = vld [vmem:[#allocation7 + $0x48] sm:$0xff]
    %v1155 = vld [vmem:[#allocation7 + $0x50] sm:$0xff]
    %v1156 = vld [vmem:[#allocation7 + $0x58] sm:$0xff]
    %v1157 = vld [vmem:[#allocation7 + $0x60] sm:$0xff]
    %v1158 = vld [vmem:[#allocation7 + $0x68] sm:$0xff]
    %v1159 = vld [vmem:[#allocation7 + $0x70] sm:$0xff]
    %v1160 = vld [vmem:[#allocation7 + $0x78] sm:$0xff]
    %v1161 = vld [vmem:[#allocation7 + $0x80] sm:$0xff]
    %v1162 = vld [vmem:[#allocation7 + $0x88] sm:$0xff]
    %v1163 = vld [vmem:[#allocation7 + $0x90] sm:$0xff]
    %v1164 = vld [vmem:[#allocation7 + $0x98] sm:$0xff]
    %v1165 = vld [vmem:[#allocation7 + $0xa0] sm:$0xff]
    %v1166 = vld [vmem:[#allocation7 + $0xa8] sm:$0xff]
    %v1167 = vld [vmem:[#allocation7 + $0xb0] sm:$0xff]
    %v1168 = vld [vmem:[#allocation7 + $0xb8] sm:$0xff]
    %v1169 = vld [vmem:[#allocation7 + $0xc0] sm:$0xff]
    %v1170 = vld [vmem:[#allocation7 + $0xc8] sm:$0xff]
    %v1171 = vld [vmem:[#allocation7 + $0xd0] sm:$0xff]
    %v1172 = vld [vmem:[#allocation7 + $0xd8] sm:$0xff]
    %v1173 = vld [vmem:[#allocation7 + $0xe0] sm:$0xff]
    %v1174 = vld [vmem:[#allocation7 + $0xe8] sm:$0xff]
    %v1175 = vld [vmem:[#allocation7 + $0xf0] sm:$0xff]
    %v1176 = vld [vmem:[#allocation7 + $0xf8] sm:$0xff]
    %v1177 = vld [vmem:[#allocation7 + $0x100] sm:$0xff]
    %v1178 = vld [vmem:[#allocation7 + $0x108] sm:$0xff]
    %v1179 = vld [vmem:[#allocation7 + $0x110] sm:$0xff]
    %v1180 = vld [vmem:[#allocation7 + $0x118] sm:$0xff]
    %v1181 = vld [vmem:[#allocation7 + $0x120] sm:$0xff]
    %v1182 = vld [vmem:[#allocation7 + $0x128] sm:$0xff]
    %v1183 = vld [vmem:[#allocation7 + $0x130] sm:$0xff]
    %v1184 = vld [vmem:[#allocation7 + $0x138] sm:$0xff]
    %v1185 = vld [vmem:[#allocation7 + $0x140] sm:$0xff]
    %v1186 = vld [vmem:[#allocation7 + $0x148] sm:$0xff]
    %v1187 = vld [vmem:[#allocation7 + $0x150] sm:$0xff]
    %v1188 = vld [vmem:[#allocation7 + $0x158] sm:$0xff]
    %v1189 = vld [vmem:[#allocation7 + $0x160] sm:$0xff]
    %v1190 = vld [vmem:[#allocation7 + $0x168] sm:$0xff]
    %v1191 = vld [vmem:[#allocation7 + $0x170] sm:$0xff]
    %v1192 = vld [vmem:[#allocation7 + $0x178] sm:$0xff]
    %v1193 = vld [vmem:[#allocation7 + $0x180] sm:$0xff]
    %v1194 = vld [vmem:[#allocation7 + $0x188] sm:$0xff]
    %v1195 = vld [vmem:[#allocation7 + $0x190] sm:$0xff]
    %v1196 = vld [vmem:[#allocation7 + $0x198] sm:$0xff]
    %v1197 = vld [vmem:[#allocation7 + $0x1a0] sm:$0xff]
    %v1198 = vld [vmem:[#allocation7 + $0x1a8] sm:$0xff]
    %v1199 = vld [vmem:[#allocation7 + $0x1b0] sm:$0xff]
    %v1200 = vld [vmem:[#allocation7 + $0x1b8] sm:$0xff]
    %v1201 = vld [vmem:[#allocation7 + $0x1c0] sm:$0xff]
    %v1202 = vld [vmem:[#allocation7 + $0x1c8] sm:$0xff]
    %v1203 = vld [vmem:[#allocation7 + $0x1d0] sm:$0xff]
    %v1204 = vld [vmem:[#allocation7 + $0x1d8] sm:$0xff]
    %v1205 = vld [vmem:[#allocation7 + $0x1e0] sm:$0xff]
    %v1206 = vld [vmem:[#allocation7 + $0x1e8] sm:$0xff]
    %v1207 = vld [vmem:[#allocation7 + $0x1f0] sm:$0xff]
    %v1208 = vld [vmem:[#allocation7 + $0x1f8] sm:$0xff]
    %v1209 = vld [vmem:[%s6] sm:$0xf]
    %v1211 = vlaneseq
    %v1212 = vshrl.u32 %v1211, 7
    %v1213 = vsub.s32 0, %v1212
    %v1214 = vrot.slane %v1209, %v1213
    %v1215 = vlaneseq
    %v1216 = vshrl.u32 %v1215, 7
    %v1217 = vsub.s32 1, %v1216
    %v1218 = vrot.slane %v1209, %v1217
    %v1219 = vlaneseq
    %v1220 = vshrl.u32 %v1219, 7
    %v1221 = vsub.s32 2, %v1220
    %v1222 = vrot.slane %v1209, %v1221
    %v1223 = vlaneseq
    %v1224 = vshrl.u32 %v1223, 7
    %v1225 = vsub.s32 3, %v1224
    %v1226 = vrot.slane %v1209, %v1225
    %v1295 = vunpack.c.l.b16 %v1145
    %v1296 = vunpack.c.h.b16 %v1145
    %v1297 = vunpack.c.l.b16 %v1146
    %v1298 = vunpack.c.h.b16 %v1146
    %v1299 = vunpack.c.l.b16 %v1147
    %v1300 = vunpack.c.h.b16 %v1147
    %v1301 = vunpack.c.l.b16 %v1148
    %v1302 = vunpack.c.h.b16 %v1148
    %v1303 = vunpack.c.l.b16 %v1149
    %v1304 = vunpack.c.h.b16 %v1149
    %v1305 = vunpack.c.l.b16 %v1150
    %v1306 = vunpack.c.h.b16 %v1150
    %v1307 = vunpack.c.l.b16 %v1151
    %v1308 = vunpack.c.h.b16 %v1151
    %v1309 = vunpack.c.l.b16 %v1152
    %v1310 = vunpack.c.h.b16 %v1152
    %v1311 = vunpack.c.l.b16 %v1153
    %v1312 = vunpack.c.h.b16 %v1153
    %v1313 = vunpack.c.l.b16 %v1154
    %v1314 = vunpack.c.h.b16 %v1154
    %v1315 = vunpack.c.l.b16 %v1155
    %v1316 = vunpack.c.h.b16 %v1155
    %v1317 = vunpack.c.l.b16 %v1156
    %v1318 = vunpack.c.h.b16 %v1156
    %v1319 = vunpack.c.l.b16 %v1157
    %v1320 = vunpack.c.h.b16 %v1157
    %v1321 = vunpack.c.l.b16 %v1158
    %v1322 = vunpack.c.h.b16 %v1158
    %v1323 = vunpack.c.l.b16 %v1159
    %v1324 = vunpack.c.h.b16 %v1159
    %v1325 = vunpack.c.l.b16 %v1160
    %v1326 = vunpack.c.h.b16 %v1160
    %v1327 = vunpack.c.l.b16 %v1161
    %v1328 = vunpack.c.h.b16 %v1161
    %v1329 = vunpack.c.l.b16 %v1162
    %v1330 = vunpack.c.h.b16 %v1162
    %v1331 = vunpack.c.l.b16 %v1163
    %v1332 = vunpack.c.h.b16 %v1163
    %v1333 = vunpack.c.l.b16 %v1164
    %v1334 = vunpack.c.h.b16 %v1164
    %v1335 = vunpack.c.l.b16 %v1165
    %v1336 = vunpack.c.h.b16 %v1165
    %v1337 = vunpack.c.l.b16 %v1166
    %v1338 = vunpack.c.h.b16 %v1166
    %v1339 = vunpack.c.l.b16 %v1167
    %v1340 = vunpack.c.h.b16 %v1167
    %v1341 = vunpack.c.l.b16 %v1168
    %v1342 = vunpack.c.h.b16 %v1168
    %v1343 = vunpack.c.l.b16 %v1169
    %v1344 = vunpack.c.h.b16 %v1169
    %v1345 = vunpack.c.l.b16 %v1170
    %v1346 = vunpack.c.h.b16 %v1170
    %v1347 = vunpack.c.l.b16 %v1171
    %v1348 = vunpack.c.h.b16 %v1171
    %v1349 = vunpack.c.l.b16 %v1172
    %v1350 = vunpack.c.h.b16 %v1172
    %v1351 = vunpack.c.l.b16 %v1173
    %v1352 = vunpack.c.h.b16 %v1173
    %v1353 = vunpack.c.l.b16 %v1174
    %v1354 = vunpack.c.h.b16 %v1174
    %v1355 = vunpack.c.l.b16 %v1175
    %v1356 = vunpack.c.h.b16 %v1175
    %v1357 = vunpack.c.l.b16 %v1176
    %v1358 = vunpack.c.h.b16 %v1176
    %v1359 = vunpack.c.l.b16 %v1177
    %v1360 = vunpack.c.h.b16 %v1177
    %v1361 = vunpack.c.l.b16 %v1178
    %v1362 = vunpack.c.h.b16 %v1178
    %v1363 = vunpack.c.l.b16 %v1179
    %v1364 = vunpack.c.h.b16 %v1179
    %v1365 = vunpack.c.l.b16 %v1180
    %v1366 = vunpack.c.h.b16 %v1180
    %v1367 = vunpack.c.l.b16 %v1181
    %v1368 = vunpack.c.h.b16 %v1181
    %v1369 = vunpack.c.l.b16 %v1182
    %v1370 = vunpack.c.h.b16 %v1182
    %v1371 = vunpack.c.l.b16 %v1183
    %v1372 = vunpack.c.h.b16 %v1183
    %v1373 = vunpack.c.l.b16 %v1184
    %v1374 = vunpack.c.h.b16 %v1184
    %v1375 = vunpack.c.l.b16 %v1185
    %v1376 = vunpack.c.h.b16 %v1185
    %v1377 = vunpack.c.l.b16 %v1186
    %v1378 = vunpack.c.h.b16 %v1186
    %v1379 = vunpack.c.l.b16 %v1187
    %v1380 = vunpack.c.h.b16 %v1187
    %v1381 = vunpack.c.l.b16 %v1188
    %v1382 = vunpack.c.h.b16 %v1188
    %v1383 = vunpack.c.l.b16 %v1189
    %v1384 = vunpack.c.h.b16 %v1189
    %v1385 = vunpack.c.l.b16 %v1190
    %v1386 = vunpack.c.h.b16 %v1190
    %v1387 = vunpack.c.l.b16 %v1191
    %v1388 = vunpack.c.h.b16 %v1191
    %v1389 = vunpack.c.l.b16 %v1192
    %v1390 = vunpack.c.h.b16 %v1192
    %v1391 = vunpack.c.l.b16 %v1193
    %v1392 = vunpack.c.h.b16 %v1193
    %v1393 = vunpack.c.l.b16 %v1194
    %v1394 = vunpack.c.h.b16 %v1194
    %v1395 = vunpack.c.l.b16 %v1195
    %v1396 = vunpack.c.h.b16 %v1195
    %v1397 = vunpack.c.l.b16 %v1196
    %v1398 = vunpack.c.h.b16 %v1196
    %v1399 = vunpack.c.l.b16 %v1197
    %v1400 = vunpack.c.h.b16 %v1197
    %v1401 = vunpack.c.l.b16 %v1198
    %v1402 = vunpack.c.h.b16 %v1198
    %v1403 = vunpack.c.l.b16 %v1199
    %v1404 = vunpack.c.h.b16 %v1199
    %v1405 = vunpack.c.l.b16 %v1200
    %v1406 = vunpack.c.h.b16 %v1200
    %v1407 = vunpack.c.l.b16 %v1201
    %v1408 = vunpack.c.h.b16 %v1201
    %v1409 = vunpack.c.l.b16 %v1202
    %v1410 = vunpack.c.h.b16 %v1202
    %v1411 = vunpack.c.l.b16 %v1203
    %v1412 = vunpack.c.h.b16 %v1203
    %v1413 = vunpack.c.l.b16 %v1204
    %v1414 = vunpack.c.h.b16 %v1204
    %v1415 = vunpack.c.l.b16 %v1205
    %v1416 = vunpack.c.h.b16 %v1205
    %v1417 = vunpack.c.l.b16 %v1206
    %v1418 = vunpack.c.h.b16 %v1206
    %v1419 = vunpack.c.l.b16 %v1207
    %v1420 = vunpack.c.h.b16 %v1207
    %v1421 = vunpack.c.l.b16 %v1208
    %v1422 = vunpack.c.h.b16 %v1208
    %v1423 = vpack.c.b16 %v1299, %v1295
    %v1424 = vpack.c.b16 %v1300, %v1296
    %v1425 = vpack.c.b16 %v1301, %v1297
    %v1426 = vpack.c.b16 %v1302, %v1298
    %v1427 = vpack.c.b16 %v1307, %v1303
    %v1428 = vpack.c.b16 %v1308, %v1304
    %v1429 = vpack.c.b16 %v1309, %v1305
    %v1430 = vpack.c.b16 %v1310, %v1306
    %v1431 = vpack.c.b16 %v1315, %v1311
    %v1432 = vpack.c.b16 %v1316, %v1312
    %v1433 = vpack.c.b16 %v1317, %v1313
    %v1434 = vpack.c.b16 %v1318, %v1314
    %v1435 = vpack.c.b16 %v1323, %v1319
    %v1436 = vpack.c.b16 %v1324, %v1320
    %v1437 = vpack.c.b16 %v1325, %v1321
    %v1438 = vpack.c.b16 %v1326, %v1322
    %v1439 = vpack.c.b16 %v1331, %v1327
    %v1440 = vpack.c.b16 %v1332, %v1328
    %v1441 = vpack.c.b16 %v1333, %v1329
    %v1442 = vpack.c.b16 %v1334, %v1330
    %v1443 = vpack.c.b16 %v1339, %v1335
    %v1444 = vpack.c.b16 %v1340, %v1336
    %v1445 = vpack.c.b16 %v1341, %v1337
    %v1446 = vpack.c.b16 %v1342, %v1338
    %v1447 = vpack.c.b16 %v1347, %v1343
    %v1448 = vpack.c.b16 %v1348, %v1344
    %v1449 = vpack.c.b16 %v1349, %v1345
    %v1450 = vpack.c.b16 %v1350, %v1346
    %v1451 = vpack.c.b16 %v1355, %v1351
    %v1452 = vpack.c.b16 %v1356, %v1352
    %v1453 = vpack.c.b16 %v1357, %v1353
    %v1454 = vpack.c.b16 %v1358, %v1354
    %v1455 = vpack.c.b16 %v1363, %v1359
    %v1456 = vpack.c.b16 %v1364, %v1360
    %v1457 = vpack.c.b16 %v1365, %v1361
    %v1458 = vpack.c.b16 %v1366, %v1362
    %v1459 = vpack.c.b16 %v1371, %v1367
    %v1460 = vpack.c.b16 %v1372, %v1368
    %v1461 = vpack.c.b16 %v1373, %v1369
    %v1462 = vpack.c.b16 %v1374, %v1370
    %v1463 = vpack.c.b16 %v1379, %v1375
    %v1464 = vpack.c.b16 %v1380, %v1376
    %v1465 = vpack.c.b16 %v1381, %v1377
    %v1466 = vpack.c.b16 %v1382, %v1378
    %v1467 = vpack.c.b16 %v1387, %v1383
    %v1468 = vpack.c.b16 %v1388, %v1384
    %v1469 = vpack.c.b16 %v1389, %v1385
    %v1470 = vpack.c.b16 %v1390, %v1386
    %v1471 = vpack.c.b16 %v1395, %v1391
    %v1472 = vpack.c.b16 %v1396, %v1392
    %v1473 = vpack.c.b16 %v1397, %v1393
    %v1474 = vpack.c.b16 %v1398, %v1394
    %v1475 = vpack.c.b16 %v1403, %v1399
    %v1476 = vpack.c.b16 %v1404, %v1400
    %v1477 = vpack.c.b16 %v1405, %v1401
    %v1478 = vpack.c.b16 %v1406, %v1402
    %v1479 = vpack.c.b16 %v1411, %v1407
    %v1480 = vpack.c.b16 %v1412, %v1408
    %v1481 = vpack.c.b16 %v1413, %v1409
    %v1482 = vpack.c.b16 %v1414, %v1410
    %v1483 = vpack.c.b16 %v1419, %v1415
    %v1484 = vpack.c.b16 %v1420, %v1416
    %v1485 = vpack.c.b16 %v1421, %v1417
    %v1486 = vpack.c.b16 %v1422, %v1418
    %1551 = vmatprep.subr.bf16.mxu0 %v1424
    %1552 = vmatpush1.bf16.msra.mxu0 %v1423
    %1553 = vmatprep.subr.bf16.mxu0 %v1428
    %1554 = vmatpush1.bf16.msra.mxu0 %v1427
    %1555 = vmatprep.subr.bf16.mxu0 %v1432
    %1556 = vmatpush1.bf16.msra.mxu0 %v1431
    %1557 = vmatprep.subr.bf16.mxu0 %v1436
    %1558 = vmatpush1.bf16.msra.mxu0 %v1435
    %1559 = vmatprep.subr.bf16.mxu0 %v1440
    %1560 = vmatpush1.bf16.msra.mxu0 %v1439
    %1561 = vmatprep.subr.bf16.mxu0 %v1444
    %1562 = vmatpush1.bf16.msra.mxu0 %v1443
    %1563 = vmatprep.subr.bf16.mxu0 %v1448
    %1564 = vmatpush1.bf16.msra.mxu0 %v1447
    %1565 = vmatprep.subr.bf16.mxu0 %v1452
    %1566 = vmatpush1.bf16.msra.mxu0 %v1451
    %1567 = vmatprep.subr.bf16.mxu0 %v1456
    %1568 = vmatpush1.bf16.msra.mxu0 %v1455
    %1569 = vmatprep.subr.bf16.mxu0 %v1460
    %1570 = vmatpush1.bf16.msra.mxu0 %v1459
    %1571 = vmatprep.subr.bf16.mxu0 %v1464
    %1572 = vmatpush1.bf16.msra.mxu0 %v1463
    %1573 = vmatprep.subr.bf16.mxu0 %v1468
    %1574 = vmatpush1.bf16.msra.mxu0 %v1467
    %1575 = vmatprep.subr.bf16.mxu0 %v1472
    %1576 = vmatpush1.bf16.msra.mxu0 %v1471
    %1577 = vmatprep.subr.bf16.mxu0 %v1476
    %1578 = vmatpush1.bf16.msra.mxu0 %v1475
    %1579 = vmatprep.subr.bf16.mxu0 %v1480
    %1580 = vmatpush1.bf16.msra.mxu0 %v1479
    %1581 = vmatprep.subr.bf16.mxu0 %v1484
    %1582 = vmatpush1.bf16.msra.mxu0 %v1483
    %1583 = vmatprep.mubr.bf16.mxu0 %v1114
    %1584 = vmatmul.mubr.bf16.gmra.mrb[0].mxu0 %v1113
    %v1585 = vpop.f32.mrb[0].mxu0
    %v1586 = vadd.f32 %v1214, %v1585
    %v1587 = vpop.f32.mrb[0].mxu0
    %v1588 = vadd.f32 %v1218, %v1587
    %v1589 = vpop.f32.mrb[0].mxu0
    %v1590 = vadd.f32 %v1214, %v1589
    %v1591 = vpop.f32.mrb[0].mxu0
    %v1592 = vadd.f32 %v1218, %v1591
    %1593 = vmatprep.mubr.bf16.mxu0 %v1116
    %1594 = vmatmul.mubr.bf16.gmra.mrb[0].mxu0 %v1115
    %v1595 = vpop.f32.mrb[0].mxu0
    %v1596 = vadd.f32 %v1214, %v1595
    %v1597 = vpop.f32.mrb[0].mxu0
    %v1598 = vadd.f32 %v1218, %v1597
    %v1599 = vpop.f32.mrb[0].mxu0
    %v1600 = vadd.f32 %v1214, %v1599
    %v1601 = vpop.f32.mrb[0].mxu0
    %v1602 = vadd.f32 %v1218, %v1601
    %1603 = vmatprep.mubr.bf16.mxu0 %v1118
    %1604 = vmatmul.mubr.bf16.gmra.mrb[0].mxu0 %v1117
    %v1605 = vpop.f32.mrb[0].mxu0
    %v1606 = vadd.f32 %v1214, %v1605
    %v1607 = vpop.f32.mrb[0].mxu0
    %v1608 = vadd.f32 %v1218, %v1607
    %v1609 = vpop.f32.mrb[0].mxu0
    %v1610 = vadd.f32 %v1214, %v1609
    %v1611 = vpop.f32.mrb[0].mxu0
    %v1612 = vadd.f32 %v1218, %v1611
    %1613 = vmatprep.mubr.bf16.mxu0 %v1120
    %1614 = vmatmul.mubr.bf16.gmra.mrb[0].mxu0 %v1119
    %v1615 = vpop.f32.mrb[0].mxu0
    %v1616 = vadd.f32 %v1214, %v1615
    %v1617 = vpop.f32.mrb[0].mxu0
    %v1618 = vadd.f32 %v1218, %v1617
    %v1619 = vpop.f32.mrb[0].mxu0
    %v1620 = vadd.f32 %v1214, %v1619
    %v1621 = vpop.f32.mrb[0].mxu0
    %v1622 = vadd.f32 %v1218, %v1621
    %1623 = vmatprep.mubr.bf16.mxu0 %v1122
    %1624 = vmatmul.mubr.bf16.gmra.mrb[0].mxu0 %v1121
    %v1625 = vpop.f32.mrb[0].mxu0
    %v1626 = vadd.f32 %v1214, %v1625
    %v1627 = vpop.f32.mrb[0].mxu0
    %v1628 = vadd.f32 %v1218, %v1627
    %v1629 = vpop.f32.mrb[0].mxu0
    %v1630 = vadd.f32 %v1214, %v1629
    %v1631 = vpop.f32.mrb[0].mxu0
    %v1632 = vadd.f32 %v1218, %v1631
    %1633 = vmatprep.mubr.bf16.mxu0 %v1124
    %1634 = vmatmul.mubr.bf16.gmra.mrb[0].mxu0 %v1123
    %v1635 = vpop.f32.mrb[0].mxu0
    %v1636 = vadd.f32 %v1214, %v1635
    %v1637 = vpop.f32.mrb[0].mxu0
    %v1638 = vadd.f32 %v1218, %v1637
    %v1639 = vpop.f32.mrb[0].mxu0
    %v1640 = vadd.f32 %v1214, %v1639
    %v1641 = vpop.f32.mrb[0].mxu0
    %v1642 = vadd.f32 %v1218, %v1641
    %1643 = vmatprep.mubr.bf16.mxu0 %v1126
    %1644 = vmatmul.mubr.bf16.gmra.mrb[0].mxu0 %v1125
    %v1645 = vpop.f32.mrb[0].mxu0
    %v1646 = vadd.f32 %v1214, %v1645
    %v1647 = vpop.f32.mrb[0].mxu0
    %v1648 = vadd.f32 %v1218, %v1647
    %v1649 = vpop.f32.mrb[0].mxu0
    %v1650 = vadd.f32 %v1214, %v1649
    %v1651 = vpop.f32.mrb[0].mxu0
    %v1652 = vadd.f32 %v1218, %v1651
    %1653 = vmatprep.mubr.bf16.mxu0 %v1128
    %1654 = vmatmul.mubr.bf16.gmra.mrb[0].mxu0 %v1127
    %v1655 = vpop.f32.mrb[0].mxu0
    %v1656 = vadd.f32 %v1214, %v1655
    %v1657 = vpop.f32.mrb[0].mxu0
    %v1658 = vadd.f32 %v1218, %v1657
    %v1659 = vpop.f32.mrb[0].mxu0
    %v1660 = vadd.f32 %v1214, %v1659
    %v1661 = vpop.f32.mrb[0].mxu0
    %v1662 = vadd.f32 %v1218, %v1661
    %1663 = vmatprep.mubr.bf16.mxu0 %v1130
    %1664 = vmatmul.mubr.bf16.gmra.mrb[0].mxu0 %v1129
    %v1665 = vpop.f32.mrb[0].mxu0
    %v1666 = vadd.f32 %v1214, %v1665
    %v1667 = vpop.f32.mrb[0].mxu0
    %v1668 = vadd.f32 %v1218, %v1667
    %v1669 = vpop.f32.mrb[0].mxu0
    %v1670 = vadd.f32 %v1214, %v1669
    %v1671 = vpop.f32.mrb[0].mxu0
    %v1672 = vadd.f32 %v1218, %v1671
    %1673 = vmatprep.mubr.bf16.mxu0 %v1132
    %1674 = vmatmul.mubr.bf16.gmra.mrb[0].mxu0 %v1131
    %v1675 = vpop.f32.mrb[0].mxu0
    %v1676 = vadd.f32 %v1214, %v1675
    %v1677 = vpop.f32.mrb[0].mxu0
    %v1678 = vadd.f32 %v1218, %v1677
    %v1679 = vpop.f32.mrb[0].mxu0
    %v1680 = vadd.f32 %v1214, %v1679
    %v1681 = vpop.f32.mrb[0].mxu0
    %v1682 = vadd.f32 %v1218, %v1681
    %1683 = vmatprep.mubr.bf16.mxu0 %v1134
    %1684 = vmatmul.mubr.bf16.gmra.mrb[0].mxu0 %v1133
    %v1685 = vpop.f32.mrb[0].mxu0
    %v1686 = vadd.f32 %v1214, %v1685
    %v1687 = vpop.f32.mrb[0].mxu0
    %v1688 = vadd.f32 %v1218, %v1687
    %v1689 = vpop.f32.mrb[0].mxu0
    %v1690 = vadd.f32 %v1214, %v1689
    %v1691 = vpop.f32.mrb[0].mxu0
    %v1692 = vadd.f32 %v1218, %v1691
    %1693 = vmatprep.mubr.bf16.mxu0 %v1136
    %1694 = vmatmul.mubr.bf16.gmra.mrb[0].mxu0 %v1135
    %v1695 = vpop.f32.mrb[0].mxu0
    %v1696 = vadd.f32 %v1214, %v1695
    %v1697 = vpop.f32.mrb[0].mxu0
    %v1698 = vadd.f32 %v1218, %v1697
    %v1699 = vpop.f32.mrb[0].mxu0
    %v1700 = vadd.f32 %v1214, %v1699
    %v1701 = vpop.f32.mrb[0].mxu0
    %v1702 = vadd.f32 %v1218, %v1701
    %1703 = vmatprep.mubr.bf16.mxu0 %v1138
    %1704 = vmatmul.mubr.bf16.gmra.mrb[0].mxu0 %v1137
    %v1705 = vpop.f32.mrb[0].mxu0
    %v1706 = vadd.f32 %v1214, %v1705
    %v1707 = vpop.f32.mrb[0].mxu0
    %v1708 = vadd.f32 %v1218, %v1707
    %v1709 = vpop.f32.mrb[0].mxu0
    %v1710 = vadd.f32 %v1214, %v1709
    %v1711 = vpop.f32.mrb[0].mxu0
    %v1712 = vadd.f32 %v1218, %v1711
    %1713 = vmatprep.mubr.bf16.mxu0 %v1140
    %1714 = vmatmul.mubr.bf16.gmra.mrb[0].mxu0 %v1139
    %v1715 = vpop.f32.mrb[0].mxu0
    %v1716 = vadd.f32 %v1214, %v1715
    %v1717 = vpop.f32.mrb[0].mxu0
    %v1718 = vadd.f32 %v1218, %v1717
    %v1719 = vpop.f32.mrb[0].mxu0
    %v1720 = vadd.f32 %v1214, %v1719
    %v1721 = vpop.f32.mrb[0].mxu0
    %v1722 = vadd.f32 %v1218, %v1721
    %1723 = vmatprep.mubr.bf16.mxu0 %v1142
    %1724 = vmatmul.mubr.bf16.gmra.mrb[0].mxu0 %v1141
    %v1725 = vpop.f32.mrb[0].mxu0
    %v1726 = vadd.f32 %v1214, %v1725
    %v1727 = vpop.f32.mrb[0].mxu0
    %v1728 = vadd.f32 %v1218, %v1727
    %v1729 = vpop.f32.mrb[0].mxu0
    %v1730 = vadd.f32 %v1214, %v1729
    %v1731 = vpop.f32.mrb[0].mxu0
    %v1732 = vadd.f32 %v1218, %v1731
    %1733 = vmatprep.mubr.bf16.mxu0 %v1144
    %1734 = vmatmul.mubr.bf16.gmra.mrb[0].mxu0 %v1143
    %v1735 = vpop.f32.mrb[0].mxu0
    %v1736 = vadd.f32 %v1214, %v1735
    %v1737 = vpop.f32.mrb[0].mxu0
    %v1738 = vadd.f32 %v1218, %v1737
    %v1739 = vpop.f32.mrb[0].mxu0
    %v1740 = vadd.f32 %v1214, %v1739
    %v1741 = vpop.f32.mrb[0].mxu0
    %v1742 = vadd.f32 %v1218, %v1741
    %1743 = vdwg.mxu0
    %1744 = vmatprep.subr.bf16.mxu0 %v1426
    %1745 = vmatpush1.bf16.msra.mxu0 %v1425
    %1746 = vmatprep.subr.bf16.mxu0 %v1430
    %1747 = vmatpush1.bf16.msra.mxu0 %v1429
    %1748 = vmatprep.subr.bf16.mxu0 %v1434
    %1749 = vmatpush1.bf16.msra.mxu0 %v1433
    %1750 = vmatprep.subr.bf16.mxu0 %v1438
    %1751 = vmatpush1.bf16.msra.mxu0 %v1437
    %1752 = vmatprep.subr.bf16.mxu0 %v1442
    %1753 = vmatpush1.bf16.msra.mxu0 %v1441
    %1754 = vmatprep.subr.bf16.mxu0 %v1446
    %1755 = vmatpush1.bf16.msra.mxu0 %v1445
    %1756 = vmatprep.subr.bf16.mxu0 %v1450
    %1757 = vmatpush1.bf16.msra.mxu0 %v1449
    %1758 = vmatprep.subr.bf16.mxu0 %v1454
    %1759 = vmatpush1.bf16.msra.mxu0 %v1453
    %1760 = vmatprep.subr.bf16.mxu0 %v1458
    %1761 = vmatpush1.bf16.msra.mxu0 %v1457
    %1762 = vmatprep.subr.bf16.mxu0 %v1462
    %1763 = vmatpush1.bf16.msra.mxu0 %v1461
    %1764 = vmatprep.subr.bf16.mxu0 %v1466
    %1765 = vmatpush1.bf16.msra.mxu0 %v1465
    %1766 = vmatprep.subr.bf16.mxu0 %v1470
    %1767 = vmatpush1.bf16.msra.mxu0 %v1469
    %1768 = vmatprep.subr.bf16.mxu0 %v1474
    %1769 = vmatpush1.bf16.msra.mxu0 %v1473
    %1770 = vmatprep.subr.bf16.mxu0 %v1478
    %1771 = vmatpush1.bf16.msra.mxu0 %v1477
    %1772 = vmatprep.subr.bf16.mxu0 %v1482
    %1773 = vmatpush1.bf16.msra.mxu0 %v1481
    %1774 = vmatprep.subr.bf16.mxu0 %v1486
    %1775 = vmatpush1.bf16.msra.mxu0 %v1485
    %1776 = vmatprep.mubr.bf16.mxu0 %v1114
    %1777 = vmatmul.mubr.bf16.gmra.mrb[0].mxu0 %v1113
    %v1778 = vpop.f32.mrb[0].mxu0
    %v1779 = vadd.f32 %v1222, %v1778
    %v1780 = vpop.f32.mrb[0].mxu0
    %v1781 = vadd.f32 %v1226, %v1780
    %v1782 = vpop.f32.mrb[0].mxu0
    %v1783 = vadd.f32 %v1222, %v1782
    %v1784 = vpop.f32.mrb[0].mxu0
    %v1785 = vadd.f32 %v1226, %v1784
    %1786 = vmatprep.mubr.bf16.mxu0 %v1116
    %1787 = vmatmul.mubr.bf16.gmra.mrb[0].mxu0 %v1115
    %v1788 = vpop.f32.mrb[0].mxu0
    %v1789 = vadd.f32 %v1222, %v1788
    %v1790 = vpop.f32.mrb[0].mxu0
    %v1791 = vadd.f32 %v1226, %v1790
    %v1792 = vpop.f32.mrb[0].mxu0
    %v1793 = vadd.f32 %v1222, %v1792
    %v1794 = vpop.f32.mrb[0].mxu0
    %v1795 = vadd.f32 %v1226, %v1794
    %1796 = vmatprep.mubr.bf16.mxu0 %v1118
    %1797 = vmatmul.mubr.bf16.gmra.mrb[0].mxu0 %v1117
    %v1798 = vpop.f32.mrb[0].mxu0
    %v1799 = vadd.f32 %v1222, %v1798
    %v1800 = vpop.f32.mrb[0].mxu0
    %v1801 = vadd.f32 %v1226, %v1800
    %v1802 = vpop.f32.mrb[0].mxu0
    %v1803 = vadd.f32 %v1222, %v1802
    %v1804 = vpop.f32.mrb[0].mxu0
    %v1805 = vadd.f32 %v1226, %v1804
    %1806 = vmatprep.mubr.bf16.mxu0 %v1120
    %1807 = vmatmul.mubr.bf16.gmra.mrb[0].mxu0 %v1119
    %v1808 = vpop.f32.mrb[0].mxu0
    %v1809 = vadd.f32 %v1222, %v1808
    %v1810 = vpop.f32.mrb[0].mxu0
    %v1811 = vadd.f32 %v1226, %v1810
    %v1812 = vpop.f32.mrb[0].mxu0
    %v1813 = vadd.f32 %v1222, %v1812
    %v1814 = vpop.f32.mrb[0].mxu0
    %v1815 = vadd.f32 %v1226, %v1814
    %1816 = vmatprep.mubr.bf16.mxu0 %v1122
    %1817 = vmatmul.mubr.bf16.gmra.mrb[0].mxu0 %v1121
    %v1818 = vpop.f32.mrb[0].mxu0
    %v1819 = vadd.f32 %v1222, %v1818
    %v1820 = vpop.f32.mrb[0].mxu0
    %v1821 = vadd.f32 %v1226, %v1820
    %v1822 = vpop.f32.mrb[0].mxu0
    %v1823 = vadd.f32 %v1222, %v1822
    %v1824 = vpop.f32.mrb[0].mxu0
    %v1825 = vadd.f32 %v1226, %v1824
    %1826 = vmatprep.mubr.bf16.mxu0 %v1124
    %1827 = vmatmul.mubr.bf16.gmra.mrb[0].mxu0 %v1123
    %v1828 = vpop.f32.mrb[0].mxu0
    %v1829 = vadd.f32 %v1222, %v1828
    %v1830 = vpop.f32.mrb[0].mxu0
    %v1831 = vadd.f32 %v1226, %v1830
    %v1832 = vpop.f32.mrb[0].mxu0
    %v1833 = vadd.f32 %v1222, %v1832
    %v1834 = vpop.f32.mrb[0].mxu0
    %v1835 = vadd.f32 %v1226, %v1834
    %1836 = vmatprep.mubr.bf16.mxu0 %v1126
    %1837 = vmatmul.mubr.bf16.gmra.mrb[0].mxu0 %v1125
    %v1838 = vpop.f32.mrb[0].mxu0
    %v1839 = vadd.f32 %v1222, %v1838
    %v1840 = vpop.f32.mrb[0].mxu0
    %v1841 = vadd.f32 %v1226, %v1840
    %v1842 = vpop.f32.mrb[0].mxu0
    %v1843 = vadd.f32 %v1222, %v1842
    %v1844 = vpop.f32.mrb[0].mxu0
    %v1845 = vadd.f32 %v1226, %v1844
    %1846 = vmatprep.mubr.bf16.mxu0 %v1128
    %1847 = vmatmul.mubr.bf16.gmra.mrb[0].mxu0 %v1127
    %v1848 = vpop.f32.mrb[0].mxu0
    %v1849 = vadd.f32 %v1222, %v1848
    %v1850 = vpop.f32.mrb[0].mxu0
    %v1851 = vadd.f32 %v1226, %v1850
    %v1852 = vpop.f32.mrb[0].mxu0
    %v1853 = vadd.f32 %v1222, %v1852
    %v1854 = vpop.f32.mrb[0].mxu0
    %v1855 = vadd.f32 %v1226, %v1854
    %1856 = vmatprep.mubr.bf16.mxu0 %v1130
    %1857 = vmatmul.mubr.bf16.gmra.mrb[0].mxu0 %v1129
    %v1858 = vpop.f32.mrb[0].mxu0
    %v1859 = vadd.f32 %v1222, %v1858
    %v1860 = vpop.f32.mrb[0].mxu0
    %v1861 = vadd.f32 %v1226, %v1860
    %v1862 = vpop.f32.mrb[0].mxu0
    %v1863 = vadd.f32 %v1222, %v1862
    %v1864 = vpop.f32.mrb[0].mxu0
    %v1865 = vadd.f32 %v1226, %v1864
    %1866 = vmatprep.mubr.bf16.mxu0 %v1132
    %1867 = vmatmul.mubr.bf16.gmra.mrb[0].mxu0 %v1131
    %v1868 = vpop.f32.mrb[0].mxu0
    %v1869 = vadd.f32 %v1222, %v1868
    %v1870 = vpop.f32.mrb[0].mxu0
    %v1871 = vadd.f32 %v1226, %v1870
    %v1872 = vpop.f32.mrb[0].mxu0
    %v1873 = vadd.f32 %v1222, %v1872
    %v1874 = vpop.f32.mrb[0].mxu0
    %v1875 = vadd.f32 %v1226, %v1874
    %1876 = vmatprep.mubr.bf16.mxu0 %v1134
    %1877 = vmatmul.mubr.bf16.gmra.mrb[0].mxu0 %v1133
    %v1878 = vpop.f32.mrb[0].mxu0
    %v1879 = vadd.f32 %v1222, %v1878
    %v1880 = vpop.f32.mrb[0].mxu0
    %v1881 = vadd.f32 %v1226, %v1880
    %v1882 = vpop.f32.mrb[0].mxu0
    %v1883 = vadd.f32 %v1222, %v1882
    %v1884 = vpop.f32.mrb[0].mxu0
    %v1885 = vadd.f32 %v1226, %v1884
    %1886 = vmatprep.mubr.bf16.mxu0 %v1136
    %1887 = vmatmul.mubr.bf16.gmra.mrb[0].mxu0 %v1135
    %v1888 = vpop.f32.mrb[0].mxu0
    %v1889 = vadd.f32 %v1222, %v1888
    %v1890 = vpop.f32.mrb[0].mxu0
    %v1891 = vadd.f32 %v1226, %v1890
    %v1892 = vpop.f32.mrb[0].mxu0
    %v1893 = vadd.f32 %v1222, %v1892
    %v1894 = vpop.f32.mrb[0].mxu0
    %v1895 = vadd.f32 %v1226, %v1894
    %1896 = vmatprep.mubr.bf16.mxu0 %v1138
    %1897 = vmatmul.mubr.bf16.gmra.mrb[0].mxu0 %v1137
    %v1898 = vpop.f32.mrb[0].mxu0
    %v1899 = vadd.f32 %v1222, %v1898
    %v1900 = vpop.f32.mrb[0].mxu0
    %v1901 = vadd.f32 %v1226, %v1900
    %v1902 = vpop.f32.mrb[0].mxu0
    %v1903 = vadd.f32 %v1222, %v1902
    %v1904 = vpop.f32.mrb[0].mxu0
    %v1905 = vadd.f32 %v1226, %v1904
    %1906 = vmatprep.mubr.bf16.mxu0 %v1140
    %1907 = vmatmul.mubr.bf16.gmra.mrb[0].mxu0 %v1139
    %v1908 = vpop.f32.mrb[0].mxu0
    %v1909 = vadd.f32 %v1222, %v1908
    %v1910 = vpop.f32.mrb[0].mxu0
    %v1911 = vadd.f32 %v1226, %v1910
    %v1912 = vpop.f32.mrb[0].mxu0
    %v1913 = vadd.f32 %v1222, %v1912
    %v1914 = vpop.f32.mrb[0].mxu0
    %v1915 = vadd.f32 %v1226, %v1914
    %1916 = vmatprep.mubr.bf16.mxu0 %v1142
    %1917 = vmatmul.mubr.bf16.gmra.mrb[0].mxu0 %v1141
    %v1918 = vpop.f32.mrb[0].mxu0
    %v1919 = vadd.f32 %v1222, %v1918
    %v1920 = vpop.f32.mrb[0].mxu0
    %v1921 = vadd.f32 %v1226, %v1920
    %v1922 = vpop.f32.mrb[0].mxu0
    %v1923 = vadd.f32 %v1222, %v1922
    %v1924 = vpop.f32.mrb[0].mxu0
    %v1925 = vadd.f32 %v1226, %v1924
    %1926 = vmatprep.mubr.bf16.mxu0 %v1144
    %1927 = vmatmul.mubr.bf16.gmra.mrb[0].mxu0 %v1143
    %v1928 = vpop.f32.mrb[0].mxu0
    %v1929 = vadd.f32 %v1222, %v1928
    %v1930 = vpop.f32.mrb[0].mxu0
    %v1931 = vadd.f32 %v1226, %v1930
    %v1932 = vpop.f32.mrb[0].mxu0
    %v1933 = vadd.f32 %v1222, %v1932
    %v1934 = vpop.f32.mrb[0].mxu0
    %v1935 = vadd.f32 %v1226, %v1934
    %1936 = vdwg.mxu0
    %v1937 = vmax.f32 %v1586, 0.0
    %v1938 = vmax.f32 %v1588, 0.0
    %v1939 = vmax.f32 %v1779, 0.0
    %v1940 = vmax.f32 %v1781, 0.0
    %v1941 = vmax.f32 %v1590, 0.0
    %v1942 = vmax.f32 %v1592, 0.0
    %v1943 = vmax.f32 %v1783, 0.0
    %v1944 = vmax.f32 %v1785, 0.0
    %v1945 = vmax.f32 %v1596, 0.0
    %v1946 = vmax.f32 %v1598, 0.0
    %v1947 = vmax.f32 %v1789, 0.0
    %v1948 = vmax.f32 %v1791, 0.0
    %v1949 = vmax.f32 %v1600, 0.0
    %v1950 = vmax.f32 %v1602, 0.0
    %v1951 = vmax.f32 %v1793, 0.0
    %v1952 = vmax.f32 %v1795, 0.0
    %v1953 = vmax.f32 %v1606, 0.0
    %v1954 = vmax.f32 %v1608, 0.0
    %v1955 = vmax.f32 %v1799, 0.0
    %v1956 = vmax.f32 %v1801, 0.0
    %v1957 = vmax.f32 %v1610, 0.0
    %v1958 = vmax.f32 %v1612, 0.0
    %v1959 = vmax.f32 %v1803, 0.0
    %v1960 = vmax.f32 %v1805, 0.0
    %v1961 = vmax.f32 %v1616, 0.0
    %v1962 = vmax.f32 %v1618, 0.0
    %v1963 = vmax.f32 %v1809, 0.0
    %v1964 = vmax.f32 %v1811, 0.0
    %v1965 = vmax.f32 %v1620, 0.0
    %v1966 = vmax.f32 %v1622, 0.0
    %v1967 = vmax.f32 %v1813, 0.0
    %v1968 = vmax.f32 %v1815, 0.0
    %v1969 = vmax.f32 %v1626, 0.0
    %v1970 = vmax.f32 %v1628, 0.0
    %v1971 = vmax.f32 %v1819, 0.0
    %v1972 = vmax.f32 %v1821, 0.0
    %v1973 = vmax.f32 %v1630, 0.0
    %v1974 = vmax.f32 %v1632, 0.0
    %v1975 = vmax.f32 %v1823, 0.0
    %v1976 = vmax.f32 %v1825, 0.0
    %v1977 = vmax.f32 %v1636, 0.0
    %v1978 = vmax.f32 %v1638, 0.0
    %v1979 = vmax.f32 %v1829, 0.0
    %v1980 = vmax.f32 %v1831, 0.0
    %v1981 = vmax.f32 %v1640, 0.0
    %v1982 = vmax.f32 %v1642, 0.0
    %v1983 = vmax.f32 %v1833, 0.0
    %v1984 = vmax.f32 %v1835, 0.0
    %v1985 = vmax.f32 %v1646, 0.0
    %v1986 = vmax.f32 %v1648, 0.0
    %v1987 = vmax.f32 %v1839, 0.0
    %v1988 = vmax.f32 %v1841, 0.0
    %v1989 = vmax.f32 %v1650, 0.0
    %v1990 = vmax.f32 %v1652, 0.0
    %v1991 = vmax.f32 %v1843, 0.0
    %v1992 = vmax.f32 %v1845, 0.0
    %v1993 = vmax.f32 %v1656, 0.0
    %v1994 = vmax.f32 %v1658, 0.0
    %v1995 = vmax.f32 %v1849, 0.0
    %v1996 = vmax.f32 %v1851, 0.0
    %v1997 = vmax.f32 %v1660, 0.0
    %v1998 = vmax.f32 %v1662, 0.0
    %v1999 = vmax.f32 %v1853, 0.0
    %v2000 = vmax.f32 %v1855, 0.0
    %v2001 = vmax.f32 %v1666, 0.0
    %v2002 = vmax.f32 %v1668, 0.0
    %v2003 = vmax.f32 %v1859, 0.0
    %v2004 = vmax.f32 %v1861, 0.0
    %v2005 = vmax.f32 %v1670, 0.0
    %v2006 = vmax.f32 %v1672, 0.0
    %v2007 = vmax.f32 %v1863, 0.0
    %v2008 = vmax.f32 %v1865, 0.0
    %v2009 = vmax.f32 %v1676, 0.0
    %v2010 = vmax.f32 %v1678, 0.0
    %v2011 = vmax.f32 %v1869, 0.0
    %v2012 = vmax.f32 %v1871, 0.0
    %v2013 = vmax.f32 %v1680, 0.0
    %v2014 = vmax.f32 %v1682, 0.0
    %v2015 = vmax.f32 %v1873, 0.0
    %v2016 = vmax.f32 %v1875, 0.0
    %v2017 = vmax.f32 %v1686, 0.0
    %v2018 = vmax.f32 %v1688, 0.0
    %v2019 = vmax.f32 %v1879, 0.0
    %v2020 = vmax.f32 %v1881, 0.0
    %v2021 = vmax.f32 %v1690, 0.0
    %v2022 = vmax.f32 %v1692, 0.0
    %v2023 = vmax.f32 %v1883, 0.0
    %v2024 = vmax.f32 %v1885, 0.0
    %v2025 = vmax.f32 %v1696, 0.0
    %v2026 = vmax.f32 %v1698, 0.0
    %v2027 = vmax.f32 %v1889, 0.0
    %v2028 = vmax.f32 %v1891, 0.0
    %v2029 = vmax.f32 %v1700, 0.0
    %v2030 = vmax.f32 %v1702, 0.0
    %v2031 = vmax.f32 %v1893, 0.0
    %v2032 = vmax.f32 %v1895, 0.0
    %v2033 = vmax.f32 %v1706, 0.0
    %v2034 = vmax.f32 %v1708, 0.0
    %v2035 = vmax.f32 %v1899, 0.0
    %v2036 = vmax.f32 %v1901, 0.0
    %v2037 = vmax.f32 %v1710, 0.0
    %v2038 = vmax.f32 %v1712, 0.0
    %v2039 = vmax.f32 %v1903, 0.0
    %v2040 = vmax.f32 %v1905, 0.0
    %v2041 = vmax.f32 %v1716, 0.0
    %v2042 = vmax.f32 %v1718, 0.0
    %v2043 = vmax.f32 %v1909, 0.0
    %v2044 = vmax.f32 %v1911, 0.0
    %v2045 = vmax.f32 %v1720, 0.0
    %v2046 = vmax.f32 %v1722, 0.0
    %v2047 = vmax.f32 %v1913, 0.0
    %v2048 = vmax.f32 %v1915, 0.0
    %v2049 = vmax.f32 %v1726, 0.0
    %v2050 = vmax.f32 %v1728, 0.0
    %v2051 = vmax.f32 %v1919, 0.0
    %v2052 = vmax.f32 %v1921, 0.0
    %v2053 = vmax.f32 %v1730, 0.0
    %v2054 = vmax.f32 %v1732, 0.0
    %v2055 = vmax.f32 %v1923, 0.0
    %v2056 = vmax.f32 %v1925, 0.0
    %v2057 = vmax.f32 %v1736, 0.0
    %v2058 = vmax.f32 %v1738, 0.0
    %v2059 = vmax.f32 %v1929, 0.0
    %v2060 = vmax.f32 %v1931, 0.0
    %v2061 = vmax.f32 %v1740, 0.0
    %v2062 = vmax.f32 %v1742, 0.0
    %v2063 = vmax.f32 %v1933, 0.0
    %v2064 = vmax.f32 %v1935, 0.0
    %v2065 = vpack.c.bf16 %v1941, %v1937
    %v2066 = vpack.c.bf16 %v1942, %v1938
    %v2067 = vpack.c.bf16 %v1943, %v1939
    %v2068 = vpack.c.bf16 %v1944, %v1940
    %v2069 = vpack.c.bf16 %v1949, %v1945
    %v2070 = vpack.c.bf16 %v1950, %v1946
    %v2071 = vpack.c.bf16 %v1951, %v1947
    %v2072 = vpack.c.bf16 %v1952, %v1948
    %v2073 = vpack.c.bf16 %v1957, %v1953
    %v2074 = vpack.c.bf16 %v1958, %v1954
    %v2075 = vpack.c.bf16 %v1959, %v1955
    %v2076 = vpack.c.bf16 %v1960, %v1956
    %v2077 = vpack.c.bf16 %v1965, %v1961
    %v2078 = vpack.c.bf16 %v1966, %v1962
    %v2079 = vpack.c.bf16 %v1967, %v1963
    %v2080 = vpack.c.bf16 %v1968, %v1964
    %v2081 = vpack.c.bf16 %v1973, %v1969
    %v2082 = vpack.c.bf16 %v1974, %v1970
    %v2083 = vpack.c.bf16 %v1975, %v1971
    %v2084 = vpack.c.bf16 %v1976, %v1972
    %v2085 = vpack.c.bf16 %v1981, %v1977
    %v2086 = vpack.c.bf16 %v1982, %v1978
    %v2087 = vpack.c.bf16 %v1983, %v1979
    %v2088 = vpack.c.bf16 %v1984, %v1980
    %v2089 = vpack.c.bf16 %v1989, %v1985
    %v2090 = vpack.c.bf16 %v1990, %v1986
    %v2091 = vpack.c.bf16 %v1991, %v1987
    %v2092 = vpack.c.bf16 %v1992, %v1988
    %v2093 = vpack.c.bf16 %v1997, %v1993
    %v2094 = vpack.c.bf16 %v1998, %v1994
    %v2095 = vpack.c.bf16 %v1999, %v1995
    %v2096 = vpack.c.bf16 %v2000, %v1996
    %v2097 = vpack.c.bf16 %v2005, %v2001
    %v2098 = vpack.c.bf16 %v2006, %v2002
    %v2099 = vpack.c.bf16 %v2007, %v2003
    %v2100 = vpack.c.bf16 %v2008, %v2004
    %v2101 = vpack.c.bf16 %v2013, %v2009
    %v2102 = vpack.c.bf16 %v2014, %v2010
    %v2103 = vpack.c.bf16 %v2015, %v2011
    %v2104 = vpack.c.bf16 %v2016, %v2012
    %v2105 = vpack.c.bf16 %v2021, %v2017
    %v2106 = vpack.c.bf16 %v2022, %v2018
    %v2107 = vpack.c.bf16 %v2023, %v2019
    %v2108 = vpack.c.bf16 %v2024, %v2020
    %v2109 = vpack.c.bf16 %v2029, %v2025
    %v2110 = vpack.c.bf16 %v2030, %v2026
    %v2111 = vpack.c.bf16 %v2031, %v2027
    %v2112 = vpack.c.bf16 %v2032, %v2028
    %v2113 = vpack.c.bf16 %v2037, %v2033
    %v2114 = vpack.c.bf16 %v2038, %v2034
    %v2115 = vpack.c.bf16 %v2039, %v2035
    %v2116 = vpack.c.bf16 %v2040, %v2036
    %v2117 = vpack.c.bf16 %v2045, %v2041
    %v2118 = vpack.c.bf16 %v2046, %v2042
    %v2119 = vpack.c.bf16 %v2047, %v2043
    %v2120 = vpack.c.bf16 %v2048, %v2044
    %v2121 = vpack.c.bf16 %v2053, %v2049
    %v2122 = vpack.c.bf16 %v2054, %v2050
    %v2123 = vpack.c.bf16 %v2055, %v2051
    %v2124 = vpack.c.bf16 %v2056, %v2052
    %v2125 = vpack.c.bf16 %v2061, %v2057
    %v2126 = vpack.c.bf16 %v2062, %v2058
    %v2127 = vpack.c.bf16 %v2063, %v2059
    %v2128 = vpack.c.bf16 %v2064, %v2060
    %v2129 = vld [vmem:[#allocation9] sm:$0xff]
    %v2130 = vld [vmem:[#allocation9 + $0x8] sm:$0xff]
    %v2131 = vld [vmem:[#allocation9 + $0x10] sm:$0xff]
    %v2132 = vld [vmem:[#allocation9 + $0x18] sm:$0xff]
    %v2133 = vld [vmem:[#allocation9 + $0x20] sm:$0xff]
    %v2134 = vld [vmem:[#allocation9 + $0x28] sm:$0xff]
    %v2135 = vld [vmem:[#allocation9 + $0x30] sm:$0xff]
    %v2136 = vld [vmem:[#allocation9 + $0x38] sm:$0xff]
    %v2137 = vld [vmem:[#allocation9 + $0x40] sm:$0xff]
    %v2138 = vld [vmem:[#allocation9 + $0x48] sm:$0xff]
    %v2139 = vld [vmem:[#allocation9 + $0x50] sm:$0xff]
    %v2140 = vld [vmem:[#allocation9 + $0x58] sm:$0xff]
    %v2141 = vld [vmem:[#allocation9 + $0x60] sm:$0xff]
    %v2142 = vld [vmem:[#allocation9 + $0x68] sm:$0xff]
    %v2143 = vld [vmem:[#allocation9 + $0x70] sm:$0xff]
    %v2144 = vld [vmem:[#allocation9 + $0x78] sm:$0xff]
    %v2145 = vld [vmem:[#allocation9 + $0x80] sm:$0xff]
    %v2146 = vld [vmem:[#allocation9 + $0x88] sm:$0xff]
    %v2147 = vld [vmem:[#allocation9 + $0x90] sm:$0xff]
    %v2148 = vld [vmem:[#allocation9 + $0x98] sm:$0xff]
    %v2149 = vld [vmem:[#allocation9 + $0xa0] sm:$0xff]
    %v2150 = vld [vmem:[#allocation9 + $0xa8] sm:$0xff]
    %v2151 = vld [vmem:[#allocation9 + $0xb0] sm:$0xff]
    %v2152 = vld [vmem:[#allocation9 + $0xb8] sm:$0xff]
    %v2153 = vld [vmem:[#allocation9 + $0xc0] sm:$0xff]
    %v2154 = vld [vmem:[#allocation9 + $0xc8] sm:$0xff]
    %v2155 = vld [vmem:[#allocation9 + $0xd0] sm:$0xff]
    %v2156 = vld [vmem:[#allocation9 + $0xd8] sm:$0xff]
    %v2157 = vld [vmem:[#allocation9 + $0xe0] sm:$0xff]
    %v2158 = vld [vmem:[#allocation9 + $0xe8] sm:$0xff]
    %v2159 = vld [vmem:[#allocation9 + $0xf0] sm:$0xff]
    %v2160 = vld [vmem:[#allocation9 + $0xf8] sm:$0xff]
    %v2161 = vld [vmem:[%s8] sm:$0x3]
    %v2163 = vlaneseq
    %v2164 = vshrl.u32 %v2163, 7
    %v2165 = vsub.s32 0, %v2164
    %v2166 = vrot.slane %v2161, %v2165
    %v2167 = vlaneseq
    %v2168 = vshrl.u32 %v2167, 7
    %v2169 = vsub.s32 1, %v2168
    %v2170 = vrot.slane %v2161, %v2169
    %v2205 = vunpack.c.l.b16 %v2129
    %v2206 = vunpack.c.h.b16 %v2129
    %v2207 = vunpack.c.l.b16 %v2130
    %v2208 = vunpack.c.h.b16 %v2130
    %v2209 = vunpack.c.l.b16 %v2131
    %v2210 = vunpack.c.h.b16 %v2131
    %v2211 = vunpack.c.l.b16 %v2132
    %v2212 = vunpack.c.h.b16 %v2132
    %v2213 = vunpack.c.l.b16 %v2133
    %v2214 = vunpack.c.h.b16 %v2133
    %v2215 = vunpack.c.l.b16 %v2134
    %v2216 = vunpack.c.h.b16 %v2134
    %v2217 = vunpack.c.l.b16 %v2135
    %v2218 = vunpack.c.h.b16 %v2135
    %v2219 = vunpack.c.l.b16 %v2136
    %v2220 = vunpack.c.h.b16 %v2136
    %v2221 = vunpack.c.l.b16 %v2137
    %v2222 = vunpack.c.h.b16 %v2137
    %v2223 = vunpack.c.l.b16 %v2138
    %v2224 = vunpack.c.h.b16 %v2138
    %v2225 = vunpack.c.l.b16 %v2139
    %v2226 = vunpack.c.h.b16 %v2139
    %v2227 = vunpack.c.l.b16 %v2140
    %v2228 = vunpack.c.h.b16 %v2140
    %v2229 = vunpack.c.l.b16 %v2141
    %v2230 = vunpack.c.h.b16 %v2141
    %v2231 = vunpack.c.l.b16 %v2142
    %v2232 = vunpack.c.h.b16 %v2142
    %v2233 = vunpack.c.l.b16 %v2143
    %v2234 = vunpack.c.h.b16 %v2143
    %v2235 = vunpack.c.l.b16 %v2144
    %v2236 = vunpack.c.h.b16 %v2144
    %v2237 = vunpack.c.l.b16 %v2145
    %v2238 = vunpack.c.h.b16 %v2145
    %v2239 = vunpack.c.l.b16 %v2146
    %v2240 = vunpack.c.h.b16 %v2146
    %v2241 = vunpack.c.l.b16 %v2147
    %v2242 = vunpack.c.h.b16 %v2147
    %v2243 = vunpack.c.l.b16 %v2148
    %v2244 = vunpack.c.h.b16 %v2148
    %v2245 = vunpack.c.l.b16 %v2149
    %v2246 = vunpack.c.h.b16 %v2149
    %v2247 = vunpack.c.l.b16 %v2150
    %v2248 = vunpack.c.h.b16 %v2150
    %v2249 = vunpack.c.l.b16 %v2151
    %v2250 = vunpack.c.h.b16 %v2151
    %v2251 = vunpack.c.l.b16 %v2152
    %v2252 = vunpack.c.h.b16 %v2152
    %v2253 = vunpack.c.l.b16 %v2153
    %v2254 = vunpack.c.h.b16 %v2153
    %v2255 = vunpack.c.l.b16 %v2154
    %v2256 = vunpack.c.h.b16 %v2154
    %v2257 = vunpack.c.l.b16 %v2155
    %v2258 = vunpack.c.h.b16 %v2155
    %v2259 = vunpack.c.l.b16 %v2156
    %v2260 = vunpack.c.h.b16 %v2156
    %v2261 = vunpack.c.l.b16 %v2157
    %v2262 = vunpack.c.h.b16 %v2157
    %v2263 = vunpack.c.l.b16 %v2158
    %v2264 = vunpack.c.h.b16 %v2158
    %v2265 = vunpack.c.l.b16 %v2159
    %v2266 = vunpack.c.h.b16 %v2159
    %v2267 = vunpack.c.l.b16 %v2160
    %v2268 = vunpack.c.h.b16 %v2160
    %v2269 = vpack.c.b16 %v2207, %v2205
    %v2270 = vpack.c.b16 %v2208, %v2206
    %v2271 = vpack.c.b16 %v2211, %v2209
    %v2272 = vpack.c.b16 %v2212, %v2210
    %v2273 = vpack.c.b16 %v2215, %v2213
    %v2274 = vpack.c.b16 %v2216, %v2214
    %v2275 = vpack.c.b16 %v2219, %v2217
    %v2276 = vpack.c.b16 %v2220, %v2218
    %v2277 = vpack.c.b16 %v2223, %v2221
    %v2278 = vpack.c.b16 %v2224, %v2222
    %v2279 = vpack.c.b16 %v2227, %v2225
    %v2280 = vpack.c.b16 %v2228, %v2226
    %v2281 = vpack.c.b16 %v2231, %v2229
    %v2282 = vpack.c.b16 %v2232, %v2230
    %v2283 = vpack.c.b16 %v2235, %v2233
    %v2284 = vpack.c.b16 %v2236, %v2234
    %v2285 = vpack.c.b16 %v2239, %v2237
    %v2286 = vpack.c.b16 %v2240, %v2238
    %v2287 = vpack.c.b16 %v2243, %v2241
    %v2288 = vpack.c.b16 %v2244, %v2242
    %v2289 = vpack.c.b16 %v2247, %v2245
    %v2290 = vpack.c.b16 %v2248, %v2246
    %v2291 = vpack.c.b16 %v2251, %v2249
    %v2292 = vpack.c.b16 %v2252, %v2250
    %v2293 = vpack.c.b16 %v2255, %v2253
    %v2294 = vpack.c.b16 %v2256, %v2254
    %v2295 = vpack.c.b16 %v2259, %v2257
    %v2296 = vpack.c.b16 %v2260, %v2258
    %v2297 = vpack.c.b16 %v2263, %v2261
    %v2298 = vpack.c.b16 %v2264, %v2262
    %v2299 = vpack.c.b16 %v2267, %v2265
    %v2300 = vpack.c.b16 %v2268, %v2266
    %2333 = vmatprep.subr.bf16.mxu0 %v2270
    %2334 = vmatpush1.bf16.msra.mxu0 %v2269
    %2335 = vmatprep.subr.bf16.mxu0 %v2272
    %2336 = vmatpush1.bf16.msra.mxu0 %v2271
    %2337 = vmatprep.subr.bf16.mxu0 %v2274
    %2338 = vmatpush1.bf16.msra.mxu0 %v2273
    %2339 = vmatprep.subr.bf16.mxu0 %v2276
    %2340 = vmatpush1.bf16.msra.mxu0 %v2275
    %2341 = vmatprep.subr.bf16.mxu0 %v2278
    %2342 = vmatpush1.bf16.msra.mxu0 %v2277
    %2343 = vmatprep.subr.bf16.mxu0 %v2280
    %2344 = vmatpush1.bf16.msra.mxu0 %v2279
    %2345 = vmatprep.subr.bf16.mxu0 %v2282
    %2346 = vmatpush1.bf16.msra.mxu0 %v2281
    %2347 = vmatprep.subr.bf16.mxu0 %v2284
    %2348 = vmatpush1.bf16.msra.mxu0 %v2283
    %2349 = vmatprep.subr.bf16.mxu0 %v2286
    %2350 = vmatpush1.bf16.msra.mxu0 %v2285
    %2351 = vmatprep.subr.bf16.mxu0 %v2288
    %2352 = vmatpush1.bf16.msra.mxu0 %v2287
    %2353 = vmatprep.subr.bf16.mxu0 %v2290
    %2354 = vmatpush1.bf16.msra.mxu0 %v2289
    %2355 = vmatprep.subr.bf16.mxu0 %v2292
    %2356 = vmatpush1.bf16.msra.mxu0 %v2291
    %2357 = vmatprep.subr.bf16.mxu0 %v2294
    %2358 = vmatpush1.bf16.msra.mxu0 %v2293
    %2359 = vmatprep.subr.bf16.mxu0 %v2296
    %2360 = vmatpush1.bf16.msra.mxu0 %v2295
    %2361 = vmatprep.subr.bf16.mxu0 %v2298
    %2362 = vmatpush1.bf16.msra.mxu0 %v2297
    %2363 = vmatprep.subr.bf16.mxu0 %v2300
    %2364 = vmatpush1.bf16.msra.mxu0 %v2299
    %2365 = vmatprep.mubr.bf16.mxu0 %v2066
    %2366 = vmatmul.mubr.bf16.gmra.mrb[0].mxu0 %v2065
    %v2367 = vpop.f32.mrb[0].mxu0
    %v2368 = vadd.f32 %v2166, %v2367
    %v2369 = vpop.f32.mrb[0].mxu0
    %v2370 = vadd.f32 %v2170, %v2369
    %v2371 = vpop.f32.mrb[0].mxu0
    %v2372 = vadd.f32 %v2166, %v2371
    %v2373 = vpop.f32.mrb[0].mxu0
    %v2374 = vadd.f32 %v2170, %v2373
    %2375 = vmatprep.mubr.bf16.mxu0 %v2070
    %2376 = vmatmul.mubr.bf16.gmra.mrb[0].mxu0 %v2069
    %v2377 = vpop.f32.mrb[0].mxu0
    %v2378 = vadd.f32 %v2166, %v2377
    %v2379 = vpop.f32.mrb[0].mxu0
    %v2380 = vadd.f32 %v2170, %v2379
    %v2381 = vpop.f32.mrb[0].mxu0
    %v2382 = vadd.f32 %v2166, %v2381
    %v2383 = vpop.f32.mrb[0].mxu0
    %v2384 = vadd.f32 %v2170, %v2383
    %2385 = vmatprep.mubr.bf16.mxu0 %v2074
    %2386 = vmatmul.mubr.bf16.gmra.mrb[0].mxu0 %v2073
    %v2387 = vpop.f32.mrb[0].mxu0
    %v2388 = vadd.f32 %v2166, %v2387
    %v2389 = vpop.f32.mrb[0].mxu0
    %v2390 = vadd.f32 %v2170, %v2389
    %v2391 = vpop.f32.mrb[0].mxu0
    %v2392 = vadd.f32 %v2166, %v2391
    %v2393 = vpop.f32.mrb[0].mxu0
    %v2394 = vadd.f32 %v2170, %v2393
    %2395 = vmatprep.mubr.bf16.mxu0 %v2078
    %2396 = vmatmul.mubr.bf16.gmra.mrb[0].mxu0 %v2077
    %v2397 = vpop.f32.mrb[0].mxu0
    %v2398 = vadd.f32 %v2166, %v2397
    %v2399 = vpop.f32.mrb[0].mxu0
    %v2400 = vadd.f32 %v2170, %v2399
    %v2401 = vpop.f32.mrb[0].mxu0
    %v2402 = vadd.f32 %v2166, %v2401
    %v2403 = vpop.f32.mrb[0].mxu0
    %v2404 = vadd.f32 %v2170, %v2403
    %2405 = vmatprep.mubr.bf16.mxu0 %v2082
    %2406 = vmatmul.mubr.bf16.gmra.mrb[0].mxu0 %v2081
    %v2407 = vpop.f32.mrb[0].mxu0
    %v2408 = vadd.f32 %v2166, %v2407
    %v2409 = vpop.f32.mrb[0].mxu0
    %v2410 = vadd.f32 %v2170, %v2409
    %v2411 = vpop.f32.mrb[0].mxu0
    %v2412 = vadd.f32 %v2166, %v2411
    %v2413 = vpop.f32.mrb[0].mxu0
    %v2414 = vadd.f32 %v2170, %v2413
    %2415 = vmatprep.mubr.bf16.mxu0 %v2086
    %2416 = vmatmul.mubr.bf16.gmra.mrb[0].mxu0 %v2085
    %v2417 = vpop.f32.mrb[0].mxu0
    %v2418 = vadd.f32 %v2166, %v2417
    %v2419 = vpop.f32.mrb[0].mxu0
    %v2420 = vadd.f32 %v2170, %v2419
    %v2421 = vpop.f32.mrb[0].mxu0
    %v2422 = vadd.f32 %v2166, %v2421
    %v2423 = vpop.f32.mrb[0].mxu0
    %v2424 = vadd.f32 %v2170, %v2423
    %2425 = vmatprep.mubr.bf16.mxu0 %v2090
    %2426 = vmatmul.mubr.bf16.gmra.mrb[0].mxu0 %v2089
    %v2427 = vpop.f32.mrb[0].mxu0
    %v2428 = vadd.f32 %v2166, %v2427
    %v2429 = vpop.f32.mrb[0].mxu0
    %v2430 = vadd.f32 %v2170, %v2429
    %v2431 = vpop.f32.mrb[0].mxu0
    %v2432 = vadd.f32 %v2166, %v2431
    %v2433 = vpop.f32.mrb[0].mxu0
    %v2434 = vadd.f32 %v2170, %v2433
    %2435 = vmatprep.mubr.bf16.mxu0 %v2094
    %2436 = vmatmul.mubr.bf16.gmra.mrb[0].mxu0 %v2093
    %v2437 = vpop.f32.mrb[0].mxu0
    %v2438 = vadd.f32 %v2166, %v2437
    %v2439 = vpop.f32.mrb[0].mxu0
    %v2440 = vadd.f32 %v2170, %v2439
    %v2441 = vpop.f32.mrb[0].mxu0
    %v2442 = vadd.f32 %v2166, %v2441
    %v2443 = vpop.f32.mrb[0].mxu0
    %v2444 = vadd.f32 %v2170, %v2443
    %2445 = vmatprep.mubr.bf16.mxu0 %v2098
    %2446 = vmatmul.mubr.bf16.gmra.mrb[0].mxu0 %v2097
    %v2447 = vpop.f32.mrb[0].mxu0
    %v2448 = vadd.f32 %v2166, %v2447
    %v2449 = vpop.f32.mrb[0].mxu0
    %v2450 = vadd.f32 %v2170, %v2449
    %v2451 = vpop.f32.mrb[0].mxu0
    %v2452 = vadd.f32 %v2166, %v2451
    %v2453 = vpop.f32.mrb[0].mxu0
    %v2454 = vadd.f32 %v2170, %v2453
    %2455 = vmatprep.mubr.bf16.mxu0 %v2102
    %2456 = vmatmul.mubr.bf16.gmra.mrb[0].mxu0 %v2101
    %v2457 = vpop.f32.mrb[0].mxu0
    %v2458 = vadd.f32 %v2166, %v2457
    %v2459 = vpop.f32.mrb[0].mxu0
    %v2460 = vadd.f32 %v2170, %v2459
    %v2461 = vpop.f32.mrb[0].mxu0
    %v2462 = vadd.f32 %v2166, %v2461
    %v2463 = vpop.f32.mrb[0].mxu0
    %v2464 = vadd.f32 %v2170, %v2463
    %2465 = vmatprep.mubr.bf16.mxu0 %v2106
    %2466 = vmatmul.mubr.bf16.gmra.mrb[0].mxu0 %v2105
    %v2467 = vpop.f32.mrb[0].mxu0
    %v2468 = vadd.f32 %v2166, %v2467
    %v2469 = vpop.f32.mrb[0].mxu0
    %v2470 = vadd.f32 %v2170, %v2469
    %v2471 = vpop.f32.mrb[0].mxu0
    %v2472 = vadd.f32 %v2166, %v2471
    %v2473 = vpop.f32.mrb[0].mxu0
    %v2474 = vadd.f32 %v2170, %v2473
    %2475 = vmatprep.mubr.bf16.mxu0 %v2110
    %2476 = vmatmul.mubr.bf16.gmra.mrb[0].mxu0 %v2109
    %v2477 = vpop.f32.mrb[0].mxu0
    %v2478 = vadd.f32 %v2166, %v2477
    %v2479 = vpop.f32.mrb[0].mxu0
    %v2480 = vadd.f32 %v2170, %v2479
    %v2481 = vpop.f32.mrb[0].mxu0
    %v2482 = vadd.f32 %v2166, %v2481
    %v2483 = vpop.f32.mrb[0].mxu0
    %v2484 = vadd.f32 %v2170, %v2483
    %2485 = vmatprep.mubr.bf16.mxu0 %v2114
    %2486 = vmatmul.mubr.bf16.gmra.mrb[0].mxu0 %v2113
    %v2487 = vpop.f32.mrb[0].mxu0
    %v2488 = vadd.f32 %v2166, %v2487
    %v2489 = vpop.f32.mrb[0].mxu0
    %v2490 = vadd.f32 %v2170, %v2489
    %v2491 = vpop.f32.mrb[0].mxu0
    %v2492 = vadd.f32 %v2166, %v2491
    %v2493 = vpop.f32.mrb[0].mxu0
    %v2494 = vadd.f32 %v2170, %v2493
    %2495 = vmatprep.mubr.bf16.mxu0 %v2118
    %2496 = vmatmul.mubr.bf16.gmra.mrb[0].mxu0 %v2117
    %v2497 = vpop.f32.mrb[0].mxu0
    %v2498 = vadd.f32 %v2166, %v2497
    %v2499 = vpop.f32.mrb[0].mxu0
    %v2500 = vadd.f32 %v2170, %v2499
    %v2501 = vpop.f32.mrb[0].mxu0
    %v2502 = vadd.f32 %v2166, %v2501
    %v2503 = vpop.f32.mrb[0].mxu0
    %v2504 = vadd.f32 %v2170, %v2503
    %2505 = vmatprep.mubr.bf16.mxu0 %v2122
    %2506 = vmatmul.mubr.bf16.gmra.mrb[0].mxu0 %v2121
    %v2507 = vpop.f32.mrb[0].mxu0
    %v2508 = vadd.f32 %v2166, %v2507
    %v2509 = vpop.f32.mrb[0].mxu0
    %v2510 = vadd.f32 %v2170, %v2509
    %v2511 = vpop.f32.mrb[0].mxu0
    %v2512 = vadd.f32 %v2166, %v2511
    %v2513 = vpop.f32.mrb[0].mxu0
    %v2514 = vadd.f32 %v2170, %v2513
    %2515 = vmatprep.mubr.bf16.mxu0 %v2126
    %2516 = vmatmul.mubr.bf16.gmra.mrb[0].mxu0 %v2125
    %v2517 = vpop.f32.mrb[0].mxu0
    %v2518 = vadd.f32 %v2166, %v2517
    %v2519 = vpop.f32.mrb[0].mxu0
    %v2520 = vadd.f32 %v2170, %v2519
    %v2521 = vpop.f32.mrb[0].mxu0
    %v2522 = vadd.f32 %v2166, %v2521
    %v2523 = vpop.f32.mrb[0].mxu0
    %v2524 = vadd.f32 %v2170, %v2523
    %2525 = vdwg.mxu0
    %v2526 = vmax.f32 %v2368, 0.0
    %v2527 = vmax.f32 %v2370, 0.0
    %v2528 = vmax.f32 %v2372, 0.0
    %v2529 = vmax.f32 %v2374, 0.0
    %v2530 = vmax.f32 %v2378, 0.0
    %v2531 = vmax.f32 %v2380, 0.0
    %v2532 = vmax.f32 %v2382, 0.0
    %v2533 = vmax.f32 %v2384, 0.0
    %v2534 = vmax.f32 %v2388, 0.0
    %v2535 = vmax.f32 %v2390, 0.0
    %v2536 = vmax.f32 %v2392, 0.0
    %v2537 = vmax.f32 %v2394, 0.0
    %v2538 = vmax.f32 %v2398, 0.0
    %v2539 = vmax.f32 %v2400, 0.0
    %v2540 = vmax.f32 %v2402, 0.0
    %v2541 = vmax.f32 %v2404, 0.0
    %v2542 = vmax.f32 %v2408, 0.0
    %v2543 = vmax.f32 %v2410, 0.0
    %v2544 = vmax.f32 %v2412, 0.0
    %v2545 = vmax.f32 %v2414, 0.0
    %v2546 = vmax.f32 %v2418, 0.0
    %v2547 = vmax.f32 %v2420, 0.0
    %v2548 = vmax.f32 %v2422, 0.0
    %v2549 = vmax.f32 %v2424, 0.0
    %v2550 = vmax.f32 %v2428, 0.0
    %v2551 = vmax.f32 %v2430, 0.0
    %v2552 = vmax.f32 %v2432, 0.0
    %v2553 = vmax.f32 %v2434, 0.0
    %v2554 = vmax.f32 %v2438, 0.0
    %v2555 = vmax.f32 %v2440, 0.0
    %v2556 = vmax.f32 %v2442, 0.0
    %v2557 = vmax.f32 %v2444, 0.0
    %v2558 = vmax.f32 %v2448, 0.0
    %v2559 = vmax.f32 %v2450, 0.0
    %v2560 = vmax.f32 %v2452, 0.0
    %v2561 = vmax.f32 %v2454, 0.0
    %v2562 = vmax.f32 %v2458, 0.0
    %v2563 = vmax.f32 %v2460, 0.0
    %v2564 = vmax.f32 %v2462, 0.0
    %v2565 = vmax.f32 %v2464, 0.0
    %v2566 = vmax.f32 %v2468, 0.0
    %v2567 = vmax.f32 %v2470, 0.0
    %v2568 = vmax.f32 %v2472, 0.0
    %v2569 = vmax.f32 %v2474, 0.0
    %v2570 = vmax.f32 %v2478, 0.0
    %v2571 = vmax.f32 %v2480, 0.0
    %v2572 = vmax.f32 %v2482, 0.0
    %v2573 = vmax.f32 %v2484, 0.0
    %v2574 = vmax.f32 %v2488, 0.0
    %v2575 = vmax.f32 %v2490, 0.0
    %v2576 = vmax.f32 %v2492, 0.0
    %v2577 = vmax.f32 %v2494, 0.0
    %v2578 = vmax.f32 %v2498, 0.0
    %v2579 = vmax.f32 %v2500, 0.0
    %v2580 = vmax.f32 %v2502, 0.0
    %v2581 = vmax.f32 %v2504, 0.0
    %v2582 = vmax.f32 %v2508, 0.0
    %v2583 = vmax.f32 %v2510, 0.0
    %v2584 = vmax.f32 %v2512, 0.0
    %v2585 = vmax.f32 %v2514, 0.0
    %v2586 = vmax.f32 %v2518, 0.0
    %v2587 = vmax.f32 %v2520, 0.0
    %v2588 = vmax.f32 %v2522, 0.0
    %v2589 = vmax.f32 %v2524, 0.0
    %v2590 = vld [vmem:[#allocation10] sm:$0xff]
    %v2591 = vld [vmem:[#allocation10 + $0x8] sm:$0xff]
    %v2592 = vld [vmem:[#allocation10 + $0x10] sm:$0xff]
    %v2593 = vld [vmem:[#allocation10 + $0x18] sm:$0xff]
    %v2594 = vld [vmem:[#allocation10 + $0x20] sm:$0xff]
    %v2595 = vld [vmem:[#allocation10 + $0x28] sm:$0xff]
    %v2596 = vld [vmem:[#allocation10 + $0x30] sm:$0xff]
    %v2597 = vld [vmem:[#allocation10 + $0x38] sm:$0xff]
    %v2598 = vld [vmem:[#allocation10 + $0x40] sm:$0xff]
    %v2599 = vld [vmem:[#allocation10 + $0x48] sm:$0xff]
    %v2600 = vld [vmem:[#allocation10 + $0x50] sm:$0xff]
    %v2601 = vld [vmem:[#allocation10 + $0x58] sm:$0xff]
    %v2602 = vld [vmem:[#allocation10 + $0x60] sm:$0xff]
    %v2603 = vld [vmem:[#allocation10 + $0x68] sm:$0xff]
    %v2604 = vld [vmem:[#allocation10 + $0x70] sm:$0xff]
    %v2605 = vld [vmem:[#allocation10 + $0x78] sm:$0xff]
    %v2606 = vld [vmem:[#allocation10 + $0x80] sm:$0xff]
    %v2607 = vld [vmem:[#allocation10 + $0x88] sm:$0xff]
    %v2608 = vld [vmem:[#allocation10 + $0x90] sm:$0xff]
    %v2609 = vld [vmem:[#allocation10 + $0x98] sm:$0xff]
    %v2610 = vld [vmem:[#allocation10 + $0xa0] sm:$0xff]
    %v2611 = vld [vmem:[#allocation10 + $0xa8] sm:$0xff]
    %v2612 = vld [vmem:[#allocation10 + $0xb0] sm:$0xff]
    %v2613 = vld [vmem:[#allocation10 + $0xb8] sm:$0xff]
    %v2614 = vld [vmem:[#allocation10 + $0xc0] sm:$0xff]
    %v2615 = vld [vmem:[#allocation10 + $0xc8] sm:$0xff]
    %v2616 = vld [vmem:[#allocation10 + $0xd0] sm:$0xff]
    %v2617 = vld [vmem:[#allocation10 + $0xd8] sm:$0xff]
    %v2618 = vld [vmem:[#allocation10 + $0xe0] sm:$0xff]
    %v2619 = vld [vmem:[#allocation10 + $0xe8] sm:$0xff]
    %v2620 = vld [vmem:[#allocation10 + $0xf0] sm:$0xff]
    %v2621 = vld [vmem:[#allocation10 + $0xf8] sm:$0xff]
    %v2622 = vld [vmem:[%s10] sm:$0x3]
    %v2624 = vlaneseq
    %v2625 = vshrl.u32 %v2624, 7
    %v2626 = vsub.s32 0, %v2625
    %v2627 = vrot.slane %v2622, %v2626
    %v2628 = vlaneseq
    %v2629 = vshrl.u32 %v2628, 7
    %v2630 = vsub.s32 1, %v2629
    %v2631 = vrot.slane %v2622, %v2630
    %v2666 = vunpack.c.l.b16 %v2590
    %v2667 = vunpack.c.h.b16 %v2590
    %v2668 = vunpack.c.l.b16 %v2591
    %v2669 = vunpack.c.h.b16 %v2591
    %v2670 = vunpack.c.l.b16 %v2592
    %v2671 = vunpack.c.h.b16 %v2592
    %v2672 = vunpack.c.l.b16 %v2593
    %v2673 = vunpack.c.h.b16 %v2593
    %v2674 = vunpack.c.l.b16 %v2594
    %v2675 = vunpack.c.h.b16 %v2594
    %v2676 = vunpack.c.l.b16 %v2595
    %v2677 = vunpack.c.h.b16 %v2595
    %v2678 = vunpack.c.l.b16 %v2596
    %v2679 = vunpack.c.h.b16 %v2596
    %v2680 = vunpack.c.l.b16 %v2597
    %v2681 = vunpack.c.h.b16 %v2597
    %v2682 = vunpack.c.l.b16 %v2598
    %v2683 = vunpack.c.h.b16 %v2598
    %v2684 = vunpack.c.l.b16 %v2599
    %v2685 = vunpack.c.h.b16 %v2599
    %v2686 = vunpack.c.l.b16 %v2600
    %v2687 = vunpack.c.h.b16 %v2600
    %v2688 = vunpack.c.l.b16 %v2601
    %v2689 = vunpack.c.h.b16 %v2601
    %v2690 = vunpack.c.l.b16 %v2602
    %v2691 = vunpack.c.h.b16 %v2602
    %v2692 = vunpack.c.l.b16 %v2603
    %v2693 = vunpack.c.h.b16 %v2603
    %v2694 = vunpack.c.l.b16 %v2604
    %v2695 = vunpack.c.h.b16 %v2604
    %v2696 = vunpack.c.l.b16 %v2605
    %v2697 = vunpack.c.h.b16 %v2605
    %v2698 = vunpack.c.l.b16 %v2606
    %v2699 = vunpack.c.h.b16 %v2606
    %v2700 = vunpack.c.l.b16 %v2607
    %v2701 = vunpack.c.h.b16 %v2607
    %v2702 = vunpack.c.l.b16 %v2608
    %v2703 = vunpack.c.h.b16 %v2608
    %v2704 = vunpack.c.l.b16 %v2609
    %v2705 = vunpack.c.h.b16 %v2609
    %v2706 = vunpack.c.l.b16 %v2610
    %v2707 = vunpack.c.h.b16 %v2610
    %v2708 = vunpack.c.l.b16 %v2611
    %v2709 = vunpack.c.h.b16 %v2611
    %v2710 = vunpack.c.l.b16 %v2612
    %v2711 = vunpack.c.h.b16 %v2612
    %v2712 = vunpack.c.l.b16 %v2613
    %v2713 = vunpack.c.h.b16 %v2613
    %v2714 = vunpack.c.l.b16 %v2614
    %v2715 = vunpack.c.h.b16 %v2614
    %v2716 = vunpack.c.l.b16 %v2615
    %v2717 = vunpack.c.h.b16 %v2615
    %v2718 = vunpack.c.l.b16 %v2616
    %v2719 = vunpack.c.h.b16 %v2616
    %v2720 = vunpack.c.l.b16 %v2617
    %v2721 = vunpack.c.h.b16 %v2617
    %v2722 = vunpack.c.l.b16 %v2618
    %v2723 = vunpack.c.h.b16 %v2618
    %v2724 = vunpack.c.l.b16 %v2619
    %v2725 = vunpack.c.h.b16 %v2619
    %v2726 = vunpack.c.l.b16 %v2620
    %v2727 = vunpack.c.h.b16 %v2620
    %v2728 = vunpack.c.l.b16 %v2621
    %v2729 = vunpack.c.h.b16 %v2621
    %v2730 = vpack.c.b16 %v2668, %v2666
    %v2731 = vpack.c.b16 %v2669, %v2667
    %v2732 = vpack.c.b16 %v2672, %v2670
    %v2733 = vpack.c.b16 %v2673, %v2671
    %v2734 = vpack.c.b16 %v2676, %v2674
    %v2735 = vpack.c.b16 %v2677, %v2675
    %v2736 = vpack.c.b16 %v2680, %v2678
    %v2737 = vpack.c.b16 %v2681, %v2679
    %v2738 = vpack.c.b16 %v2684, %v2682
    %v2739 = vpack.c.b16 %v2685, %v2683
    %v2740 = vpack.c.b16 %v2688, %v2686
    %v2741 = vpack.c.b16 %v2689, %v2687
    %v2742 = vpack.c.b16 %v2692, %v2690
    %v2743 = vpack.c.b16 %v2693, %v2691
    %v2744 = vpack.c.b16 %v2696, %v2694
    %v2745 = vpack.c.b16 %v2697, %v2695
    %v2746 = vpack.c.b16 %v2700, %v2698
    %v2747 = vpack.c.b16 %v2701, %v2699
    %v2748 = vpack.c.b16 %v2704, %v2702
    %v2749 = vpack.c.b16 %v2705, %v2703
    %v2750 = vpack.c.b16 %v2708, %v2706
    %v2751 = vpack.c.b16 %v2709, %v2707
    %v2752 = vpack.c.b16 %v2712, %v2710
    %v2753 = vpack.c.b16 %v2713, %v2711
    %v2754 = vpack.c.b16 %v2716, %v2714
    %v2755 = vpack.c.b16 %v2717, %v2715
    %v2756 = vpack.c.b16 %v2720, %v2718
    %v2757 = vpack.c.b16 %v2721, %v2719
    %v2758 = vpack.c.b16 %v2724, %v2722
    %v2759 = vpack.c.b16 %v2725, %v2723
    %v2760 = vpack.c.b16 %v2728, %v2726
    %v2761 = vpack.c.b16 %v2729, %v2727
    %2794 = vmatprep.subr.bf16.mxu0 %v2731
    %2795 = vmatpush1.bf16.msra.mxu0 %v2730
    %2796 = vmatprep.subr.bf16.mxu0 %v2733
    %2797 = vmatpush1.bf16.msra.mxu0 %v2732
    %2798 = vmatprep.subr.bf16.mxu0 %v2735
    %2799 = vmatpush1.bf16.msra.mxu0 %v2734
    %2800 = vmatprep.subr.bf16.mxu0 %v2737
    %2801 = vmatpush1.bf16.msra.mxu0 %v2736
    %2802 = vmatprep.subr.bf16.mxu0 %v2739
    %2803 = vmatpush1.bf16.msra.mxu0 %v2738
    %2804 = vmatprep.subr.bf16.mxu0 %v2741
    %2805 = vmatpush1.bf16.msra.mxu0 %v2740
    %2806 = vmatprep.subr.bf16.mxu0 %v2743
    %2807 = vmatpush1.bf16.msra.mxu0 %v2742
    %2808 = vmatprep.subr.bf16.mxu0 %v2745
    %2809 = vmatpush1.bf16.msra.mxu0 %v2744
    %2810 = vmatprep.subr.bf16.mxu0 %v2747
    %2811 = vmatpush1.bf16.msra.mxu0 %v2746
    %2812 = vmatprep.subr.bf16.mxu0 %v2749
    %2813 = vmatpush1.bf16.msra.mxu0 %v2748
    %2814 = vmatprep.subr.bf16.mxu0 %v2751
    %2815 = vmatpush1.bf16.msra.mxu0 %v2750
    %2816 = vmatprep.subr.bf16.mxu0 %v2753
    %2817 = vmatpush1.bf16.msra.mxu0 %v2752
    %2818 = vmatprep.subr.bf16.mxu0 %v2755
    %2819 = vmatpush1.bf16.msra.mxu0 %v2754
    %2820 = vmatprep.subr.bf16.mxu0 %v2757
    %2821 = vmatpush1.bf16.msra.mxu0 %v2756
    %2822 = vmatprep.subr.bf16.mxu0 %v2759
    %2823 = vmatpush1.bf16.msra.mxu0 %v2758
    %2824 = vmatprep.subr.bf16.mxu0 %v2761
    %2825 = vmatpush1.bf16.msra.mxu0 %v2760
    %2826 = vmatprep.mubr.bf16.mxu0 %v2068
    %2827 = vmatmul.mubr.bf16.gmra.mrb[0].mxu0 %v2067
    %v2828 = vpop.f32.mrb[0].mxu0
    %v2829 = vadd.f32 %v2627, %v2828
    %v2830 = vpop.f32.mrb[0].mxu0
    %v2831 = vadd.f32 %v2631, %v2830
    %v2832 = vpop.f32.mrb[0].mxu0
    %v2833 = vadd.f32 %v2627, %v2832
    %v2834 = vpop.f32.mrb[0].mxu0
    %v2835 = vadd.f32 %v2631, %v2834
    %2836 = vmatprep.mubr.bf16.mxu0 %v2072
    %2837 = vmatmul.mubr.bf16.gmra.mrb[0].mxu0 %v2071
    %v2838 = vpop.f32.mrb[0].mxu0
    %v2839 = vadd.f32 %v2627, %v2838
    %v2840 = vpop.f32.mrb[0].mxu0
    %v2841 = vadd.f32 %v2631, %v2840
    %v2842 = vpop.f32.mrb[0].mxu0
    %v2843 = vadd.f32 %v2627, %v2842
    %v2844 = vpop.f32.mrb[0].mxu0
    %v2845 = vadd.f32 %v2631, %v2844
    %2846 = vmatprep.mubr.bf16.mxu0 %v2076
    %2847 = vmatmul.mubr.bf16.gmra.mrb[0].mxu0 %v2075
    %v2848 = vpop.f32.mrb[0].mxu0
    %v2849 = vadd.f32 %v2627, %v2848
    %v2850 = vpop.f32.mrb[0].mxu0
    %v2851 = vadd.f32 %v2631, %v2850
    %v2852 = vpop.f32.mrb[0].mxu0
    %v2853 = vadd.f32 %v2627, %v2852
    %v2854 = vpop.f32.mrb[0].mxu0
    %v2855 = vadd.f32 %v2631, %v2854
    %2856 = vmatprep.mubr.bf16.mxu0 %v2080
    %2857 = vmatmul.mubr.bf16.gmra.mrb[0].mxu0 %v2079
    %v2858 = vpop.f32.mrb[0].mxu0
    %v2859 = vadd.f32 %v2627, %v2858
    %v2860 = vpop.f32.mrb[0].mxu0
    %v2861 = vadd.f32 %v2631, %v2860
    %v2862 = vpop.f32.mrb[0].mxu0
    %v2863 = vadd.f32 %v2627, %v2862
    %v2864 = vpop.f32.mrb[0].mxu0
    %v2865 = vadd.f32 %v2631, %v2864
    %2866 = vmatprep.mubr.bf16.mxu0 %v2084
    %2867 = vmatmul.mubr.bf16.gmra.mrb[0].mxu0 %v2083
    %v2868 = vpop.f32.mrb[0].mxu0
    %v2869 = vadd.f32 %v2627, %v2868
    %v2870 = vpop.f32.mrb[0].mxu0
    %v2871 = vadd.f32 %v2631, %v2870
    %v2872 = vpop.f32.mrb[0].mxu0
    %v2873 = vadd.f32 %v2627, %v2872
    %v2874 = vpop.f32.mrb[0].mxu0
    %v2875 = vadd.f32 %v2631, %v2874
    %2876 = vmatprep.mubr.bf16.mxu0 %v2088
    %2877 = vmatmul.mubr.bf16.gmra.mrb[0].mxu0 %v2087
    %v2878 = vpop.f32.mrb[0].mxu0
    %v2879 = vadd.f32 %v2627, %v2878
    %v2880 = vpop.f32.mrb[0].mxu0
    %v2881 = vadd.f32 %v2631, %v2880
    %v2882 = vpop.f32.mrb[0].mxu0
    %v2883 = vadd.f32 %v2627, %v2882
    %v2884 = vpop.f32.mrb[0].mxu0
    %v2885 = vadd.f32 %v2631, %v2884
    %2886 = vmatprep.mubr.bf16.mxu0 %v2092
    %2887 = vmatmul.mubr.bf16.gmra.mrb[0].mxu0 %v2091
    %v2888 = vpop.f32.mrb[0].mxu0
    %v2889 = vadd.f32 %v2627, %v2888
    %v2890 = vpop.f32.mrb[0].mxu0
    %v2891 = vadd.f32 %v2631, %v2890
    %v2892 = vpop.f32.mrb[0].mxu0
    %v2893 = vadd.f32 %v2627, %v2892
    %v2894 = vpop.f32.mrb[0].mxu0
    %v2895 = vadd.f32 %v2631, %v2894
    %2896 = vmatprep.mubr.bf16.mxu0 %v2096
    %2897 = vmatmul.mubr.bf16.gmra.mrb[0].mxu0 %v2095
    %v2898 = vpop.f32.mrb[0].mxu0
    %v2899 = vadd.f32 %v2627, %v2898
    %v2900 = vpop.f32.mrb[0].mxu0
    %v2901 = vadd.f32 %v2631, %v2900
    %v2902 = vpop.f32.mrb[0].mxu0
    %v2903 = vadd.f32 %v2627, %v2902
    %v2904 = vpop.f32.mrb[0].mxu0
    %v2905 = vadd.f32 %v2631, %v2904
    %2906 = vmatprep.mubr.bf16.mxu0 %v2100
    %2907 = vmatmul.mubr.bf16.gmra.mrb[0].mxu0 %v2099
    %v2908 = vpop.f32.mrb[0].mxu0
    %v2909 = vadd.f32 %v2627, %v2908
    %v2910 = vpop.f32.mrb[0].mxu0
    %v2911 = vadd.f32 %v2631, %v2910
    %v2912 = vpop.f32.mrb[0].mxu0
    %v2913 = vadd.f32 %v2627, %v2912
    %v2914 = vpop.f32.mrb[0].mxu0
    %v2915 = vadd.f32 %v2631, %v2914
    %2916 = vmatprep.mubr.bf16.mxu0 %v2104
    %2917 = vmatmul.mubr.bf16.gmra.mrb[0].mxu0 %v2103
    %v2918 = vpop.f32.mrb[0].mxu0
    %v2919 = vadd.f32 %v2627, %v2918
    %v2920 = vpop.f32.mrb[0].mxu0
    %v2921 = vadd.f32 %v2631, %v2920
    %v2922 = vpop.f32.mrb[0].mxu0
    %v2923 = vadd.f32 %v2627, %v2922
    %v2924 = vpop.f32.mrb[0].mxu0
    %v2925 = vadd.f32 %v2631, %v2924
    %2926 = vmatprep.mubr.bf16.mxu0 %v2108
    %2927 = vmatmul.mubr.bf16.gmra.mrb[0].mxu0 %v2107
    %v2928 = vpop.f32.mrb[0].mxu0
    %v2929 = vadd.f32 %v2627, %v2928
    %v2930 = vpop.f32.mrb[0].mxu0
    %v2931 = vadd.f32 %v2631, %v2930
    %v2932 = vpop.f32.mrb[0].mxu0
    %v2933 = vadd.f32 %v2627, %v2932
    %v2934 = vpop.f32.mrb[0].mxu0
    %v2935 = vadd.f32 %v2631, %v2934
    %2936 = vmatprep.mubr.bf16.mxu0 %v2112
    %2937 = vmatmul.mubr.bf16.gmra.mrb[0].mxu0 %v2111
    %v2938 = vpop.f32.mrb[0].mxu0
    %v2939 = vadd.f32 %v2627, %v2938
    %v2940 = vpop.f32.mrb[0].mxu0
    %v2941 = vadd.f32 %v2631, %v2940
    %v2942 = vpop.f32.mrb[0].mxu0
    %v2943 = vadd.f32 %v2627, %v2942
    %v2944 = vpop.f32.mrb[0].mxu0
    %v2945 = vadd.f32 %v2631, %v2944
    %2946 = vmatprep.mubr.bf16.mxu0 %v2116
    %2947 = vmatmul.mubr.bf16.gmra.mrb[0].mxu0 %v2115
    %v2948 = vpop.f32.mrb[0].mxu0
    %v2949 = vadd.f32 %v2627, %v2948
    %v2950 = vpop.f32.mrb[0].mxu0
    %v2951 = vadd.f32 %v2631, %v2950
    %v2952 = vpop.f32.mrb[0].mxu0
    %v2953 = vadd.f32 %v2627, %v2952
    %v2954 = vpop.f32.mrb[0].mxu0
    %v2955 = vadd.f32 %v2631, %v2954
    %2956 = vmatprep.mubr.bf16.mxu0 %v2120
    %2957 = vmatmul.mubr.bf16.gmra.mrb[0].mxu0 %v2119
    %v2958 = vpop.f32.mrb[0].mxu0
    %v2959 = vadd.f32 %v2627, %v2958
    %v2960 = vpop.f32.mrb[0].mxu0
    %v2961 = vadd.f32 %v2631, %v2960
    %v2962 = vpop.f32.mrb[0].mxu0
    %v2963 = vadd.f32 %v2627, %v2962
    %v2964 = vpop.f32.mrb[0].mxu0
    %v2965 = vadd.f32 %v2631, %v2964
    %2966 = vmatprep.mubr.bf16.mxu0 %v2124
    %2967 = vmatmul.mubr.bf16.gmra.mrb[0].mxu0 %v2123
    %v2968 = vpop.f32.mrb[0].mxu0
    %v2969 = vadd.f32 %v2627, %v2968
    %v2970 = vpop.f32.mrb[0].mxu0
    %v2971 = vadd.f32 %v2631, %v2970
    %v2972 = vpop.f32.mrb[0].mxu0
    %v2973 = vadd.f32 %v2627, %v2972
    %v2974 = vpop.f32.mrb[0].mxu0
    %v2975 = vadd.f32 %v2631, %v2974
    %2976 = vmatprep.mubr.bf16.mxu0 %v2128
    %2977 = vmatmul.mubr.bf16.gmra.mrb[0].mxu0 %v2127
    %v2978 = vpop.f32.mrb[0].mxu0
    %v2979 = vadd.f32 %v2627, %v2978
    %v2980 = vpop.f32.mrb[0].mxu0
    %v2981 = vadd.f32 %v2631, %v2980
    %v2982 = vpop.f32.mrb[0].mxu0
    %v2983 = vadd.f32 %v2627, %v2982
    %v2984 = vpop.f32.mrb[0].mxu0
    %v2985 = vadd.f32 %v2631, %v2984
    %2986 = vdwg.mxu0
    %v2987 = vmax.f32 %v2829, 0.0
    %v2988 = vmax.f32 %v2831, 0.0
    %v2989 = vmax.f32 %v2833, 0.0
    %v2990 = vmax.f32 %v2835, 0.0
    %v2991 = vmax.f32 %v2839, 0.0
    %v2992 = vmax.f32 %v2841, 0.0
    %v2993 = vmax.f32 %v2843, 0.0
    %v2994 = vmax.f32 %v2845, 0.0
    %v2995 = vmax.f32 %v2849, 0.0
    %v2996 = vmax.f32 %v2851, 0.0
    %v2997 = vmax.f32 %v2853, 0.0
    %v2998 = vmax.f32 %v2855, 0.0
    %v2999 = vmax.f32 %v2859, 0.0
    %v3000 = vmax.f32 %v2861, 0.0
    %v3001 = vmax.f32 %v2863, 0.0
    %v3002 = vmax.f32 %v2865, 0.0
    %v3003 = vmax.f32 %v2869, 0.0
    %v3004 = vmax.f32 %v2871, 0.0
    %v3005 = vmax.f32 %v2873, 0.0
    %v3006 = vmax.f32 %v2875, 0.0
    %v3007 = vmax.f32 %v2879, 0.0
    %v3008 = vmax.f32 %v2881, 0.0
    %v3009 = vmax.f32 %v2883, 0.0
    %v3010 = vmax.f32 %v2885, 0.0
    %v3011 = vmax.f32 %v2889, 0.0
    %v3012 = vmax.f32 %v2891, 0.0
    %v3013 = vmax.f32 %v2893, 0.0
    %v3014 = vmax.f32 %v2895, 0.0
    %v3015 = vmax.f32 %v2899, 0.0
    %v3016 = vmax.f32 %v2901, 0.0
    %v3017 = vmax.f32 %v2903, 0.0
    %v3018 = vmax.f32 %v2905, 0.0
    %v3019 = vmax.f32 %v2909, 0.0
    %v3020 = vmax.f32 %v2911, 0.0
    %v3021 = vmax.f32 %v2913, 0.0
    %v3022 = vmax.f32 %v2915, 0.0
    %v3023 = vmax.f32 %v2919, 0.0
    %v3024 = vmax.f32 %v2921, 0.0
    %v3025 = vmax.f32 %v2923, 0.0
    %v3026 = vmax.f32 %v2925, 0.0
    %v3027 = vmax.f32 %v2929, 0.0
    %v3028 = vmax.f32 %v2931, 0.0
    %v3029 = vmax.f32 %v2933, 0.0
    %v3030 = vmax.f32 %v2935, 0.0
    %v3031 = vmax.f32 %v2939, 0.0
    %v3032 = vmax.f32 %v2941, 0.0
    %v3033 = vmax.f32 %v2943, 0.0
    %v3034 = vmax.f32 %v2945, 0.0
    %v3035 = vmax.f32 %v2949, 0.0
    %v3036 = vmax.f32 %v2951, 0.0
    %v3037 = vmax.f32 %v2953, 0.0
    %v3038 = vmax.f32 %v2955, 0.0
    %v3039 = vmax.f32 %v2959, 0.0
    %v3040 = vmax.f32 %v2961, 0.0
    %v3041 = vmax.f32 %v2963, 0.0
    %v3042 = vmax.f32 %v2965, 0.0
    %v3043 = vmax.f32 %v2969, 0.0
    %v3044 = vmax.f32 %v2971, 0.0
    %v3045 = vmax.f32 %v2973, 0.0
    %v3046 = vmax.f32 %v2975, 0.0
    %v3047 = vmax.f32 %v2979, 0.0
    %v3048 = vmax.f32 %v2981, 0.0
    %v3049 = vmax.f32 %v2983, 0.0
    %v3050 = vmax.f32 %v2985, 0.0
    %v3051 = vld [vmem:[%s11] sm:$0xf]
    %v3052 = vld [vmem:[%s12] sm:$0x1]
    %v3054 = vlaneseq
    %v3055 = vshrl.u32 %v3054, 7
    %v3056 = vsub.s32 0, %v3055
    %v3057 = vrot.slane %v3051, %v3056
    %v3058 = vlaneseq
    %v3059 = vshrl.u32 %v3058, 7
    %v3060 = vsub.s32 2, %v3059
    %v3061 = vrot.slane %v3051, %v3060
    %v3064 = vlaneseq
    %v3065 = vshrl.u32 %v3064, 7
    %v3066 = vsub.s32 0, %v3065
    %v3067 = vrot.slane %v3057, %v3066
    %v3068 = vlaneseq
    %v3069 = vshrl.u32 %v3068, 7
    %v3070 = vsub.s32 0, %v3069
    %v3071 = vrot.slane %v3061, %v3070
    %v3072 = vmul.f32 %v2526, %v3067
    %v3073 = vmul.f32 %v2527, %v3071
    %v3074 = vmul.f32 %v2528, %v3067
    %v3075 = vmul.f32 %v2529, %v3071
    %v3076 = vmul.f32 %v2530, %v3067
    %v3077 = vmul.f32 %v2531, %v3071
    %v3078 = vmul.f32 %v2532, %v3067
    %v3079 = vmul.f32 %v2533, %v3071
    %v3080 = vmul.f32 %v2534, %v3067
    %v3081 = vmul.f32 %v2535, %v3071
    %v3082 = vmul.f32 %v2536, %v3067
    %v3083 = vmul.f32 %v2537, %v3071
    %v3084 = vmul.f32 %v2538, %v3067
    %v3085 = vmul.f32 %v2539, %v3071
    %v3086 = vmul.f32 %v2540, %v3067
    %v3087 = vmul.f32 %v2541, %v3071
    %v3088 = vmul.f32 %v2542, %v3067
    %v3089 = vmul.f32 %v2543, %v3071
    %v3090 = vmul.f32 %v2544, %v3067
    %v3091 = vmul.f32 %v2545, %v3071
    %v3092 = vmul.f32 %v2546, %v3067
    %v3093 = vmul.f32 %v2547, %v3071
    %v3094 = vmul.f32 %v2548, %v3067
    %v3095 = vmul.f32 %v2549, %v3071
    %v3096 = vmul.f32 %v2550, %v3067
    %v3097 = vmul.f32 %v2551, %v3071
    %v3098 = vmul.f32 %v2552, %v3067
    %v3099 = vmul.f32 %v2553, %v3071
    %v3100 = vmul.f32 %v2554, %v3067
    %v3101 = vmul.f32 %v2555, %v3071
    %v3102 = vmul.f32 %v2556, %v3067
    %v3103 = vmul.f32 %v2557, %v3071
    %v3104 = vmul.f32 %v2558, %v3067
    %v3105 = vmul.f32 %v2559, %v3071
    %v3106 = vmul.f32 %v2560, %v3067
    %v3107 = vmul.f32 %v2561, %v3071
    %v3108 = vmul.f32 %v2562, %v3067
    %v3109 = vmul.f32 %v2563, %v3071
    %v3110 = vmul.f32 %v2564, %v3067
    %v3111 = vmul.f32 %v2565, %v3071
    %v3112 = vmul.f32 %v2566, %v3067
    %v3113 = vmul.f32 %v2567, %v3071
    %v3114 = vmul.f32 %v2568, %v3067
    %v3115 = vmul.f32 %v2569, %v3071
    %v3116 = vmul.f32 %v2570, %v3067
    %v3117 = vmul.f32 %v2571, %v3071
    %v3118 = vmul.f32 %v2572, %v3067
    %v3119 = vmul.f32 %v2573, %v3071
    %v3120 = vmul.f32 %v2574, %v3067
    %v3121 = vmul.f32 %v2575, %v3071
    %v3122 = vmul.f32 %v2576, %v3067
    %v3123 = vmul.f32 %v2577, %v3071
    %v3124 = vmul.f32 %v2578, %v3067
    %v3125 = vmul.f32 %v2579, %v3071
    %v3126 = vmul.f32 %v2580, %v3067
    %v3127 = vmul.f32 %v2581, %v3071
    %v3128 = vmul.f32 %v2582, %v3067
    %v3129 = vmul.f32 %v2583, %v3071
    %v3130 = vmul.f32 %v2584, %v3067
    %v3131 = vmul.f32 %v2585, %v3071
    %v3132 = vmul.f32 %v2586, %v3067
    %v3133 = vmul.f32 %v2587, %v3071
    %v3134 = vmul.f32 %v2588, %v3067
    %v3135 = vmul.f32 %v2589, %v3071
    %v3136 = vadd.f32 %v3072, %v3073
    %3137 = vadd.xlane.f32.xlu0 %v3136
    %v3138 = vpop.xlane.xlu0 %3137
    %v3139 = vadd.f32 %v3074, %v3075
    %3140 = vadd.xlane.f32.xlu0 %v3139
    %v3141 = vpop.xlane.xlu0 %3140
    %v3142 = vadd.f32 %v3076, %v3077
    %3143 = vadd.xlane.f32.xlu0 %v3142
    %v3144 = vpop.xlane.xlu0 %3143
    %v3145 = vadd.f32 %v3078, %v3079
    %3146 = vadd.xlane.f32.xlu0 %v3145
    %v3147 = vpop.xlane.xlu0 %3146
    %v3148 = vadd.f32 %v3080, %v3081
    %3149 = vadd.xlane.f32.xlu0 %v3148
    %v3150 = vpop.xlane.xlu0 %3149
    %v3151 = vadd.f32 %v3082, %v3083
    %3152 = vadd.xlane.f32.xlu0 %v3151
    %v3153 = vpop.xlane.xlu0 %3152
    %v3154 = vadd.f32 %v3084, %v3085
    %3155 = vadd.xlane.f32.xlu0 %v3154
    %v3156 = vpop.xlane.xlu0 %3155
    %v3157 = vadd.f32 %v3086, %v3087
    %3158 = vadd.xlane.f32.xlu0 %v3157
    %v3159 = vpop.xlane.xlu0 %3158
    %v3160 = vadd.f32 %v3088, %v3089
    %3161 = vadd.xlane.f32.xlu0 %v3160
    %v3162 = vpop.xlane.xlu0 %3161
    %v3163 = vadd.f32 %v3090, %v3091
    %3164 = vadd.xlane.f32.xlu0 %v3163
    %v3165 = vpop.xlane.xlu0 %3164
    %v3166 = vadd.f32 %v3092, %v3093
    %3167 = vadd.xlane.f32.xlu0 %v3166
    %v3168 = vpop.xlane.xlu0 %3167
    %v3169 = vadd.f32 %v3094, %v3095
    %3170 = vadd.xlane.f32.xlu0 %v3169
    %v3171 = vpop.xlane.xlu0 %3170
    %v3172 = vadd.f32 %v3096, %v3097
    %3173 = vadd.xlane.f32.xlu0 %v3172
    %v3174 = vpop.xlane.xlu0 %3173
    %v3175 = vadd.f32 %v3098, %v3099
    %3176 = vadd.xlane.f32.xlu0 %v3175
    %v3177 = vpop.xlane.xlu0 %3176
    %v3178 = vadd.f32 %v3100, %v3101
    %3179 = vadd.xlane.f32.xlu0 %v3178
    %v3180 = vpop.xlane.xlu0 %3179
    %v3181 = vadd.f32 %v3102, %v3103
    %3182 = vadd.xlane.f32.xlu0 %v3181
    %v3183 = vpop.xlane.xlu0 %3182
    %v3184 = vadd.f32 %v3104, %v3105
    %3185 = vadd.xlane.f32.xlu0 %v3184
    %v3186 = vpop.xlane.xlu0 %3185
    %v3187 = vadd.f32 %v3106, %v3107
    %3188 = vadd.xlane.f32.xlu0 %v3187
    %v3189 = vpop.xlane.xlu0 %3188
    %v3190 = vadd.f32 %v3108, %v3109
    %3191 = vadd.xlane.f32.xlu0 %v3190
    %v3192 = vpop.xlane.xlu0 %3191
    %v3193 = vadd.f32 %v3110, %v3111
    %3194 = vadd.xlane.f32.xlu0 %v3193
    %v3195 = vpop.xlane.xlu0 %3194
    %v3196 = vadd.f32 %v3112, %v3113
    %3197 = vadd.xlane.f32.xlu0 %v3196
    %v3198 = vpop.xlane.xlu0 %3197
    %v3199 = vadd.f32 %v3114, %v3115
    %3200 = vadd.xlane.f32.xlu0 %v3199
    %v3201 = vpop.xlane.xlu0 %3200
    %v3202 = vadd.f32 %v3116, %v3117
    %3203 = vadd.xlane.f32.xlu0 %v3202
    %v3204 = vpop.xlane.xlu0 %3203
    %v3205 = vadd.f32 %v3118, %v3119
    %3206 = vadd.xlane.f32.xlu0 %v3205
    %v3207 = vpop.xlane.xlu0 %3206
    %v3208 = vadd.f32 %v3120, %v3121
    %3209 = vadd.xlane.f32.xlu0 %v3208
    %v3210 = vpop.xlane.xlu0 %3209
    %v3211 = vadd.f32 %v3122, %v3123
    %3212 = vadd.xlane.f32.xlu0 %v3211
    %v3213 = vpop.xlane.xlu0 %3212
    %v3214 = vadd.f32 %v3124, %v3125
    %3215 = vadd.xlane.f32.xlu0 %v3214
    %v3216 = vpop.xlane.xlu0 %3215
    %v3217 = vadd.f32 %v3126, %v3127
    %3218 = vadd.xlane.f32.xlu0 %v3217
    %v3219 = vpop.xlane.xlu0 %3218
    %v3220 = vadd.f32 %v3128, %v3129
    %3221 = vadd.xlane.f32.xlu0 %v3220
    %v3222 = vpop.xlane.xlu0 %3221
    %v3223 = vadd.f32 %v3130, %v3131
    %3224 = vadd.xlane.f32.xlu0 %v3223
    %v3225 = vpop.xlane.xlu0 %3224
    %v3226 = vadd.f32 %v3132, %v3133
    %3227 = vadd.xlane.f32.xlu0 %v3226
    %v3228 = vpop.xlane.xlu0 %3227
    %v3229 = vadd.f32 %v3134, %v3135
    %3230 = vadd.xlane.f32.xlu0 %v3229
    %v3231 = vpop.xlane.xlu0 %3230
    %v3233 = vlaneseq
    %v3234 = vshrl.u32 %v3233, 7
    %v3235 = vsub.s32 0, %v3234
    %v3236 = vrot.slane %v3052, %v3235
    %v3238 = vadd.f32 %v3138, %v3236
    %v3239 = vadd.f32 %v3141, %v3236
    %v3240 = vadd.f32 %v3144, %v3236
    %v3241 = vadd.f32 %v3147, %v3236
    %v3242 = vadd.f32 %v3150, %v3236
    %v3243 = vadd.f32 %v3153, %v3236
    %v3244 = vadd.f32 %v3156, %v3236
    %v3245 = vadd.f32 %v3159, %v3236
    %v3246 = vadd.f32 %v3162, %v3236
    %v3247 = vadd.f32 %v3165, %v3236
    %v3248 = vadd.f32 %v3168, %v3236
    %v3249 = vadd.f32 %v3171, %v3236
    %v3250 = vadd.f32 %v3174, %v3236
    %v3251 = vadd.f32 %v3177, %v3236
    %v3252 = vadd.f32 %v3180, %v3236
    %v3253 = vadd.f32 %v3183, %v3236
    %v3254 = vadd.f32 %v3186, %v3236
    %v3255 = vadd.f32 %v3189, %v3236
    %v3256 = vadd.f32 %v3192, %v3236
    %v3257 = vadd.f32 %v3195, %v3236
    %v3258 = vadd.f32 %v3198, %v3236
    %v3259 = vadd.f32 %v3201, %v3236
    %v3260 = vadd.f32 %v3204, %v3236
    %v3261 = vadd.f32 %v3207, %v3236
    %v3262 = vadd.f32 %v3210, %v3236
    %v3263 = vadd.f32 %v3213, %v3236
    %v3264 = vadd.f32 %v3216, %v3236
    %v3265 = vadd.f32 %v3219, %v3236
    %v3266 = vadd.f32 %v3222, %v3236
    %v3267 = vadd.f32 %v3225, %v3236
    %v3268 = vadd.f32 %v3228, %v3236
    %v3269 = vadd.f32 %v3231, %v3236
    %vm3270 = vcmask 7168
    %3271 = vst.msk [vmem:[%s13] sm:$0xff] %vm3270, %v3238
    %3272 = vst.msk [vmem:[%s13 + $0x8] sm:$0xff] %vm3270, %v3239
    %3273 = vst.msk [vmem:[%s13 + $0x10] sm:$0xff] %vm3270, %v3240
    %3274 = vst.msk [vmem:[%s13 + $0x18] sm:$0xff] %vm3270, %v3241
    %3275 = vst.msk [vmem:[%s13 + $0x20] sm:$0xff] %vm3270, %v3242
    %3276 = vst.msk [vmem:[%s13 + $0x28] sm:$0xff] %vm3270, %v3243
    %3277 = vst.msk [vmem:[%s13 + $0x30] sm:$0xff] %vm3270, %v3244
    %3278 = vst.msk [vmem:[%s13 + $0x38] sm:$0xff] %vm3270, %v3245
    %3279 = vst.msk [vmem:[%s13 + $0x40] sm:$0xff] %vm3270, %v3246
    %3280 = vst.msk [vmem:[%s13 + $0x48] sm:$0xff] %vm3270, %v3247
    %3281 = vst.msk [vmem:[%s13 + $0x50] sm:$0xff] %vm3270, %v3248
    %3282 = vst.msk [vmem:[%s13 + $0x58] sm:$0xff] %vm3270, %v3249
    %3283 = vst.msk [vmem:[%s13 + $0x60] sm:$0xff] %vm3270, %v3250
    %3284 = vst.msk [vmem:[%s13 + $0x68] sm:$0xff] %vm3270, %v3251
    %3285 = vst.msk [vmem:[%s13 + $0x70] sm:$0xff] %vm3270, %v3252
    %3286 = vst.msk [vmem:[%s13 + $0x78] sm:$0xff] %vm3270, %v3253
    %3287 = vst.msk [vmem:[%s13 + $0x80] sm:$0xff] %vm3270, %v3254
    %3288 = vst.msk [vmem:[%s13 + $0x88] sm:$0xff] %vm3270, %v3255
    %3289 = vst.msk [vmem:[%s13 + $0x90] sm:$0xff] %vm3270, %v3256
    %3290 = vst.msk [vmem:[%s13 + $0x98] sm:$0xff] %vm3270, %v3257
    %3291 = vst.msk [vmem:[%s13 + $0xa0] sm:$0xff] %vm3270, %v3258
    %3292 = vst.msk [vmem:[%s13 + $0xa8] sm:$0xff] %vm3270, %v3259
    %3293 = vst.msk [vmem:[%s13 + $0xb0] sm:$0xff] %vm3270, %v3260
    %3294 = vst.msk [vmem:[%s13 + $0xb8] sm:$0xff] %vm3270, %v3261
    %3295 = vst.msk [vmem:[%s13 + $0xc0] sm:$0xff] %vm3270, %v3262
    %3296 = vst.msk [vmem:[%s13 + $0xc8] sm:$0xff] %vm3270, %v3263
    %3297 = vst.msk [vmem:[%s13 + $0xd0] sm:$0xff] %vm3270, %v3264
    %3298 = vst.msk [vmem:[%s13 + $0xd8] sm:$0xff] %vm3270, %v3265
    %3299 = vst.msk [vmem:[%s13 + $0xe0] sm:$0xff] %vm3270, %v3266
    %3300 = vst.msk [vmem:[%s13 + $0xe8] sm:$0xff] %vm3270, %v3267
    %3301 = vst.msk [vmem:[%s13 + $0xf0] sm:$0xff] %vm3270, %v3268
    %3302 = vst.msk [vmem:[%s13 + $0xf8] sm:$0xff] %vm3270, %v3269
    %v3303 = vlaneseq
    %v3304 = vshrl.u32 %v3303, 7
    %v3305 = vsub.s32 1, %v3304
    %v3306 = vrot.slane %v3051, %v3305
    %v3307 = vlaneseq
    %v3308 = vshrl.u32 %v3307, 7
    %v3309 = vsub.s32 3, %v3308
    %v3310 = vrot.slane %v3051, %v3309
    %v3313 = vlaneseq
    %v3314 = vshrl.u32 %v3313, 7
    %v3315 = vsub.s32 1, %v3314
    %v3316 = vrot.slane %v3306, %v3315
    %v3317 = vlaneseq
    %v3318 = vshrl.u32 %v3317, 7
    %v3319 = vsub.s32 1, %v3318
    %v3320 = vrot.slane %v3310, %v3319
    %v3321 = vmul.f32 %v2987, %v3316
    %v3322 = vmul.f32 %v2988, %v3320
    %v3323 = vmul.f32 %v2989, %v3316
    %v3324 = vmul.f32 %v2990, %v3320
    %v3325 = vmul.f32 %v2991, %v3316
    %v3326 = vmul.f32 %v2992, %v3320
    %v3327 = vmul.f32 %v2993, %v3316
    %v3328 = vmul.f32 %v2994, %v3320
    %v3329 = vmul.f32 %v2995, %v3316
    %v3330 = vmul.f32 %v2996, %v3320
    %v3331 = vmul.f32 %v2997, %v3316
    %v3332 = vmul.f32 %v2998, %v3320
    %v3333 = vmul.f32 %v2999, %v3316
    %v3334 = vmul.f32 %v3000, %v3320
    %v3335 = vmul.f32 %v3001, %v3316
    %v3336 = vmul.f32 %v3002, %v3320
    %v3337 = vmul.f32 %v3003, %v3316
    %v3338 = vmul.f32 %v3004, %v3320
    %v3339 = vmul.f32 %v3005, %v3316
    %v3340 = vmul.f32 %v3006, %v3320
    %v3341 = vmul.f32 %v3007, %v3316
    %v3342 = vmul.f32 %v3008, %v3320
    %v3343 = vmul.f32 %v3009, %v3316
    %v3344 = vmul.f32 %v3010, %v3320
    %v3345 = vmul.f32 %v3011, %v3316
    %v3346 = vmul.f32 %v3012, %v3320
    %v3347 = vmul.f32 %v3013, %v3316
    %v3348 = vmul.f32 %v3014, %v3320
    %v3349 = vmul.f32 %v3015, %v3316
    %v3350 = vmul.f32 %v3016, %v3320
    %v3351 = vmul.f32 %v3017, %v3316
    %v3352 = vmul.f32 %v3018, %v3320
    %v3353 = vmul.f32 %v3019, %v3316
    %v3354 = vmul.f32 %v3020, %v3320
    %v3355 = vmul.f32 %v3021, %v3316
    %v3356 = vmul.f32 %v3022, %v3320
    %v3357 = vmul.f32 %v3023, %v3316
    %v3358 = vmul.f32 %v3024, %v3320
    %v3359 = vmul.f32 %v3025, %v3316
    %v3360 = vmul.f32 %v3026, %v3320
    %v3361 = vmul.f32 %v3027, %v3316
    %v3362 = vmul.f32 %v3028, %v3320
    %v3363 = vmul.f32 %v3029, %v3316
    %v3364 = vmul.f32 %v3030, %v3320
    %v3365 = vmul.f32 %v3031, %v3316
    %v3366 = vmul.f32 %v3032, %v3320
    %v3367 = vmul.f32 %v3033, %v3316
    %v3368 = vmul.f32 %v3034, %v3320
    %v3369 = vmul.f32 %v3035, %v3316
    %v3370 = vmul.f32 %v3036, %v3320
    %v3371 = vmul.f32 %v3037, %v3316
    %v3372 = vmul.f32 %v3038, %v3320
    %v3373 = vmul.f32 %v3039, %v3316
    %v3374 = vmul.f32 %v3040, %v3320
    %v3375 = vmul.f32 %v3041, %v3316
    %v3376 = vmul.f32 %v3042, %v3320
    %v3377 = vmul.f32 %v3043, %v3316
    %v3378 = vmul.f32 %v3044, %v3320
    %v3379 = vmul.f32 %v3045, %v3316
    %v3380 = vmul.f32 %v3046, %v3320
    %v3381 = vmul.f32 %v3047, %v3316
    %v3382 = vmul.f32 %v3048, %v3320
    %v3383 = vmul.f32 %v3049, %v3316
    %v3384 = vmul.f32 %v3050, %v3320
    %v3385 = vadd.f32 %v3321, %v3322
    %3386 = vadd.xlane.f32.xlu0 %v3385
    %v3387 = vpop.xlane.xlu0 %3386
    %v3388 = vadd.f32 %v3323, %v3324
    %3389 = vadd.xlane.f32.xlu0 %v3388
    %v3390 = vpop.xlane.xlu0 %3389
    %v3391 = vadd.f32 %v3325, %v3326
    %3392 = vadd.xlane.f32.xlu0 %v3391
    %v3393 = vpop.xlane.xlu0 %3392
    %v3394 = vadd.f32 %v3327, %v3328
    %3395 = vadd.xlane.f32.xlu0 %v3394
    %v3396 = vpop.xlane.xlu0 %3395
    %v3397 = vadd.f32 %v3329, %v3330
    %3398 = vadd.xlane.f32.xlu0 %v3397
    %v3399 = vpop.xlane.xlu0 %3398
    %v3400 = vadd.f32 %v3331, %v3332
    %3401 = vadd.xlane.f32.xlu0 %v3400
    %v3402 = vpop.xlane.xlu0 %3401
    %v3403 = vadd.f32 %v3333, %v3334
    %3404 = vadd.xlane.f32.xlu0 %v3403
    %v3405 = vpop.xlane.xlu0 %3404
    %v3406 = vadd.f32 %v3335, %v3336
    %3407 = vadd.xlane.f32.xlu0 %v3406
    %v3408 = vpop.xlane.xlu0 %3407
    %v3409 = vadd.f32 %v3337, %v3338
    %3410 = vadd.xlane.f32.xlu0 %v3409
    %v3411 = vpop.xlane.xlu0 %3410
    %v3412 = vadd.f32 %v3339, %v3340
    %3413 = vadd.xlane.f32.xlu0 %v3412
    %v3414 = vpop.xlane.xlu0 %3413
    %v3415 = vadd.f32 %v3341, %v3342
    %3416 = vadd.xlane.f32.xlu0 %v3415
    %v3417 = vpop.xlane.xlu0 %3416
    %v3418 = vadd.f32 %v3343, %v3344
    %3419 = vadd.xlane.f32.xlu0 %v3418
    %v3420 = vpop.xlane.xlu0 %3419
    %v3421 = vadd.f32 %v3345, %v3346
    %3422 = vadd.xlane.f32.xlu0 %v3421
    %v3423 = vpop.xlane.xlu0 %3422
    %v3424 = vadd.f32 %v3347, %v3348
    %3425 = vadd.xlane.f32.xlu0 %v3424
    %v3426 = vpop.xlane.xlu0 %3425
    %v3427 = vadd.f32 %v3349, %v3350
    %3428 = vadd.xlane.f32.xlu0 %v3427
    %v3429 = vpop.xlane.xlu0 %3428
    %v3430 = vadd.f32 %v3351, %v3352
    %3431 = vadd.xlane.f32.xlu0 %v3430
    %v3432 = vpop.xlane.xlu0 %3431
    %v3433 = vadd.f32 %v3353, %v3354
    %3434 = vadd.xlane.f32.xlu0 %v3433
    %v3435 = vpop.xlane.xlu0 %3434
    %v3436 = vadd.f32 %v3355, %v3356
    %3437 = vadd.xlane.f32.xlu0 %v3436
    %v3438 = vpop.xlane.xlu0 %3437
    %v3439 = vadd.f32 %v3357, %v3358
    %3440 = vadd.xlane.f32.xlu0 %v3439
    %v3441 = vpop.xlane.xlu0 %3440
    %v3442 = vadd.f32 %v3359, %v3360
    %3443 = vadd.xlane.f32.xlu0 %v3442
    %v3444 = vpop.xlane.xlu0 %3443
    %v3445 = vadd.f32 %v3361, %v3362
    %3446 = vadd.xlane.f32.xlu0 %v3445
    %v3447 = vpop.xlane.xlu0 %3446
    %v3448 = vadd.f32 %v3363, %v3364
    %3449 = vadd.xlane.f32.xlu0 %v3448
    %v3450 = vpop.xlane.xlu0 %3449
    %v3451 = vadd.f32 %v3365, %v3366
    %3452 = vadd.xlane.f32.xlu0 %v3451
    %v3453 = vpop.xlane.xlu0 %3452
    %v3454 = vadd.f32 %v3367, %v3368
    %3455 = vadd.xlane.f32.xlu0 %v3454
    %v3456 = vpop.xlane.xlu0 %3455
    %v3457 = vadd.f32 %v3369, %v3370
    %3458 = vadd.xlane.f32.xlu0 %v3457
    %v3459 = vpop.xlane.xlu0 %3458
    %v3460 = vadd.f32 %v3371, %v3372
    %3461 = vadd.xlane.f32.xlu0 %v3460
    %v3462 = vpop.xlane.xlu0 %3461
    %v3463 = vadd.f32 %v3373, %v3374
    %3464 = vadd.xlane.f32.xlu0 %v3463
    %v3465 = vpop.xlane.xlu0 %3464
    %v3466 = vadd.f32 %v3375, %v3376
    %3467 = vadd.xlane.f32.xlu0 %v3466
    %v3468 = vpop.xlane.xlu0 %3467
    %v3469 = vadd.f32 %v3377, %v3378
    %3470 = vadd.xlane.f32.xlu0 %v3469
    %v3471 = vpop.xlane.xlu0 %3470
    %v3472 = vadd.f32 %v3379, %v3380
    %3473 = vadd.xlane.f32.xlu0 %v3472
    %v3474 = vpop.xlane.xlu0 %3473
    %v3475 = vadd.f32 %v3381, %v3382
    %3476 = vadd.xlane.f32.xlu0 %v3475
    %v3477 = vpop.xlane.xlu0 %3476
    %v3478 = vadd.f32 %v3383, %v3384
    %3479 = vadd.xlane.f32.xlu0 %v3478
    %v3480 = vpop.xlane.xlu0 %3479
    %v3481 = vadd.f32 %v3387, %v3236
    %v3482 = vadd.f32 %v3390, %v3236
    %v3483 = vadd.f32 %v3393, %v3236
    %v3484 = vadd.f32 %v3396, %v3236
    %v3485 = vadd.f32 %v3399, %v3236
    %v3486 = vadd.f32 %v3402, %v3236
    %v3487 = vadd.f32 %v3405, %v3236
    %v3488 = vadd.f32 %v3408, %v3236
    %v3489 = vadd.f32 %v3411, %v3236
    %v3490 = vadd.f32 %v3414, %v3236
    %v3491 = vadd.f32 %v3417, %v3236
    %v3492 = vadd.f32 %v3420, %v3236
    %v3493 = vadd.f32 %v3423, %v3236
    %v3494 = vadd.f32 %v3426, %v3236
    %v3495 = vadd.f32 %v3429, %v3236
    %v3496 = vadd.f32 %v3432, %v3236
    %v3497 = vadd.f32 %v3435, %v3236
    %v3498 = vadd.f32 %v3438, %v3236
    %v3499 = vadd.f32 %v3441, %v3236
    %v3500 = vadd.f32 %v3444, %v3236
    %v3501 = vadd.f32 %v3447, %v3236
    %v3502 = vadd.f32 %v3450, %v3236
    %v3503 = vadd.f32 %v3453, %v3236
    %v3504 = vadd.f32 %v3456, %v3236
    %v3505 = vadd.f32 %v3459, %v3236
    %v3506 = vadd.f32 %v3462, %v3236
    %v3507 = vadd.f32 %v3465, %v3236
    %v3508 = vadd.f32 %v3468, %v3236
    %v3509 = vadd.f32 %v3471, %v3236
    %v3510 = vadd.f32 %v3474, %v3236
    %v3511 = vadd.f32 %v3477, %v3236
    %v3512 = vadd.f32 %v3480, %v3236
    %vm3513 = vcmask 15368
    %3514 = vst.msk [vmem:[%s13] sm:$0xff] %vm3513, %v3481
    %3515 = vst.msk [vmem:[%s13 + $0x8] sm:$0xff] %vm3513, %v3482
    %3516 = vst.msk [vmem:[%s13 + $0x10] sm:$0xff] %vm3513, %v3483
    %3517 = vst.msk [vmem:[%s13 + $0x18] sm:$0xff] %vm3513, %v3484
    %3518 = vst.msk [vmem:[%s13 + $0x20] sm:$0xff] %vm3513, %v3485
    %3519 = vst.msk [vmem:[%s13 + $0x28] sm:$0xff] %vm3513, %v3486
    %3520 = vst.msk [vmem:[%s13 + $0x30] sm:$0xff] %vm3513, %v3487
    %3521 = vst.msk [vmem:[%s13 + $0x38] sm:$0xff] %vm3513, %v3488
    %3522 = vst.msk [vmem:[%s13 + $0x40] sm:$0xff] %vm3513, %v3489
    %3523 = vst.msk [vmem:[%s13 + $0x48] sm:$0xff] %vm3513, %v3490
    %3524 = vst.msk [vmem:[%s13 + $0x50] sm:$0xff] %vm3513, %v3491
    %3525 = vst.msk [vmem:[%s13 + $0x58] sm:$0xff] %vm3513, %v3492
    %3526 = vst.msk [vmem:[%s13 + $0x60] sm:$0xff] %vm3513, %v3493
    %3527 = vst.msk [vmem:[%s13 + $0x68] sm:$0xff] %vm3513, %v3494
    %3528 = vst.msk [vmem:[%s13 + $0x70] sm:$0xff] %vm3513, %v3495
    %3529 = vst.msk [vmem:[%s13 + $0x78] sm:$0xff] %vm3513, %v3496
    %3530 = vst.msk [vmem:[%s13 + $0x80] sm:$0xff] %vm3513, %v3497
    %3531 = vst.msk [vmem:[%s13 + $0x88] sm:$0xff] %vm3513, %v3498
    %3532 = vst.msk [vmem:[%s13 + $0x90] sm:$0xff] %vm3513, %v3499
    %3533 = vst.msk [vmem:[%s13 + $0x98] sm:$0xff] %vm3513, %v3500
    %3534 = vst.msk [vmem:[%s13 + $0xa0] sm:$0xff] %vm3513, %v3501
    %3535 = vst.msk [vmem:[%s13 + $0xa8] sm:$0xff] %vm3513, %v3502
    %3536 = vst.msk [vmem:[%s13 + $0xb0] sm:$0xff] %vm3513, %v3503
    %3537 = vst.msk [vmem:[%s13 + $0xb8] sm:$0xff] %vm3513, %v3504
    %3538 = vst.msk [vmem:[%s13 + $0xc0] sm:$0xff] %vm3513, %v3505
    %3539 = vst.msk [vmem:[%s13 + $0xc8] sm:$0xff] %vm3513, %v3506
    %3540 = vst.msk [vmem:[%s13 + $0xd0] sm:$0xff] %vm3513, %v3507
    %3541 = vst.msk [vmem:[%s13 + $0xd8] sm:$0xff] %vm3513, %v3508
    %3542 = vst.msk [vmem:[%s13 + $0xe0] sm:$0xff] %vm3513, %v3509
    %3543 = vst.msk [vmem:[%s13 + $0xe8] sm:$0xff] %vm3513, %v3510
    %3544 = vst.msk [vmem:[%s13 + $0xf0] sm:$0xff] %vm3513, %v3511
    %3545 = vst.msk [vmem:[%s13 + $0xf8] sm:$0xff] %vm3513, %v3512
    // Predicated region
    $region78: #{tpu_custom_call.1} parent=1 // pred_check
      _
    $region79: #{tpu_custom_call.1} parent=1 // pred_check_branch
      %3547 = sbr.rel (0) target = $region81
    $region80: #{tpu_custom_call.1} parent=1 // pred_region
      _
    $region81: #{tpu_custom_call.1} parent=1 // pred_fallthru
      _
    // Predicated region
    $region82: #{tpu_custom_call.1} parent=1 // pred_check
      _
    $region83: #{tpu_custom_call.1} parent=1 // pred_check_branch
      %3549 = sbr.rel (0) target = $region85
    $region84: #{tpu_custom_call.1} parent=1 // pred_region
      _
    $region85: #{tpu_custom_call.1} parent=1 // pred_fallthru
      _
    %3550 = vsyncpa [#allocation3], 1
    %3551 = vsyncpa [#allocation5], 1
    %3552 = vsyncpa [#allocation8], 1
    %3553 = vsyncpa [#allocation11], 1

</llo_original>
